<compile_context>
chip_gen: v7x
topology: tpu7x:2x2x1
jax: 0.10.0
libtpu: 0.0.40
codegen_flags: <defaults>
</compile_context>

<pallas_src>
import functools

import jax
import jax.numpy as jnp
from jax.experimental import pallas as pl
from jax.experimental.pallas import tpu as pltpu


def _round_up(v, m):
    return ((v + m - 1) // m) * m


def _pick_row_block(H, max_rows=32):
    """Rows of output per grid step (must divide H)."""
    if H <= max_rows:
        # Split small images in two so the grid has a second parallel axis.
        return H // 2 if (H % 2 == 0 and H >= 8) else H
    th = 1
    for t in range(1, max_rows + 1):
        if H % t == 0:
            th = t
    return th


def _double_conv_kernel(x_ref, w1_ref, sh1_ref, w2_ref, sh2_ref, mask_ref,
                        o_ref, slab1_ref, y1_ref, slab2_ref,
                        *, TH, W, cin_p, cout_p):
    """Fused conv1+BN1+ReLU -> conv2+BN2+ReLU for one (image, row-block) tile.

    x_ref:    ((TH+5)*Wp, cin_p)   flattened haloed input rows (zero-padded image)
    w1_ref:   (9*cin_p, cout_p)    conv1 taps with BN1 scale folded in
    sh1_ref:  (1, cout_p)          BN1 shift
    w2_ref:   (9*cout_p, cout_p)   conv2 taps with BN2 scale folded in
    sh2_ref:  (1, cout_p)          BN2 shift
    mask_ref: (n1, 1)              1.0 where the stage-1 output is inside the image
    o_ref:    (TH*Wp, cout_p)      flattened output rows (cols >= W are garbage)
    """
    Wp = W + 4
    n1 = (TH + 2) * Wp          # stage-1 output rows (TH+2 image rows x Wp cols)
    n2 = TH * Wp                # stage-2 output rows (TH image rows x Wp cols)

    # ---- Stage 1: conv1 (single im2col matmul) + shift + ReLU + mask ------
    for ky in range(3):
        for kx in range(3):
            tap = ky * 3 + kx
            off = ky * Wp + kx                              # contiguous row shift
            slab1_ref[:, tap * cin_p:(tap + 1) * cin_p] = x_ref[off:off + n1, :]

    y1 = jnp.dot(slab1_ref[...], w1_ref[...], preferred_element_type=jnp.float32)
    y1 = jnp.maximum(y1 + sh1_ref[...], 0.0)
    # Zero everything outside the real image: this *is* the zero padding the
    # second conv must see (and it also kills the wrapped garbage columns).
    y1 = y1 * mask_ref[...]
    y1_ref[0:n1, :] = y1
    # Zero the small over-read tail used only by garbage columns of stage 2.
    y1_ref[n1:n1 + 8, :] = jnp.zeros((8, cout_p), jnp.float32)

    # ---- Stage 2: conv2 (single im2col matmul) + shift + ReLU --------------
    for ky in range(3):
        for kx in range(3):
            tap = ky * 3 + kx
            off = ky * Wp + kx
            slab2_ref[:, tap * cout_p:(tap + 1) * cout_p] = y1_ref[off:off + n2, :]

    y2 = jnp.dot(slab2_ref[...], w2_ref[...], preferred_element_type=jnp.float32)
    y2 = jnp.maximum(y2 + sh2_ref[...], 0.0)
    o_ref[...] = y2.astype(o_ref.dtype)


def _pack_conv_bn(w_oihw, gamma, beta, mean, var, cin_p, cout_p, eps=1e-5):
    """Fold inference BN into the conv weights, pad channels, pack for im2col."""
    cout, cin = w_oihw.shape[0], w_oihw.shape[1]
    scale = gamma / jnp.sqrt(var + eps)                 # (Cout,)
    shift = beta - mean * scale                         # (Cout,)
    w = w_oihw.astype(jnp.float32) * scale[:, None, None, None]   # exact fold
    w = jnp.transpose(w, (2, 3, 1, 0))                  # (ky, kx, Cin, Cout)
    w = jnp.pad(w, ((0, 0), (0, 0), (0, cin_p - cin), (0, cout_p - cout)))
    w = w.reshape(9 * cin_p, cout_p)                    # row = tap*cin_p + cin
    shift = jnp.pad(shift, (0, cout_p - cout)).reshape(1, cout_p).astype(jnp.float32)
    return w, shift


def double_conv(x_nchw, params):
    """Forward pass matching DoubleConv (inference BatchNorm). Input/output NCHW."""
    w1, g1, b1, m1, v1 = params["conv1"]
    w2, g2, b2, m2, v2 = params["conv2"]

    N, Cin, H, W = x_nchw.shape
    Cout = w1.shape[0]
    cin_p = _round_up(Cin, 128)
    cout_p = _round_up(Cout, 128)

    TH = _pick_row_block(H)
    assert H % TH == 0, (H, TH)
    R = H // TH
    Wp = W + 4
    TR = TH + 5                 # haloed rows per block (+1 spare row for row-wrap reads)
    n1 = (TH + 2) * Wp
    n2 = TH * Wp

    w1p, sh1 = _pack_conv_bn(w1, g1, b1, m1, v1, cin_p, cout_p)
    w2p, sh2 = _pack_conv_bn(w2, g2, b2, m2, v2, cout_p, cout_p)

    # NCHW -> NHWC, pad channels to lane width, spatial zero pad (2 / 3 bottom).
    x = jnp.transpose(x_nchw, (0, 2, 3, 1)).astype(jnp.float32)
    x = jnp.pad(x, ((0, 0), (2, 3), (2, 2), (0, cin_p - Cin)))

    # Halo-expanded row blocks, flattened over (row, col): (N, R, TR*Wp, cin_p).
    x_blocks = jnp.stack([x[:, r * TH:r * TH + TR] for r in range(R)], axis=1)
    x_blocks = x_blocks.reshape(N, R, TR * Wp, cin_p)

    # Validity mask for the stage-1 output (inside-image positions only).
    h1 = jnp.arange(TH + 2)
    wi = jnp.arange(Wp)
    col_ok = (wi >= 1) & (wi <= W)
    masks = []
    for r in range(R):
        row = r * TH + h1 - 1
        row_ok = (row >= 0) & (row < H)
        masks.append((row_ok[:, None] & col_ok[None, :]).astype(jnp.float32))
    mask = jnp.stack(masks, 0).reshape(R, n1, 1)

    kernel = functools.partial(_double_conv_kernel, TH=TH, W=W,
                               cin_p=cin_p, cout_p=cout_p)

    out = pl.pallas_call(
        kernel,
        out_shape=jax.ShapeDtypeStruct((N, R, n2, cout_p), jnp.float32),
        grid_spec=pltpu.PrefetchScalarGridSpec(
            num_scalar_prefetch=0,
            grid=(N, R),
            in_specs=[
                pl.BlockSpec((None, None, TR * Wp, cin_p), lambda n, r: (n, r, 0, 0)),
                pl.BlockSpec((9 * cin_p, cout_p), lambda n, r: (0, 0)),
                pl.BlockSpec((1, cout_p), lambda n, r: (0, 0)),
                pl.BlockSpec((9 * cout_p, cout_p), lambda n, r: (0, 0)),
                pl.BlockSpec((1, cout_p), lambda n, r: (0, 0)),
                pl.BlockSpec((None, n1, 1), lambda n, r: (r, 0, 0)),
            ],
            out_specs=pl.BlockSpec((None, None, n2, cout_p),
                                   lambda n, r: (n, r, 0, 0)),
            scratch_shapes=[
                pltpu.VMEM((n1, 9 * cin_p), jnp.float32),        # im2col slab, conv1
                pltpu.VMEM((n1 + 8, cout_p), jnp.float32),       # intermediate y1
                pltpu.VMEM((n2, 9 * cout_p), jnp.float32),       # im2col slab, conv2
            ],
        ),
        compiler_params=pltpu.CompilerParams(
            dimension_semantics=("parallel", "parallel")),
    )(x_blocks, w1p, sh1, w2p, sh2, mask)

    # (N, R, TH*Wp, cout_p) -> (N, H, Wp, cout_p) -> strip pad -> NCHW.
    out = out.reshape(N, R, TH, Wp, cout_p).reshape(N, H, Wp, cout_p)
    out = out[:, :, :W, :Cout]
    return jnp.transpose(out, (0, 3, 1, 2)).astype(x_nchw.dtype)


def _reference_double_conv(x_nchw, params):
    """Pure-JAX reference (lax.conv) using the same folded-BN algebra."""
    def stage(x, w_oihw, g, b, m, v, eps=1e-5):
        scale = g / jnp.sqrt(v + eps)
        shift = b - m * scale
        w = w_oihw.astype(jnp.float32) * scale[:, None, None, None]
        w_hwio = jnp.transpose(w, (2, 3, 1, 0))
        y = jax.lax.conv_general_dilated(
            x, w_hwio, window_strides=(1, 1), padding=((1, 1), (1, 1)),
            dimension_numbers=("NHWC", "HWIO", "NHWC"))
        return jnp.maximum(y + shift[None, None, None, :], 0.0)

    x = jnp.transpose(x_nchw, (0, 2, 3, 1)).astype(jnp.float32)
    y = stage(x, *params["conv1"])
    y = stage(y, *params["conv2"])
    return jnp.transpose(y, (0, 3, 1, 2))


if __name__ == "__main__":
    key = jax.random.PRNGKey(0)
    N, Cin, Cout, H, W = 2, 4, 8, 16, 16

    k = jax.random.split(key, 9)
    w1 = 0.1 * jax.random.normal(k[0], (Cout, Cin, 3, 3), jnp.float32)
    w2 = 0.1 * jax.random.normal(k[1], (Cout, Cout, 3, 3), jnp.float32)
    g1 = 1.0 + 0.05 * jax.random.normal(k[2], (Cout,), jnp.float32)
    b1 = 0.05 * jax.random.normal(k[3], (Cout,), jnp.float32)
    g2 = 1.0 + 0.05 * jax.random.normal(k[4], (Cout,), jnp.float32)
    b2 = 0.05 * jax.random.normal(k[5], (Cout,), jnp.float32)
    m1 = 0.01 * jax.random.normal(k[6], (Cout,), jnp.float32)
    v1 = jnp.ones((Cout,), jnp.float32)
    m2 = 0.01 * jax.random.normal(k[7], (Cout,), jnp.float32)
    v2 = jnp.ones((Cout,), jnp.float32)

    params = {
        "conv1": (w1, g1, b1, m1, v1),
        "conv2": (w2, g2, b2, m2, v2),
    }
    x = jax.random.normal(k[8], (N, Cin, H, W), jnp.float32)

    out = jax.block_until_ready(double_conv(x, params))
    assert out.shape == (N, Cout, H, W), out.shape

    ref = jax.block_until_ready(_reference_double_conv(x, params))
    max_err = float(jnp.max(jnp.abs(out - ref)))
    assert max_err < 1e-3, max_err

    print("KERNEL_OK")
</pallas_src>

<mosaic_0001>
module attributes {stable_mosaic.version = 11 : i64} {
  func.func @_double_conv_kernel(%arg0: i32, %arg1: i32, %arg2: memref<1x1x260x128xf32, #tpu.memory_space<vmem>>, %arg3: memref<1152x128xf32, #tpu.memory_space<vmem>>, %arg4: memref<1x128xf32, #tpu.memory_space<vmem>>, %arg5: memref<1152x128xf32, #tpu.memory_space<vmem>>, %arg6: memref<1x128xf32, #tpu.memory_space<vmem>>, %arg7: memref<1x200x1xf32, #tpu.memory_space<vmem>>, %arg8: memref<1x1x160x128xf32, #tpu.memory_space<vmem>>, %arg9: memref<200x1152xf32, #tpu.memory_space<vmem>>, %arg10: memref<208x128xf32, #tpu.memory_space<vmem>>, %arg11: memref<160x1152xf32, #tpu.memory_space<vmem>>) attributes {dimension_semantics = [#tpu.dimension_semantics<parallel>, #tpu.dimension_semantics<parallel>], iteration_bounds = array<i64: 2, 2>, scalar_prefetch = 0 : i64, scratch_operands = 3 : i64, tpu.core_type = #tpu.core_type<tc>, window_params = [{transform_indices = @transform_0, window_bounds = array<i64: 1, 1, 260, 128>}, {pipeline_mode = #tpu.pipeline_mode<synchronous>, transform_indices = @transform_1, window_bounds = array<i64: 1152, 128>}, {pipeline_mode = #tpu.pipeline_mode<synchronous>, transform_indices = @transform_2, window_bounds = array<i64: 1, 128>}, {pipeline_mode = #tpu.pipeline_mode<synchronous>, transform_indices = @transform_3, window_bounds = array<i64: 1152, 128>}, {pipeline_mode = #tpu.pipeline_mode<synchronous>, transform_indices = @transform_4, window_bounds = array<i64: 1, 128>}, {transform_indices = @transform_5, window_bounds = array<i64: 1, 200, 1>}, {transform_indices = @transform_6, window_bounds = array<i64: 1, 1, 160, 128>}]} {
    %c0 = arith.constant 0 : index
    %c0_0 = arith.constant 0 : index
    %c0_1 = arith.constant 0 : index
    %c0_2 = arith.constant 0 : index
    %0 = vector.load %arg2[%c0, %c0_0, %c0_1, %c0_2] : memref<1x1x260x128xf32, #tpu.memory_space<vmem>>, vector<1x1x200x128xf32>
    %1 = vector.shape_cast %0 : vector<1x1x200x128xf32> to vector<200x128xf32>
    %c0_3 = arith.constant 0 : index
    %c0_4 = arith.constant 0 : index
    %2 = vector.load %arg9[%c0_3, %c0_4] : memref<200x1152xf32, #tpu.memory_space<vmem>>, vector<200x128xf32>
    tpu.vector_store %arg9[%c0_3, %c0_4], %1 {strides = array<i32>} : memref<200x1152xf32, #tpu.memory_space<vmem>>, vector<200x128xf32>,
    %c0_5 = arith.constant 0 : index
    %c0_6 = arith.constant 0 : index
    %c1 = arith.constant 1 : index
    %c0_7 = arith.constant 0 : index
    %3 = vector.load %arg2[%c0_5, %c0_6, %c1, %c0_7] : memref<1x1x260x128xf32, #tpu.memory_space<vmem>>, vector<1x1x200x128xf32>
    %4 = vector.shape_cast %3 : vector<1x1x200x128xf32> to vector<200x128xf32>
    %c0_8 = arith.constant 0 : index
    %c128 = arith.constant 128 : index
    %5 = vector.load %arg9[%c0_8, %c128] : memref<200x1152xf32, #tpu.memory_space<vmem>>, vector<200x128xf32>
    tpu.vector_store %arg9[%c0_8, %c128], %4 {strides = array<i32>} : memref<200x1152xf32, #tpu.memory_space<vmem>>, vector<200x128xf32>,
    %c0_9 = arith.constant 0 : index
    %c0_10 = arith.constant 0 : index
    %c2 = arith.constant 2 : index
    %c0_11 = arith.constant 0 : index
    %6 = vector.load %arg2[%c0_9, %c0_10, %c2, %c0_11] : memref<1x1x260x128xf32, #tpu.memory_space<vmem>>, vector<1x1x200x128xf32>
    %7 = vector.shape_cast %6 : vector<1x1x200x128xf32> to vector<200x128xf32>
    %c0_12 = arith.constant 0 : index
    %c256 = arith.constant 256 : index
    %8 = vector.load %arg9[%c0_12, %c256] : memref<200x1152xf32, #tpu.memory_space<vmem>>, vector<200x128xf32>
    tpu.vector_store %arg9[%c0_12, %c256], %7 {strides = array<i32>} : memref<200x1152xf32, #tpu.memory_space<vmem>>, vector<200x128xf32>,
    %c0_13 = arith.constant 0 : index
    %c0_14 = arith.constant 0 : index
    %c20 = arith.constant 20 : index
    %c0_15 = arith.constant 0 : index
    %9 = vector.load %arg2[%c0_13, %c0_14, %c20, %c0_15] : memref<1x1x260x128xf32, #tpu.memory_space<vmem>>, vector<1x1x200x128xf32>
    %10 = vector.shape_cast %9 : vector<1x1x200x128xf32> to vector<200x128xf32>
    %c0_16 = arith.constant 0 : index
    %c384 = arith.constant 384 : index
    %11 = vector.load %arg9[%c0_16, %c384] : memref<200x1152xf32, #tpu.memory_space<vmem>>, vector<200x128xf32>
    tpu.vector_store %arg9[%c0_16, %c384], %10 {strides = array<i32>} : memref<200x1152xf32, #tpu.memory_space<vmem>>, vector<200x128xf32>,
    %c0_17 = arith.constant 0 : index
    %c0_18 = arith.constant 0 : index
    %c21 = arith.constant 21 : index
    %c0_19 = arith.constant 0 : index
    %12 = vector.load %arg2[%c0_17, %c0_18, %c21, %c0_19] : memref<1x1x260x128xf32, #tpu.memory_space<vmem>>, vector<1x1x200x128xf32>
    %13 = vector.shape_cast %12 : vector<1x1x200x128xf32> to vector<200x128xf32>
    %c0_20 = arith.constant 0 : index
    %c512 = arith.constant 512 : index
    %14 = vector.load %arg9[%c0_20, %c512] : memref<200x1152xf32, #tpu.memory_space<vmem>>, vector<200x128xf32>
    tpu.vector_store %arg9[%c0_20, %c512], %13 {strides = array<i32>} : memref<200x1152xf32, #tpu.memory_space<vmem>>, vector<200x128xf32>,
    %c0_21 = arith.constant 0 : index
    %c0_22 = arith.constant 0 : index
    %c22 = arith.constant 22 : index
    %c0_23 = arith.constant 0 : index
    %15 = vector.load %arg2[%c0_21, %c0_22, %c22, %c0_23] : memref<1x1x260x128xf32, #tpu.memory_space<vmem>>, vector<1x1x200x128xf32>
    %16 = vector.shape_cast %15 : vector<1x1x200x128xf32> to vector<200x128xf32>
    %c0_24 = arith.constant 0 : index
    %c640 = arith.constant 640 : index
    %17 = vector.load %arg9[%c0_24, %c640] : memref<200x1152xf32, #tpu.memory_space<vmem>>, vector<200x128xf32>
    tpu.vector_store %arg9[%c0_24, %c640], %16 {strides = array<i32>} : memref<200x1152xf32, #tpu.memory_space<vmem>>, vector<200x128xf32>,
    %c0_25 = arith.constant 0 : index
    %c0_26 = arith.constant 0 : index
    %c40 = arith.constant 40 : index
    %c0_27 = arith.constant 0 : index
    %18 = vector.load %arg2[%c0_25, %c0_26, %c40, %c0_27] : memref<1x1x260x128xf32, #tpu.memory_space<vmem>>, vector<1x1x200x128xf32>
    %19 = vector.shape_cast %18 : vector<1x1x200x128xf32> to vector<200x128xf32>
    %c0_28 = arith.constant 0 : index
    %c768 = arith.constant 768 : index
    %20 = vector.load %arg9[%c0_28, %c768] : memref<200x1152xf32, #tpu.memory_space<vmem>>, vector<200x128xf32>
    tpu.vector_store %arg9[%c0_28, %c768], %19 {strides = array<i32>} : memref<200x1152xf32, #tpu.memory_space<vmem>>, vector<200x128xf32>,
    %c0_29 = arith.constant 0 : index
    %c0_30 = arith.constant 0 : index
    %c41 = arith.constant 41 : index
    %c0_31 = arith.constant 0 : index
    %21 = vector.load %arg2[%c0_29, %c0_30, %c41, %c0_31] : memref<1x1x260x128xf32, #tpu.memory_space<vmem>>, vector<1x1x200x128xf32>
    %22 = vector.shape_cast %21 : vector<1x1x200x128xf32> to vector<200x128xf32>
    %c0_32 = arith.constant 0 : index
    %c896 = arith.constant 896 : index
    %23 = vector.load %arg9[%c0_32, %c896] : memref<200x1152xf32, #tpu.memory_space<vmem>>, vector<200x128xf32>
    tpu.vector_store %arg9[%c0_32, %c896], %22 {strides = array<i32>} : memref<200x1152xf32, #tpu.memory_space<vmem>>, vector<200x128xf32>,
    %c0_33 = arith.constant 0 : index
    %c0_34 = arith.constant 0 : index
    %c42 = arith.constant 42 : index
    %c0_35 = arith.constant 0 : index
    %24 = vector.load %arg2[%c0_33, %c0_34, %c42, %c0_35] : memref<1x1x260x128xf32, #tpu.memory_space<vmem>>, vector<1x1x200x128xf32>
    %25 = vector.shape_cast %24 : vector<1x1x200x128xf32> to vector<200x128xf32>
    %c0_36 = arith.constant 0 : index
    %c1024 = arith.constant 1024 : index
    %26 = vector.load %arg9[%c0_36, %c1024] : memref<200x1152xf32, #tpu.memory_space<vmem>>, vector<200x128xf32>
    tpu.vector_store %arg9[%c0_36, %c1024], %25 {strides = array<i32>} : memref<200x1152xf32, #tpu.memory_space<vmem>>, vector<200x128xf32>,
    %c0_37 = arith.constant 0 : index
    %c0_38 = arith.constant 0 : index
    %27 = vector.load %arg9[%c0_37, %c0_38] : memref<200x1152xf32, #tpu.memory_space<vmem>>, vector<200x1152xf32>
    %c0_39 = arith.constant 0 : index
    %c0_40 = arith.constant 0 : index
    %28 = vector.load %arg3[%c0_39, %c0_40] : memref<1152x128xf32, #tpu.memory_space<vmem>>, vector<1152x128xf32>
    %cst = arith.constant dense<0.000000e+00> : vector<200x128xf32>
    %29 = tpu.matmul %27, %28, %cst {dimension_numbers = #tpu.dot_dimension_numbers<[1], [0], [0], [1], [0, 0, 1, 1], [], []>} : vector<200x1152xf32>, vector<1152x128xf32>, vector<200x128xf32> -> vector<200x128xf32>
    %c0_41 = arith.constant 0 : index
    %c0_42 = arith.constant 0 : index
    %30 = vector.load %arg4[%c0_41, %c0_42] : memref<1x128xf32, #tpu.memory_space<vmem>>, vector<1x128xf32>
    %31 = vector.broadcast %30 : vector<1x128xf32> to vector<200x128xf32>
    %32 = arith.addf %29, %31 : vector<200x128xf32>
    %cst_43 = arith.constant 0.000000e+00 : f32
    %33 = vector.broadcast %cst_43 : f32 to vector<200x128xf32>
    %34 = arith.maximumf %32, %33 : vector<200x128xf32>
    %c0_44 = arith.constant 0 : index
    %c0_45 = arith.constant 0 : index
    %c0_46 = arith.constant 0 : index
    %35 = vector.load %arg7[%c0_44, %c0_45, %c0_46] : memref<1x200x1xf32, #tpu.memory_space<vmem>>, vector<1x200x1xf32>
    %36 = vector.shape_cast %35 : vector<1x200x1xf32> to vector<200x1xf32>
    %37 = vector.broadcast %36 : vector<200x1xf32> to vector<200x128xf32>
    %38 = arith.mulf %34, %37 : vector<200x128xf32>
    %c0_47 = arith.constant 0 : index
    %c0_48 = arith.constant 0 : index
    %39 = vector.load %arg10[%c0_47, %c0_48] : memref<208x128xf32, #tpu.memory_space<vmem>>, vector<200x128xf32>
    tpu.vector_store %arg10[%c0_47, %c0_48], %38 {strides = array<i32>} : memref<208x128xf32, #tpu.memory_space<vmem>>, vector<200x128xf32>,
    %cst_49 = arith.constant 0.000000e+00 : f32
    %40 = vector.broadcast %cst_49 : f32 to vector<8x128xf32>
    %c200 = arith.constant 200 : index
    %c0_50 = arith.constant 0 : index
    %41 = vector.load %arg10[%c200, %c0_50] : memref<208x128xf32, #tpu.memory_space<vmem>>, vector<8x128xf32>
    tpu.vector_store %arg10[%c200, %c0_50], %40 {strides = array<i32>} : memref<208x128xf32, #tpu.memory_space<vmem>>, vector<8x128xf32>,
    %c0_51 = arith.constant 0 : index
    %c0_52 = arith.constant 0 : index
    %42 = vector.load %arg10[%c0_51, %c0_52] : memref<208x128xf32, #tpu.memory_space<vmem>>, vector<160x128xf32>
    %c0_53 = arith.constant 0 : index
    %c0_54 = arith.constant 0 : index
    %43 = vector.load %arg11[%c0_53, %c0_54] : memref<160x1152xf32, #tpu.memory_space<vmem>>, vector<160x128xf32>
    tpu.vector_store %arg11[%c0_53, %c0_54], %42 {strides = array<i32>} : memref<160x1152xf32, #tpu.memory_space<vmem>>, vector<160x128xf32>,
    %c1_55 = arith.constant 1 : index
    %c0_56 = arith.constant 0 : index
    %44 = vector.load %arg10[%c1_55, %c0_56] : memref<208x128xf32, #tpu.memory_space<vmem>>, vector<160x128xf32>
    %c0_57 = arith.constant 0 : index
    %c128_58 = arith.constant 128 : index
    %45 = vector.load %arg11[%c0_57, %c128_58] : memref<160x1152xf32, #tpu.memory_space<vmem>>, vector<160x128xf32>
    tpu.vector_store %arg11[%c0_57, %c128_58], %44 {strides = array<i32>} : memref<160x1152xf32, #tpu.memory_space<vmem>>, vector<160x128xf32>,
    %c2_59 = arith.constant 2 : index
    %c0_60 = arith.constant 0 : index
    %46 = vector.load %arg10[%c2_59, %c0_60] : memref<208x128xf32, #tpu.memory_space<vmem>>, vector<160x128xf32>
    %c0_61 = arith.constant 0 : index
    %c256_62 = arith.constant 256 : index
    %47 = vector.load %arg11[%c0_61, %c256_62] : memref<160x1152xf32, #tpu.memory_space<vmem>>, vector<160x128xf32>
    tpu.vector_store %arg11[%c0_61, %c256_62], %46 {strides = array<i32>} : memref<160x1152xf32, #tpu.memory_space<vmem>>, vector<160x128xf32>,
    %c20_63 = arith.constant 20 : index
    %c0_64 = arith.constant 0 : index
    %48 = vector.load %arg10[%c20_63, %c0_64] : memref<208x128xf32, #tpu.memory_space<vmem>>, vector<160x128xf32>
    %c0_65 = arith.constant 0 : index
    %c384_66 = arith.constant 384 : index
    %49 = vector.load %arg11[%c0_65, %c384_66] : memref<160x1152xf32, #tpu.memory_space<vmem>>, vector<160x128xf32>
    tpu.vector_store %arg11[%c0_65, %c384_66], %48 {strides = array<i32>} : memref<160x1152xf32, #tpu.memory_space<vmem>>, vector<160x128xf32>,
    %c21_67 = arith.constant 21 : index
    %c0_68 = arith.constant 0 : index
    %50 = vector.load %arg10[%c21_67, %c0_68] : memref<208x128xf32, #tpu.memory_space<vmem>>, vector<160x128xf32>
    %c0_69 = arith.constant 0 : index
    %c512_70 = arith.constant 512 : index
    %51 = vector.load %arg11[%c0_69, %c512_70] : memref<160x1152xf32, #tpu.memory_space<vmem>>, vector<160x128xf32>
    tpu.vector_store %arg11[%c0_69, %c512_70], %50 {strides = array<i32>} : memref<160x1152xf32, #tpu.memory_space<vmem>>, vector<160x128xf32>,
    %c22_71 = arith.constant 22 : index
    %c0_72 = arith.constant 0 : index
    %52 = vector.load %arg10[%c22_71, %c0_72] : memref<208x128xf32, #tpu.memory_space<vmem>>, vector<160x128xf32>
    %c0_73 = arith.constant 0 : index
    %c640_74 = arith.constant 640 : index
    %53 = vector.load %arg11[%c0_73, %c640_74] : memref<160x1152xf32, #tpu.memory_space<vmem>>, vector<160x128xf32>
    tpu.vector_store %arg11[%c0_73, %c640_74], %52 {strides = array<i32>} : memref<160x1152xf32, #tpu.memory_space<vmem>>, vector<160x128xf32>,
    %c40_75 = arith.constant 40 : index
    %c0_76 = arith.constant 0 : index
    %54 = vector.load %arg10[%c40_75, %c0_76] : memref<208x128xf32, #tpu.memory_space<vmem>>, vector<160x128xf32>
    %c0_77 = arith.constant 0 : index
    %c768_78 = arith.constant 768 : index
    %55 = vector.load %arg11[%c0_77, %c768_78] : memref<160x1152xf32, #tpu.memory_space<vmem>>, vector<160x128xf32>
    tpu.vector_store %arg11[%c0_77, %c768_78], %54 {strides = array<i32>} : memref<160x1152xf32, #tpu.memory_space<vmem>>, vector<160x128xf32>,
    %c41_79 = arith.constant 41 : index
    %c0_80 = arith.constant 0 : index
    %56 = vector.load %arg10[%c41_79, %c0_80] : memref<208x128xf32, #tpu.memory_space<vmem>>, vector<160x128xf32>
    %c0_81 = arith.constant 0 : index
    %c896_82 = arith.constant 896 : index
    %57 = vector.load %arg11[%c0_81, %c896_82] : memref<160x1152xf32, #tpu.memory_space<vmem>>, vector<160x128xf32>
    tpu.vector_store %arg11[%c0_81, %c896_82], %56 {strides = array<i32>} : memref<160x1152xf32, #tpu.memory_space<vmem>>, vector<160x128xf32>,
    %c42_83 = arith.constant 42 : index
    %c0_84 = arith.constant 0 : index
    %58 = vector.load %arg10[%c42_83, %c0_84] : memref<208x128xf32, #tpu.memory_space<vmem>>, vector<160x128xf32>
    %c0_85 = arith.constant 0 : index
    %c1024_86 = arith.constant 1024 : index
    %59 = vector.load %arg11[%c0_85, %c1024_86] : memref<160x1152xf32, #tpu.memory_space<vmem>>, vector<160x128xf32>
    tpu.vector_store %arg11[%c0_85, %c1024_86], %58 {strides = array<i32>} : memref<160x1152xf32, #tpu.memory_space<vmem>>, vector<160x128xf32>,
    %c0_87 = arith.constant 0 : index
    %c0_88 = arith.constant 0 : index
    %60 = vector.load %arg11[%c0_87, %c0_88] : memref<160x1152xf32, #tpu.memory_space<vmem>>, vector<160x1152xf32>
    %c0_89 = arith.constant 0 : index
    %c0_90 = arith.constant 0 : index
    %61 = vector.load %arg5[%c0_89, %c0_90] : memref<1152x128xf32, #tpu.memory_space<vmem>>, vector<1152x128xf32>
    %cst_91 = arith.constant dense<0.000000e+00> : vector<160x128xf32>
    %62 = tpu.matmul %60, %61, %cst_91 {dimension_numbers = #tpu.dot_dimension_numbers<[1], [0], [0], [1], [0, 0, 1, 1], [], []>} : vector<160x1152xf32>, vector<1152x128xf32>, vector<160x128xf32> -> vector<160x128xf32>
    %c0_92 = arith.constant 0 : index
    %c0_93 = arith.constant 0 : index
    %63 = vector.load %arg6[%c0_92, %c0_93] : memref<1x128xf32, #tpu.memory_space<vmem>>, vector<1x128xf32>
    %64 = vector.broadcast %63 : vector<1x128xf32> to vector<160x128xf32>
    %65 = arith.addf %62, %64 : vector<160x128xf32>
    %cst_94 = arith.constant 0.000000e+00 : f32
    %66 = vector.broadcast %cst_94 : f32 to vector<160x128xf32>
    %67 = arith.maximumf %65, %66 : vector<160x128xf32>
    %c0_95 = arith.constant 0 : index
    %c0_96 = arith.constant 0 : index
    %c0_97 = arith.constant 0 : index
    %c0_98 = arith.constant 0 : index
    %68 = vector.load %arg8[%c0_95, %c0_96, %c0_97, %c0_98] : memref<1x1x160x128xf32, #tpu.memory_space<vmem>>, vector<1x1x160x128xf32>
    %69 = vector.shape_cast %68 : vector<1x1x160x128xf32> to vector<160x128xf32>
    %70 = vector.shape_cast %67 : vector<160x128xf32> to vector<1x1x160x128xf32>
    tpu.vector_store %arg8[%c0_95, %c0_96, %c0_97, %c0_98], %70 {strides = array<i32>} : memref<1x1x160x128xf32, #tpu.memory_space<vmem>>, vector<1x1x160x128xf32>,
    return
  }
  func.func @transform_0(%arg0: i32, %arg1: i32) -> (i32, i32, i32, i32) {
    %c0_i32 = arith.constant 0 : i32
    %c0_i32_0 = arith.constant 0 : i32
    %c0_i32_1 = arith.constant 0 : i32
    return %arg0, %arg1, %c0_i32, %c0_i32_0 : i32, i32, i32, i32
  }
  func.func @transform_1(%arg0: i32, %arg1: i32) -> (i32, i32) {
    %c0_i32 = arith.constant 0 : i32
    %c0_i32_0 = arith.constant 0 : i32
    %c0_i32_1 = arith.constant 0 : i32
    return %c0_i32, %c0_i32_0 : i32, i32
  }
  func.func @transform_2(%arg0: i32, %arg1: i32) -> (i32, i32) {
    %c0_i32 = arith.constant 0 : i32
    %c0_i32_0 = arith.constant 0 : i32
    %c0_i32_1 = arith.constant 0 : i32
    return %c0_i32, %c0_i32_0 : i32, i32
  }
  func.func @transform_3(%arg0: i32, %arg1: i32) -> (i32, i32) {
    %c0_i32 = arith.constant 0 : i32
    %c0_i32_0 = arith.constant 0 : i32
    %c0_i32_1 = arith.constant 0 : i32
    return %c0_i32, %c0_i32_0 : i32, i32
  }
  func.func @transform_4(%arg0: i32, %arg1: i32) -> (i32, i32) {
    %c0_i32 = arith.constant 0 : i32
    %c0_i32_0 = arith.constant 0 : i32
    %c0_i32_1 = arith.constant 0 : i32
    return %c0_i32, %c0_i32_0 : i32, i32
  }
  func.func @transform_5(%arg0: i32, %arg1: i32) -> (i32, i32, i32) {
    %c0_i32 = arith.constant 0 : i32
    %c0_i32_0 = arith.constant 0 : i32
    %c0_i32_1 = arith.constant 0 : i32
    return %arg1, %c0_i32, %c0_i32_0 : i32, i32, i32
  }
  func.func @transform_6(%arg0: i32, %arg1: i32) -> (i32, i32, i32, i32) {
    %c0_i32 = arith.constant 0 : i32
    %c0_i32_0 = arith.constant 0 : i32
    %c0_i32_1 = arith.constant 0 : i32
    return %arg0, %arg1, %c0_i32, %c0_i32_0 : i32, i32, i32, i32
  }
}

</mosaic_0001>

<llo_original>
// kernel: tpu_custom_call.1
$region0: #{tpu_custom_call.1}
  #allocation0 [shape = 'u32[]', space=smem, size = 0x4, offset = 0x4, fixed_abs, tag = 'smem constant byte address 0x4 - core index']
  #allocation1 [shape = 'u32[144,128]{1,0:T(1,128)}', space=vmem, size = 0x12000, scoped, tag = 'internal scratch']
  #allocation2 [shape = 'f32[200,1152]{1,0:T(8,128)}', space=vmem, size = 0xe1000, scoped, tag = 'scratch operand']
  #allocation3 [shape = 'f32[208,128]{1,0:T(8,128)}', space=vmem, size = 0x1a000, scoped, tag = 'scratch operand']
  #allocation4 [shape = 'f32[160,1152]{1,0:T(8,128)}', space=vmem, size = 0xb4000, scoped, tag = 'scratch operand']
  %s0 = inlined_call_operand.vmem [shape: f32[2,2,260,128], index: 0, kind: input, shape index: {}]
  %s1 = inlined_call_operand.vmem [shape: f32[1152,128], index: 1, kind: input, shape index: {}]
  %s2 = inlined_call_operand.vmem [shape: f32[1,128], index: 2, kind: input, shape index: {}]
  %s3 = inlined_call_operand.vmem [shape: f32[1152,128], index: 3, kind: input, shape index: {}]
  %s4 = inlined_call_operand.vmem [shape: f32[1,128], index: 4, kind: input, shape index: {}]
  %s5 = inlined_call_operand.vmem [shape: f32[2,200,1], index: 5, kind: input, shape index: {}]
  %s6 = inlined_call_operand.hbm [shape: f32[2,2,160,128], index: 6, kind: output, shape index: {}]
  %s7 = sld [smem:[#allocation0]]
  $region57: #{tpu_custom_call.1} parent=0
    _
  %s9 = ssub.s32 1, %s7
  %s10 = scalar_select 0, %s9, %s7
  $region1: #{tpu_custom_call.1} parent=0
    #allocation5 [shape = 'u8[163840]{0}', space=vmem, size = 0x28000, scoped, tag = 'output window, operand 0']
    #allocation6 [shape = 's32[2]{0}', space=sflag, size = 0x8, scoped, tag = 'scoped memory for tpu_custom_call.1']
    %11 = vsyncpa [#allocation6], 0
    %s12 = scalar_lea.sflag [#allocation6], 1
    %13 = vsyncpa %s12, 0
    loop: start=0, step=1, limit=6
    $region2: #{tpu_custom_call.1} parent=1 // loop_pre_header
      _
    $region3: #{tpu_custom_call.1} parent=1 // loop_header
      %s15 = sphi 0, %s19
      %p16 = scmp.ge.s32.totalorder %s15, 6
      %s22 = sphi 0, %s34
      %s23 = sphi 0, %s30
      %s24 = sphi 0, %s22
      %s25 = sphi 0, %s23
      %s26 = sphi 0, %s24
      %s27 = sphi 0, %s25
      %s39 = sphi 0, %s41
      %s42 = sphi 0, %s39
      %s43 = sphi 0, %s42
      %s59 = sphi 0, %s43
      %s63 = sphi 0, %s63
      %s65 = sphi 0, %s63
      %s66 = sphi 0, %s65
      %s80 = sphi 0, %s66
      %s84 = sphi 0, %s84
      %s86 = sphi 0, %s84
      %s87 = sphi 0, %s86
      %s101 = sphi 0, %s87
      %s105 = sphi 0, %s105
      %s107 = sphi 0, %s105
      %s108 = sphi 0, %s107
      %s122 = sphi 0, %s108
      %s126 = sphi 0, %s126
      %s128 = sphi 0, %s126
      %s129 = sphi 0, %s128
      %s143 = sphi 0, %s129
      %s149 = sphi 0, %s151
      %s152 = sphi 0, %s149
      %s153 = sphi 0, %s152
      %s169 = sphi 0, %s153
      %s177 = sphi 0, %s179
      %s180 = sphi 0, %s177
      %s181 = sphi 0, %s180
      %s197 = sphi 0, %s181
    $region4: #{tpu_custom_call.1} parent=1 // loop_header_branch
      %18 = sbr.rel (%p16) target = $region8
    $region5: #{tpu_custom_call.1} parent=1 // loop_body
      %s20 = ssub.s32 %s15, 1
      %s21 = ssub.s32 %s15, 2
      %s28 = sadd.s32 1, %s23
      %p29 = scmp.ge.s32.totalorder %s28, 2
      %s30 = scalar_select %p29, 0, %s28
      %s31 = sadd.s32 1, %s22
      %s32 = scalar_select %p29, %s31, %s22
      %p33 = scmp.ge.s32.totalorder %s32, 2
      %s34 = scalar_select %p33, 0, %s32
      %s35 = ssub.s32 %s22, %s34
      %s36 = ssub.s32 %s23, %s30
      %s37 = sor.u32 %s35, %s36
      %p38 = scmp.eq.s32.totalorder %s37, 0
      %s40 = sadd.s32 %s39, 1
      %s41 = scalar_select %p38, %s39, %s40
      %p44 = pneg %p38
      %p45 = scmp.eq.s32.totalorder %s15, 3
      %p46 = por %p44, %p45
      %p47 = scmp.ne.s32.totalorder %s39, %s42
      %p48 = scmp.eq.s32.totalorder %s15, 0
      %p49 = por %p47, %p48
      %p50 = scmp.ne.s32.totalorder %s39, %s42
      %p51 = scmp.eq.s32.totalorder %s20, 3
      %p52 = por %p50, %p51
      %p53 = scmp.ne.s32.totalorder %s42, %s43
      %p54 = scmp.eq.s32.totalorder %s20, 0
      %p55 = por %p53, %p54
      %p56 = scmp.ne.s32.totalorder %s42, %s43
      %p57 = scmp.eq.s32.totalorder %s21, 3
      %p58 = por %p56, %p57
      %p60 = scmp.ne.s32.totalorder %s43, %s59
      %p61 = scmp.eq.s32.totalorder %s21, 0
      %p62 = por %p60, %p61
      %s64 = sadd.s32 %s63, 1
      %p67 = scmp.eq.s32.totalorder %s15, 3
      %p68 = scmp.ne.s32.totalorder %s63, %s65
      %p69 = scmp.eq.s32.totalorder %s15, 0
      %p70 = por %p68, %p69
      %p71 = scmp.ne.s32.totalorder %s63, %s65
      %p72 = scmp.eq.s32.totalorder %s20, 3
      %p73 = por %p71, %p72
      %p74 = scmp.ne.s32.totalorder %s65, %s66
      %p75 = scmp.eq.s32.totalorder %s20, 0
      %p76 = por %p74, %p75
      %p77 = scmp.ne.s32.totalorder %s65, %s66
      %p78 = scmp.eq.s32.totalorder %s21, 3
      %p79 = por %p77, %p78
      %p81 = scmp.ne.s32.totalorder %s66, %s80
      %p82 = scmp.eq.s32.totalorder %s21, 0
      %p83 = por %p81, %p82
      %s85 = sadd.s32 %s84, 1
      %p88 = scmp.eq.s32.totalorder %s15, 3
      %p89 = scmp.ne.s32.totalorder %s84, %s86
      %p90 = scmp.eq.s32.totalorder %s15, 0
      %p91 = por %p89, %p90
      %p92 = scmp.ne.s32.totalorder %s84, %s86
      %p93 = scmp.eq.s32.totalorder %s20, 3
      %p94 = por %p92, %p93
      %p95 = scmp.ne.s32.totalorder %s86, %s87
      %p96 = scmp.eq.s32.totalorder %s20, 0
      %p97 = por %p95, %p96
      %p98 = scmp.ne.s32.totalorder %s86, %s87
      %p99 = scmp.eq.s32.totalorder %s21, 3
      %p100 = por %p98, %p99
      %p102 = scmp.ne.s32.totalorder %s87, %s101
      %p103 = scmp.eq.s32.totalorder %s21, 0
      %p104 = por %p102, %p103
      %s106 = sadd.s32 %s105, 1
      %p109 = scmp.eq.s32.totalorder %s15, 3
      %p110 = scmp.ne.s32.totalorder %s105, %s107
      %p111 = scmp.eq.s32.totalorder %s15, 0
      %p112 = por %p110, %p111
      %p113 = scmp.ne.s32.totalorder %s105, %s107
      %p114 = scmp.eq.s32.totalorder %s20, 3
      %p115 = por %p113, %p114
      %p116 = scmp.ne.s32.totalorder %s107, %s108
      %p117 = scmp.eq.s32.totalorder %s20, 0
      %p118 = por %p116, %p117
      %p119 = scmp.ne.s32.totalorder %s107, %s108
      %p120 = scmp.eq.s32.totalorder %s21, 3
      %p121 = por %p119, %p120
      %p123 = scmp.ne.s32.totalorder %s108, %s122
      %p124 = scmp.eq.s32.totalorder %s21, 0
      %p125 = por %p123, %p124
      %s127 = sadd.s32 %s126, 1
      %p130 = scmp.eq.s32.totalorder %s15, 3
      %p131 = scmp.ne.s32.totalorder %s126, %s128
      %p132 = scmp.eq.s32.totalorder %s15, 0
      %p133 = por %p131, %p132
      %p134 = scmp.ne.s32.totalorder %s126, %s128
      %p135 = scmp.eq.s32.totalorder %s20, 3
      %p136 = por %p134, %p135
      %p137 = scmp.ne.s32.totalorder %s128, %s129
      %p138 = scmp.eq.s32.totalorder %s20, 0
      %p139 = por %p137, %p138
      %p140 = scmp.ne.s32.totalorder %s128, %s129
      %p141 = scmp.eq.s32.totalorder %s21, 3
      %p142 = por %p140, %p141
      %p144 = scmp.ne.s32.totalorder %s129, %s143
      %p145 = scmp.eq.s32.totalorder %s21, 0
      %p146 = por %p144, %p145
      %s147 = ssub.s32 %s23, %s30
      %p148 = scmp.eq.s32.totalorder %s147, 0
      %s150 = sadd.s32 %s149, 1
      %s151 = scalar_select %p148, %s149, %s150
      %p154 = pneg %p148
      %p155 = scmp.eq.s32.totalorder %s15, 3
      %p156 = por %p154, %p155
      %p157 = scmp.ne.s32.totalorder %s149, %s152
      %p158 = scmp.eq.s32.totalorder %s15, 0
      %p159 = por %p157, %p158
      %p160 = scmp.ne.s32.totalorder %s149, %s152
      %p161 = scmp.eq.s32.totalorder %s20, 3
      %p162 = por %p160, %p161
      %p163 = scmp.ne.s32.totalorder %s152, %s153
      %p164 = scmp.eq.s32.totalorder %s20, 0
      %p165 = por %p163, %p164
      %p166 = scmp.ne.s32.totalorder %s152, %s153
      %p167 = scmp.eq.s32.totalorder %s21, 3
      %p168 = por %p166, %p167
      %p170 = scmp.ne.s32.totalorder %s153, %s169
      %p171 = scmp.eq.s32.totalorder %s21, 0
      %p172 = por %p170, %p171
      %s173 = ssub.s32 %s22, %s34
      %s174 = ssub.s32 %s23, %s30
      %s175 = sor.u32 %s173, %s174
      %p176 = scmp.eq.s32.totalorder %s175, 0
      %s178 = sadd.s32 %s177, 1
      %s179 = scalar_select %p176, %s177, %s178
      %p182 = pneg %p176
      %p183 = scmp.eq.s32.totalorder %s15, 3
      %p184 = por %p182, %p183
      %p185 = scmp.ne.s32.totalorder %s177, %s180
      %p186 = scmp.eq.s32.totalorder %s15, 0
      %p187 = por %p185, %p186
      %p188 = scmp.ne.s32.totalorder %s177, %s180
      %p189 = scmp.eq.s32.totalorder %s20, 3
      %p190 = por %p188, %p189
      %p191 = scmp.ne.s32.totalorder %s180, %s181
      %p192 = scmp.eq.s32.totalorder %s20, 0
      %p193 = por %p191, %p192
      %p194 = scmp.ne.s32.totalorder %s180, %s181
      %p195 = scmp.eq.s32.totalorder %s21, 3
      %p196 = por %p194, %p195
      %p198 = scmp.ne.s32.totalorder %s181, %s197
      %p199 = scmp.eq.s32.totalorder %s21, 0
      %p200 = por %p198, %p199
      %p201 = scmp.le.s32.totalorder 1, %s15
      %p202 = scmp.lt.s32.totalorder %s15, 5
      %p203 = pnand %p201, %p202
      %p204 = pneg %p203
      // Predicated region
      $region9: #{tpu_custom_call.1} parent=5 // pred_check
        _
      $region10: #{tpu_custom_call.1} parent=5 // pred_check_branch
        %206 = sbr.rel (%p203) target = $region12
      $region11: #{tpu_custom_call.1} parent=5 // pred_region
        %s207 = ssub.s32 %s15, 1
        // Predicated region
        $region13: #{tpu_custom_call.1} parent=11 // pred_check
          %p208 = pneg %p76
        $region14: #{tpu_custom_call.1} parent=11 // pred_check_branch
          %210 = sbr.rel (%p208) target = $region16
        $region15: #{tpu_custom_call.1} parent=11 // pred_region
          _
        $region16: #{tpu_custom_call.1} parent=11 // pred_fallthru
          _
        // Predicated region
        $region17: #{tpu_custom_call.1} parent=11 // pred_check
          %p211 = pneg %p97
        $region18: #{tpu_custom_call.1} parent=11 // pred_check_branch
          %213 = sbr.rel (%p211) target = $region20
        $region19: #{tpu_custom_call.1} parent=11 // pred_region
          _
        $region20: #{tpu_custom_call.1} parent=11 // pred_fallthru
          _
        // Predicated region
        $region21: #{tpu_custom_call.1} parent=11 // pred_check
          %p214 = pneg %p118
        $region22: #{tpu_custom_call.1} parent=11 // pred_check_branch
          %216 = sbr.rel (%p214) target = $region24
        $region23: #{tpu_custom_call.1} parent=11 // pred_region
          _
        $region24: #{tpu_custom_call.1} parent=11 // pred_fallthru
          _
        // Predicated region
        $region25: #{tpu_custom_call.1} parent=11 // pred_check
          %p217 = pneg %p139
        $region26: #{tpu_custom_call.1} parent=11 // pred_check_branch
          %219 = sbr.rel (%p217) target = $region28
        $region27: #{tpu_custom_call.1} parent=11 // pred_region
          _
        $region28: #{tpu_custom_call.1} parent=11 // pred_fallthru
          _
      $region12: #{tpu_custom_call.1} parent=5 // pred_fallthru
        _
      %p220 = scmp.lt.s32.totalorder %s15, 4
      // Predicated region
      $region29: #{tpu_custom_call.1} parent=5 // pred_check
        %p221 = pneg %p220
      $region30: #{tpu_custom_call.1} parent=5 // pred_check_branch
        %223 = sbr.rel (%p221) target = $region32
      $region31: #{tpu_custom_call.1} parent=5 // pred_region
        // Predicated region
        $region33: #{tpu_custom_call.1} parent=31 // pred_check
          %p224 = pneg %p49
        $region34: #{tpu_custom_call.1} parent=31 // pred_check_branch
          %226 = sbr.rel (%p224) target = $region36
        $region35: #{tpu_custom_call.1} parent=31 // pred_region
          %p227 = scmp.lt.s32.totalorder %s22, 1
          %s228 = scalar_select %p227, %s22, 1
          %p229 = scmp.lt.s32.totalorder %s23, 1
          %s230 = scalar_select %p229, %s23, 1
          %s231 = smul.addr %s230, 33
          %s232 = smul.addr %s228, 66
          %s233 = sadd.s32 %s231, %s232
          %s234 = smul.addr %s233, 8
          %s235 = scalar_lea.vmem %s0, %s234
        $region36: #{tpu_custom_call.1} parent=31 // pred_fallthru
          _
        // Predicated region
        $region37: #{tpu_custom_call.1} parent=31 // pred_check
          %p236 = pneg %p159
        $region38: #{tpu_custom_call.1} parent=31 // pred_check_branch
          %238 = sbr.rel (%p236) target = $region40
        $region39: #{tpu_custom_call.1} parent=31 // pred_region
          %p239 = scmp.lt.s32.totalorder %s23, 1
          %s240 = scalar_select %p239, %s23, 1
          %s241 = smul.addr %s240, 25
          %s242 = smul.addr %s241, 8
          %s243 = scalar_lea.vmem %s5, %s242
        $region40: #{tpu_custom_call.1} parent=31 // pred_fallthru
          _
      $region32: #{tpu_custom_call.1} parent=5 // pred_fallthru
        _
      %p244 = scmp.le.s32.totalorder 1, %s15
      %p245 = scmp.lt.s32.totalorder %s15, 5
      %p246 = pnand %p244, %p245
      %p247 = pneg %p246
      // Predicated region
      $region41: #{tpu_custom_call.1} parent=5 // pred_check
        _
      $region42: #{tpu_custom_call.1} parent=5 // pred_check_branch
        %249 = sbr.rel (%p246) target = $region44
      $region43: #{tpu_custom_call.1} parent=5 // pred_region
        %s250 = ssub.s32 %s15, 1
        %p251 = scmp.lt.s32.totalorder %s24, 1
        %s252 = scalar_select %p251, %s24, 1
        %p253 = scmp.lt.s32.totalorder %s25, 1
        %s254 = scalar_select %p253, %s25, 1
        %s255 = smul.addr %s254, 33
        %s256 = smul.addr %s252, 66
        %s257 = sadd.s32 %s255, %s256
        %s258 = smul.addr %s257, 8
        %s259 = scalar_lea.vmem %s0, %s258
        %p260 = pneg %p55
        %p261 = pneg %p52
        %p262 = pneg %p76
        %p263 = pneg %p73
        %p264 = pneg %p97
        %p265 = pneg %p94
        %p266 = pneg %p118
        %p267 = pneg %p115
        %p268 = pneg %p139
        %p269 = pneg %p136
        %p270 = scmp.lt.s32.totalorder %s25, 1
        %s271 = scalar_select %p270, %s25, 1
        %s272 = smul.addr %s271, 25
        %s273 = smul.addr %s272, 8
        %s274 = scalar_lea.vmem %s5, %s273
        %p275 = pneg %p165
        %p276 = pneg %p162
        %p277 = pneg %p193
        %p278 = pneg %p190
        %s279 = sand.u32 %s180, 1
        %s280 = scalar_lea.sflag [#allocation6], %s279
        %s281 = sand.u32 %s180, 1
        %s282 = smul.addr %s281, 160
        %s283 = scalar_lea.vmem [#allocation5], %s282
        %p284 = scmp.lt.s32.totalorder %s24, 1
        %s285 = scalar_select %p284, %s24, 1
        %p286 = scmp.lt.s32.totalorder %s25, 1
        %s287 = scalar_select %p286, %s25, 1
        %s288 = smul.addr %s287, 33
        %s289 = smul.addr %s285, 66
        %s290 = sadd.s32 %s288, %s289
        %s291 = smul.addr %s290, 8
        %s292 = scalar_lea.vmem %s0, %s291
        %p293 = scmp.lt.s32.totalorder %s25, 1
        %s294 = scalar_select %p293, %s25, 1
        %s295 = smul.addr %s294, 25
        %s296 = smul.addr %s295, 8
        %s297 = scalar_lea.vmem %s5, %s296
        %v298 = vld [vmem:[%s292] sm:$0xff]
        %v299 = vld [vmem:[%s292 + $0x8] sm:$0xff]
        %v300 = vld [vmem:[%s292 + $0x10] sm:$0xff]
        %v301 = vld [vmem:[%s292 + $0x18] sm:$0xff]
        %v302 = vld [vmem:[%s292 + $0x20] sm:$0xff]
        %v303 = vld [vmem:[%s292 + $0x28] sm:$0xff]
        %v304 = vld [vmem:[%s292 + $0x30] sm:$0xff]
        %v305 = vld [vmem:[%s292 + $0x38] sm:$0xff]
        %v306 = vld [vmem:[%s292 + $0x40] sm:$0xff]
        %v307 = vld [vmem:[%s292 + $0x48] sm:$0xff]
        %v308 = vld [vmem:[%s292 + $0x50] sm:$0xff]
        %v309 = vld [vmem:[%s292 + $0x58] sm:$0xff]
        %v310 = vld [vmem:[%s292 + $0x60] sm:$0xff]
        %v311 = vld [vmem:[%s292 + $0x68] sm:$0xff]
        %v312 = vld [vmem:[%s292 + $0x70] sm:$0xff]
        %v313 = vld [vmem:[%s292 + $0x78] sm:$0xff]
        %v314 = vld [vmem:[%s292 + $0x80] sm:$0xff]
        %v315 = vld [vmem:[%s292 + $0x88] sm:$0xff]
        %v316 = vld [vmem:[%s292 + $0x90] sm:$0xff]
        %v317 = vld [vmem:[%s292 + $0x98] sm:$0xff]
        %v318 = vld [vmem:[%s292 + $0xa0] sm:$0xff]
        %v319 = vld [vmem:[%s292 + $0xa8] sm:$0xff]
        %v320 = vld [vmem:[%s292 + $0xb0] sm:$0xff]
        %v321 = vld [vmem:[%s292 + $0xb8] sm:$0xff]
        %v322 = vld [vmem:[%s292 + $0xc0] sm:$0xff]
        %323 = vst [vmem:[#allocation2] sm:$0xff] %v298
        %324 = vst [vmem:[#allocation2 + $0x48] sm:$0xff] %v299
        %325 = vst [vmem:[#allocation2 + $0x90] sm:$0xff] %v300
        %326 = vst [vmem:[#allocation2 + $0xd8] sm:$0xff] %v301
        %327 = vst [vmem:[#allocation2 + $0x120] sm:$0xff] %v302
        %328 = vst [vmem:[#allocation2 + $0x168] sm:$0xff] %v303
        %329 = vst [vmem:[#allocation2 + $0x1b0] sm:$0xff] %v304
        %330 = vst [vmem:[#allocation2 + $0x1f8] sm:$0xff] %v305
        %331 = vst [vmem:[#allocation2 + $0x240] sm:$0xff] %v306
        %332 = vst [vmem:[#allocation2 + $0x288] sm:$0xff] %v307
        %333 = vst [vmem:[#allocation2 + $0x2d0] sm:$0xff] %v308
        %334 = vst [vmem:[#allocation2 + $0x318] sm:$0xff] %v309
        %335 = vst [vmem:[#allocation2 + $0x360] sm:$0xff] %v310
        %336 = vst [vmem:[#allocation2 + $0x3a8] sm:$0xff] %v311
        %337 = vst [vmem:[#allocation2 + $0x3f0] sm:$0xff] %v312
        %338 = vst [vmem:[#allocation2 + $0x438] sm:$0xff] %v313
        %339 = vst [vmem:[#allocation2 + $0x480] sm:$0xff] %v314
        %340 = vst [vmem:[#allocation2 + $0x4c8] sm:$0xff] %v315
        %341 = vst [vmem:[#allocation2 + $0x510] sm:$0xff] %v316
        %342 = vst [vmem:[#allocation2 + $0x558] sm:$0xff] %v317
        %343 = vst [vmem:[#allocation2 + $0x5a0] sm:$0xff] %v318
        %344 = vst [vmem:[#allocation2 + $0x5e8] sm:$0xff] %v319
        %345 = vst [vmem:[#allocation2 + $0x630] sm:$0xff] %v320
        %346 = vst [vmem:[#allocation2 + $0x678] sm:$0xff] %v321
        %347 = vst [vmem:[#allocation2 + $0x6c0] sm:$0xff] %v322
        %v348 = vld [vmem:[%s292 + $0x1] sm:$0xff]
        %v349 = vld [vmem:[%s292 + $0x9] sm:$0xff]
        %v350 = vld [vmem:[%s292 + $0x11] sm:$0xff]
        %v351 = vld [vmem:[%s292 + $0x19] sm:$0xff]
        %v352 = vld [vmem:[%s292 + $0x21] sm:$0xff]
        %v353 = vld [vmem:[%s292 + $0x29] sm:$0xff]
        %v354 = vld [vmem:[%s292 + $0x31] sm:$0xff]
        %v355 = vld [vmem:[%s292 + $0x39] sm:$0xff]
        %v356 = vld [vmem:[%s292 + $0x41] sm:$0xff]
        %v357 = vld [vmem:[%s292 + $0x49] sm:$0xff]
        %v358 = vld [vmem:[%s292 + $0x51] sm:$0xff]
        %v359 = vld [vmem:[%s292 + $0x59] sm:$0xff]
        %v360 = vld [vmem:[%s292 + $0x61] sm:$0xff]
        %v361 = vld [vmem:[%s292 + $0x69] sm:$0xff]
        %v362 = vld [vmem:[%s292 + $0x71] sm:$0xff]
        %v363 = vld [vmem:[%s292 + $0x79] sm:$0xff]
        %v364 = vld [vmem:[%s292 + $0x81] sm:$0xff]
        %v365 = vld [vmem:[%s292 + $0x89] sm:$0xff]
        %v366 = vld [vmem:[%s292 + $0x91] sm:$0xff]
        %v367 = vld [vmem:[%s292 + $0x99] sm:$0xff]
        %v368 = vld [vmem:[%s292 + $0xa1] sm:$0xff]
        %v369 = vld [vmem:[%s292 + $0xa9] sm:$0xff]
        %v370 = vld [vmem:[%s292 + $0xb1] sm:$0xff]
        %v371 = vld [vmem:[%s292 + $0xb9] sm:$0xff]
        %v372 = vld [vmem:[%s292 + $0xc1] sm:$0xff]
        %373 = vst [vmem:[#allocation2 + $0x8] sm:$0xff] %v348
        %374 = vst [vmem:[#allocation2 + $0x50] sm:$0xff] %v349
        %375 = vst [vmem:[#allocation2 + $0x98] sm:$0xff] %v350
        %376 = vst [vmem:[#allocation2 + $0xe0] sm:$0xff] %v351
        %377 = vst [vmem:[#allocation2 + $0x128] sm:$0xff] %v352
        %378 = vst [vmem:[#allocation2 + $0x170] sm:$0xff] %v353
        %379 = vst [vmem:[#allocation2 + $0x1b8] sm:$0xff] %v354
        %380 = vst [vmem:[#allocation2 + $0x200] sm:$0xff] %v355
        %381 = vst [vmem:[#allocation2 + $0x248] sm:$0xff] %v356
        %382 = vst [vmem:[#allocation2 + $0x290] sm:$0xff] %v357
        %383 = vst [vmem:[#allocation2 + $0x2d8] sm:$0xff] %v358
        %384 = vst [vmem:[#allocation2 + $0x320] sm:$0xff] %v359
        %385 = vst [vmem:[#allocation2 + $0x368] sm:$0xff] %v360
        %386 = vst [vmem:[#allocation2 + $0x3b0] sm:$0xff] %v361
        %387 = vst [vmem:[#allocation2 + $0x3f8] sm:$0xff] %v362
        %388 = vst [vmem:[#allocation2 + $0x440] sm:$0xff] %v363
        %389 = vst [vmem:[#allocation2 + $0x488] sm:$0xff] %v364
        %390 = vst [vmem:[#allocation2 + $0x4d0] sm:$0xff] %v365
        %391 = vst [vmem:[#allocation2 + $0x518] sm:$0xff] %v366
        %392 = vst [vmem:[#allocation2 + $0x560] sm:$0xff] %v367
        %393 = vst [vmem:[#allocation2 + $0x5a8] sm:$0xff] %v368
        %394 = vst [vmem:[#allocation2 + $0x5f0] sm:$0xff] %v369
        %395 = vst [vmem:[#allocation2 + $0x638] sm:$0xff] %v370
        %396 = vst [vmem:[#allocation2 + $0x680] sm:$0xff] %v371
        %397 = vst [vmem:[#allocation2 + $0x6c8] sm:$0xff] %v372
        %v398 = vld [vmem:[%s292 + $0x2] sm:$0xff]
        %v399 = vld [vmem:[%s292 + $0xa] sm:$0xff]
        %v400 = vld [vmem:[%s292 + $0x12] sm:$0xff]
        %v401 = vld [vmem:[%s292 + $0x1a] sm:$0xff]
        %v402 = vld [vmem:[%s292 + $0x22] sm:$0xff]
        %v403 = vld [vmem:[%s292 + $0x2a] sm:$0xff]
        %v404 = vld [vmem:[%s292 + $0x32] sm:$0xff]
        %v405 = vld [vmem:[%s292 + $0x3a] sm:$0xff]
        %v406 = vld [vmem:[%s292 + $0x42] sm:$0xff]
        %v407 = vld [vmem:[%s292 + $0x4a] sm:$0xff]
        %v408 = vld [vmem:[%s292 + $0x52] sm:$0xff]
        %v409 = vld [vmem:[%s292 + $0x5a] sm:$0xff]
        %v410 = vld [vmem:[%s292 + $0x62] sm:$0xff]
        %v411 = vld [vmem:[%s292 + $0x6a] sm:$0xff]
        %v412 = vld [vmem:[%s292 + $0x72] sm:$0xff]
        %v413 = vld [vmem:[%s292 + $0x7a] sm:$0xff]
        %v414 = vld [vmem:[%s292 + $0x82] sm:$0xff]
        %v415 = vld [vmem:[%s292 + $0x8a] sm:$0xff]
        %v416 = vld [vmem:[%s292 + $0x92] sm:$0xff]
        %v417 = vld [vmem:[%s292 + $0x9a] sm:$0xff]
        %v418 = vld [vmem:[%s292 + $0xa2] sm:$0xff]
        %v419 = vld [vmem:[%s292 + $0xaa] sm:$0xff]
        %v420 = vld [vmem:[%s292 + $0xb2] sm:$0xff]
        %v421 = vld [vmem:[%s292 + $0xba] sm:$0xff]
        %v422 = vld [vmem:[%s292 + $0xc2] sm:$0xff]
        %423 = vst [vmem:[#allocation2 + $0x10] sm:$0xff] %v398
        %424 = vst [vmem:[#allocation2 + $0x58] sm:$0xff] %v399
        %425 = vst [vmem:[#allocation2 + $0xa0] sm:$0xff] %v400
        %426 = vst [vmem:[#allocation2 + $0xe8] sm:$0xff] %v401
        %427 = vst [vmem:[#allocation2 + $0x130] sm:$0xff] %v402
        %428 = vst [vmem:[#allocation2 + $0x178] sm:$0xff] %v403
        %429 = vst [vmem:[#allocation2 + $0x1c0] sm:$0xff] %v404
        %430 = vst [vmem:[#allocation2 + $0x208] sm:$0xff] %v405
        %431 = vst [vmem:[#allocation2 + $0x250] sm:$0xff] %v406
        %432 = vst [vmem:[#allocation2 + $0x298] sm:$0xff] %v407
        %433 = vst [vmem:[#allocation2 + $0x2e0] sm:$0xff] %v408
        %434 = vst [vmem:[#allocation2 + $0x328] sm:$0xff] %v409
        %435 = vst [vmem:[#allocation2 + $0x370] sm:$0xff] %v410
        %436 = vst [vmem:[#allocation2 + $0x3b8] sm:$0xff] %v411
        %437 = vst [vmem:[#allocation2 + $0x400] sm:$0xff] %v412
        %438 = vst [vmem:[#allocation2 + $0x448] sm:$0xff] %v413
        %439 = vst [vmem:[#allocation2 + $0x490] sm:$0xff] %v414
        %440 = vst [vmem:[#allocation2 + $0x4d8] sm:$0xff] %v415
        %441 = vst [vmem:[#allocation2 + $0x520] sm:$0xff] %v416
        %442 = vst [vmem:[#allocation2 + $0x568] sm:$0xff] %v417
        %443 = vst [vmem:[#allocation2 + $0x5b0] sm:$0xff] %v418
        %444 = vst [vmem:[#allocation2 + $0x5f8] sm:$0xff] %v419
        %445 = vst [vmem:[#allocation2 + $0x640] sm:$0xff] %v420
        %446 = vst [vmem:[#allocation2 + $0x688] sm:$0xff] %v421
        %447 = vst [vmem:[#allocation2 + $0x6d0] sm:$0xff] %v422
        %v448 = vld [vmem:[%s292 + $0x14] sm:$0xff]
        %v449 = vld [vmem:[%s292 + $0x1c] sm:$0xff]
        %v450 = vld [vmem:[%s292 + $0x24] sm:$0xff]
        %v451 = vld [vmem:[%s292 + $0x2c] sm:$0xff]
        %v452 = vld [vmem:[%s292 + $0x34] sm:$0xff]
        %v453 = vld [vmem:[%s292 + $0x3c] sm:$0xff]
        %v454 = vld [vmem:[%s292 + $0x44] sm:$0xff]
        %v455 = vld [vmem:[%s292 + $0x4c] sm:$0xff]
        %v456 = vld [vmem:[%s292 + $0x54] sm:$0xff]
        %v457 = vld [vmem:[%s292 + $0x5c] sm:$0xff]
        %v458 = vld [vmem:[%s292 + $0x64] sm:$0xff]
        %v459 = vld [vmem:[%s292 + $0x6c] sm:$0xff]
        %v460 = vld [vmem:[%s292 + $0x74] sm:$0xff]
        %v461 = vld [vmem:[%s292 + $0x7c] sm:$0xff]
        %v462 = vld [vmem:[%s292 + $0x84] sm:$0xff]
        %v463 = vld [vmem:[%s292 + $0x8c] sm:$0xff]
        %v464 = vld [vmem:[%s292 + $0x94] sm:$0xff]
        %v465 = vld [vmem:[%s292 + $0x9c] sm:$0xff]
        %v466 = vld [vmem:[%s292 + $0xa4] sm:$0xff]
        %v467 = vld [vmem:[%s292 + $0xac] sm:$0xff]
        %v468 = vld [vmem:[%s292 + $0xb4] sm:$0xff]
        %v469 = vld [vmem:[%s292 + $0xbc] sm:$0xff]
        %v470 = vld [vmem:[%s292 + $0xc4] sm:$0xff]
        %v471 = vld [vmem:[%s292 + $0xcc] sm:$0xff]
        %v472 = vld [vmem:[%s292 + $0xd4] sm:$0xff]
        %473 = vst [vmem:[#allocation2 + $0x18] sm:$0xff] %v448
        %474 = vst [vmem:[#allocation2 + $0x60] sm:$0xff] %v449
        %475 = vst [vmem:[#allocation2 + $0xa8] sm:$0xff] %v450
        %476 = vst [vmem:[#allocation2 + $0xf0] sm:$0xff] %v451
        %477 = vst [vmem:[#allocation2 + $0x138] sm:$0xff] %v452
        %478 = vst [vmem:[#allocation2 + $0x180] sm:$0xff] %v453
        %479 = vst [vmem:[#allocation2 + $0x1c8] sm:$0xff] %v454
        %480 = vst [vmem:[#allocation2 + $0x210] sm:$0xff] %v455
        %481 = vst [vmem:[#allocation2 + $0x258] sm:$0xff] %v456
        %482 = vst [vmem:[#allocation2 + $0x2a0] sm:$0xff] %v457
        %483 = vst [vmem:[#allocation2 + $0x2e8] sm:$0xff] %v458
        %484 = vst [vmem:[#allocation2 + $0x330] sm:$0xff] %v459
        %485 = vst [vmem:[#allocation2 + $0x378] sm:$0xff] %v460
        %486 = vst [vmem:[#allocation2 + $0x3c0] sm:$0xff] %v461
        %487 = vst [vmem:[#allocation2 + $0x408] sm:$0xff] %v462
        %488 = vst [vmem:[#allocation2 + $0x450] sm:$0xff] %v463
        %489 = vst [vmem:[#allocation2 + $0x498] sm:$0xff] %v464
        %490 = vst [vmem:[#allocation2 + $0x4e0] sm:$0xff] %v465
        %491 = vst [vmem:[#allocation2 + $0x528] sm:$0xff] %v466
        %492 = vst [vmem:[#allocation2 + $0x570] sm:$0xff] %v467
        %493 = vst [vmem:[#allocation2 + $0x5b8] sm:$0xff] %v468
        %494 = vst [vmem:[#allocation2 + $0x600] sm:$0xff] %v469
        %495 = vst [vmem:[#allocation2 + $0x648] sm:$0xff] %v470
        %496 = vst [vmem:[#allocation2 + $0x690] sm:$0xff] %v471
        %497 = vst [vmem:[#allocation2 + $0x6d8] sm:$0xff] %v472
        %v498 = vld [vmem:[%s292 + $0x15] sm:$0xff]
        %v499 = vld [vmem:[%s292 + $0x1d] sm:$0xff]
        %v500 = vld [vmem:[%s292 + $0x25] sm:$0xff]
        %v501 = vld [vmem:[%s292 + $0x2d] sm:$0xff]
        %v502 = vld [vmem:[%s292 + $0x35] sm:$0xff]
        %v503 = vld [vmem:[%s292 + $0x3d] sm:$0xff]
        %v504 = vld [vmem:[%s292 + $0x45] sm:$0xff]
        %v505 = vld [vmem:[%s292 + $0x4d] sm:$0xff]
        %v506 = vld [vmem:[%s292 + $0x55] sm:$0xff]
        %v507 = vld [vmem:[%s292 + $0x5d] sm:$0xff]
        %v508 = vld [vmem:[%s292 + $0x65] sm:$0xff]
        %v509 = vld [vmem:[%s292 + $0x6d] sm:$0xff]
        %v510 = vld [vmem:[%s292 + $0x75] sm:$0xff]
        %v511 = vld [vmem:[%s292 + $0x7d] sm:$0xff]
        %v512 = vld [vmem:[%s292 + $0x85] sm:$0xff]
        %v513 = vld [vmem:[%s292 + $0x8d] sm:$0xff]
        %v514 = vld [vmem:[%s292 + $0x95] sm:$0xff]
        %v515 = vld [vmem:[%s292 + $0x9d] sm:$0xff]
        %v516 = vld [vmem:[%s292 + $0xa5] sm:$0xff]
        %v517 = vld [vmem:[%s292 + $0xad] sm:$0xff]
        %v518 = vld [vmem:[%s292 + $0xb5] sm:$0xff]
        %v519 = vld [vmem:[%s292 + $0xbd] sm:$0xff]
        %v520 = vld [vmem:[%s292 + $0xc5] sm:$0xff]
        %v521 = vld [vmem:[%s292 + $0xcd] sm:$0xff]
        %v522 = vld [vmem:[%s292 + $0xd5] sm:$0xff]
        %523 = vst [vmem:[#allocation2 + $0x20] sm:$0xff] %v498
        %524 = vst [vmem:[#allocation2 + $0x68] sm:$0xff] %v499
        %525 = vst [vmem:[#allocation2 + $0xb0] sm:$0xff] %v500
        %526 = vst [vmem:[#allocation2 + $0xf8] sm:$0xff] %v501
        %527 = vst [vmem:[#allocation2 + $0x140] sm:$0xff] %v502
        %528 = vst [vmem:[#allocation2 + $0x188] sm:$0xff] %v503
        %529 = vst [vmem:[#allocation2 + $0x1d0] sm:$0xff] %v504
        %530 = vst [vmem:[#allocation2 + $0x218] sm:$0xff] %v505
        %531 = vst [vmem:[#allocation2 + $0x260] sm:$0xff] %v506
        %532 = vst [vmem:[#allocation2 + $0x2a8] sm:$0xff] %v507
        %533 = vst [vmem:[#allocation2 + $0x2f0] sm:$0xff] %v508
        %534 = vst [vmem:[#allocation2 + $0x338] sm:$0xff] %v509
        %535 = vst [vmem:[#allocation2 + $0x380] sm:$0xff] %v510
        %536 = vst [vmem:[#allocation2 + $0x3c8] sm:$0xff] %v511
        %537 = vst [vmem:[#allocation2 + $0x410] sm:$0xff] %v512
        %538 = vst [vmem:[#allocation2 + $0x458] sm:$0xff] %v513
        %539 = vst [vmem:[#allocation2 + $0x4a0] sm:$0xff] %v514
        %540 = vst [vmem:[#allocation2 + $0x4e8] sm:$0xff] %v515
        %541 = vst [vmem:[#allocation2 + $0x530] sm:$0xff] %v516
        %542 = vst [vmem:[#allocation2 + $0x578] sm:$0xff] %v517
        %543 = vst [vmem:[#allocation2 + $0x5c0] sm:$0xff] %v518
        %544 = vst [vmem:[#allocation2 + $0x608] sm:$0xff] %v519
        %545 = vst [vmem:[#allocation2 + $0x650] sm:$0xff] %v520
        %546 = vst [vmem:[#allocation2 + $0x698] sm:$0xff] %v521
        %547 = vst [vmem:[#allocation2 + $0x6e0] sm:$0xff] %v522
        %v548 = vld [vmem:[%s292 + $0x16] sm:$0xff]
        %v549 = vld [vmem:[%s292 + $0x1e] sm:$0xff]
        %v550 = vld [vmem:[%s292 + $0x26] sm:$0xff]
        %v551 = vld [vmem:[%s292 + $0x2e] sm:$0xff]
        %v552 = vld [vmem:[%s292 + $0x36] sm:$0xff]
        %v553 = vld [vmem:[%s292 + $0x3e] sm:$0xff]
        %v554 = vld [vmem:[%s292 + $0x46] sm:$0xff]
        %v555 = vld [vmem:[%s292 + $0x4e] sm:$0xff]
        %v556 = vld [vmem:[%s292 + $0x56] sm:$0xff]
        %v557 = vld [vmem:[%s292 + $0x5e] sm:$0xff]
        %v558 = vld [vmem:[%s292 + $0x66] sm:$0xff]
        %v559 = vld [vmem:[%s292 + $0x6e] sm:$0xff]
        %v560 = vld [vmem:[%s292 + $0x76] sm:$0xff]
        %v561 = vld [vmem:[%s292 + $0x7e] sm:$0xff]
        %v562 = vld [vmem:[%s292 + $0x86] sm:$0xff]
        %v563 = vld [vmem:[%s292 + $0x8e] sm:$0xff]
        %v564 = vld [vmem:[%s292 + $0x96] sm:$0xff]
        %v565 = vld [vmem:[%s292 + $0x9e] sm:$0xff]
        %v566 = vld [vmem:[%s292 + $0xa6] sm:$0xff]
        %v567 = vld [vmem:[%s292 + $0xae] sm:$0xff]
        %v568 = vld [vmem:[%s292 + $0xb6] sm:$0xff]
        %v569 = vld [vmem:[%s292 + $0xbe] sm:$0xff]
        %v570 = vld [vmem:[%s292 + $0xc6] sm:$0xff]
        %v571 = vld [vmem:[%s292 + $0xce] sm:$0xff]
        %v572 = vld [vmem:[%s292 + $0xd6] sm:$0xff]
        %573 = vst [vmem:[#allocation2 + $0x28] sm:$0xff] %v548
        %574 = vst [vmem:[#allocation2 + $0x70] sm:$0xff] %v549
        %575 = vst [vmem:[#allocation2 + $0xb8] sm:$0xff] %v550
        %576 = vst [vmem:[#allocation2 + $0x100] sm:$0xff] %v551
        %577 = vst [vmem:[#allocation2 + $0x148] sm:$0xff] %v552
        %578 = vst [vmem:[#allocation2 + $0x190] sm:$0xff] %v553
        %579 = vst [vmem:[#allocation2 + $0x1d8] sm:$0xff] %v554
        %580 = vst [vmem:[#allocation2 + $0x220] sm:$0xff] %v555
        %581 = vst [vmem:[#allocation2 + $0x268] sm:$0xff] %v556
        %582 = vst [vmem:[#allocation2 + $0x2b0] sm:$0xff] %v557
        %583 = vst [vmem:[#allocation2 + $0x2f8] sm:$0xff] %v558
        %584 = vst [vmem:[#allocation2 + $0x340] sm:$0xff] %v559
        %585 = vst [vmem:[#allocation2 + $0x388] sm:$0xff] %v560
        %586 = vst [vmem:[#allocation2 + $0x3d0] sm:$0xff] %v561
        %587 = vst [vmem:[#allocation2 + $0x418] sm:$0xff] %v562
        %588 = vst [vmem:[#allocation2 + $0x460] sm:$0xff] %v563
        %589 = vst [vmem:[#allocation2 + $0x4a8] sm:$0xff] %v564
        %590 = vst [vmem:[#allocation2 + $0x4f0] sm:$0xff] %v565
        %591 = vst [vmem:[#allocation2 + $0x538] sm:$0xff] %v566
        %592 = vst [vmem:[#allocation2 + $0x580] sm:$0xff] %v567
        %593 = vst [vmem:[#allocation2 + $0x5c8] sm:$0xff] %v568
        %594 = vst [vmem:[#allocation2 + $0x610] sm:$0xff] %v569
        %595 = vst [vmem:[#allocation2 + $0x658] sm:$0xff] %v570
        %596 = vst [vmem:[#allocation2 + $0x6a0] sm:$0xff] %v571
        %597 = vst [vmem:[#allocation2 + $0x6e8] sm:$0xff] %v572
        %v598 = vld [vmem:[%s292 + $0x28] sm:$0xff]
        %v599 = vld [vmem:[%s292 + $0x30] sm:$0xff]
        %v600 = vld [vmem:[%s292 + $0x38] sm:$0xff]
        %v601 = vld [vmem:[%s292 + $0x40] sm:$0xff]
        %v602 = vld [vmem:[%s292 + $0x48] sm:$0xff]
        %v603 = vld [vmem:[%s292 + $0x50] sm:$0xff]
        %v604 = vld [vmem:[%s292 + $0x58] sm:$0xff]
        %v605 = vld [vmem:[%s292 + $0x60] sm:$0xff]
        %v606 = vld [vmem:[%s292 + $0x68] sm:$0xff]
        %v607 = vld [vmem:[%s292 + $0x70] sm:$0xff]
        %v608 = vld [vmem:[%s292 + $0x78] sm:$0xff]
        %v609 = vld [vmem:[%s292 + $0x80] sm:$0xff]
        %v610 = vld [vmem:[%s292 + $0x88] sm:$0xff]
        %v611 = vld [vmem:[%s292 + $0x90] sm:$0xff]
        %v612 = vld [vmem:[%s292 + $0x98] sm:$0xff]
        %v613 = vld [vmem:[%s292 + $0xa0] sm:$0xff]
        %v614 = vld [vmem:[%s292 + $0xa8] sm:$0xff]
        %v615 = vld [vmem:[%s292 + $0xb0] sm:$0xff]
        %v616 = vld [vmem:[%s292 + $0xb8] sm:$0xff]
        %v617 = vld [vmem:[%s292 + $0xc0] sm:$0xff]
        %v618 = vld [vmem:[%s292 + $0xc8] sm:$0xff]
        %v619 = vld [vmem:[%s292 + $0xd0] sm:$0xff]
        %v620 = vld [vmem:[%s292 + $0xd8] sm:$0xff]
        %v621 = vld [vmem:[%s292 + $0xe0] sm:$0xff]
        %v622 = vld [vmem:[%s292 + $0xe8] sm:$0xff]
        %623 = vst [vmem:[#allocation2 + $0x30] sm:$0xff] %v598
        %624 = vst [vmem:[#allocation2 + $0x78] sm:$0xff] %v599
        %625 = vst [vmem:[#allocation2 + $0xc0] sm:$0xff] %v600
        %626 = vst [vmem:[#allocation2 + $0x108] sm:$0xff] %v601
        %627 = vst [vmem:[#allocation2 + $0x150] sm:$0xff] %v602
        %628 = vst [vmem:[#allocation2 + $0x198] sm:$0xff] %v603
        %629 = vst [vmem:[#allocation2 + $0x1e0] sm:$0xff] %v604
        %630 = vst [vmem:[#allocation2 + $0x228] sm:$0xff] %v605
        %631 = vst [vmem:[#allocation2 + $0x270] sm:$0xff] %v606
        %632 = vst [vmem:[#allocation2 + $0x2b8] sm:$0xff] %v607
        %633 = vst [vmem:[#allocation2 + $0x300] sm:$0xff] %v608
        %634 = vst [vmem:[#allocation2 + $0x348] sm:$0xff] %v609
        %635 = vst [vmem:[#allocation2 + $0x390] sm:$0xff] %v610
        %636 = vst [vmem:[#allocation2 + $0x3d8] sm:$0xff] %v611
        %637 = vst [vmem:[#allocation2 + $0x420] sm:$0xff] %v612
        %638 = vst [vmem:[#allocation2 + $0x468] sm:$0xff] %v613
        %639 = vst [vmem:[#allocation2 + $0x4b0] sm:$0xff] %v614
        %640 = vst [vmem:[#allocation2 + $0x4f8] sm:$0xff] %v615
        %641 = vst [vmem:[#allocation2 + $0x540] sm:$0xff] %v616
        %642 = vst [vmem:[#allocation2 + $0x588] sm:$0xff] %v617
        %643 = vst [vmem:[#allocation2 + $0x5d0] sm:$0xff] %v618
        %644 = vst [vmem:[#allocation2 + $0x618] sm:$0xff] %v619
        %645 = vst [vmem:[#allocation2 + $0x660] sm:$0xff] %v620
        %646 = vst [vmem:[#allocation2 + $0x6a8] sm:$0xff] %v621
        %647 = vst [vmem:[#allocation2 + $0x6f0] sm:$0xff] %v622
        %v648 = vld [vmem:[%s292 + $0x29] sm:$0xff]
        %v649 = vld [vmem:[%s292 + $0x31] sm:$0xff]
        %v650 = vld [vmem:[%s292 + $0x39] sm:$0xff]
        %v651 = vld [vmem:[%s292 + $0x41] sm:$0xff]
        %v652 = vld [vmem:[%s292 + $0x49] sm:$0xff]
        %v653 = vld [vmem:[%s292 + $0x51] sm:$0xff]
        %v654 = vld [vmem:[%s292 + $0x59] sm:$0xff]
        %v655 = vld [vmem:[%s292 + $0x61] sm:$0xff]
        %v656 = vld [vmem:[%s292 + $0x69] sm:$0xff]
        %v657 = vld [vmem:[%s292 + $0x71] sm:$0xff]
        %v658 = vld [vmem:[%s292 + $0x79] sm:$0xff]
        %v659 = vld [vmem:[%s292 + $0x81] sm:$0xff]
        %v660 = vld [vmem:[%s292 + $0x89] sm:$0xff]
        %v661 = vld [vmem:[%s292 + $0x91] sm:$0xff]
        %v662 = vld [vmem:[%s292 + $0x99] sm:$0xff]
        %v663 = vld [vmem:[%s292 + $0xa1] sm:$0xff]
        %v664 = vld [vmem:[%s292 + $0xa9] sm:$0xff]
        %v665 = vld [vmem:[%s292 + $0xb1] sm:$0xff]
        %v666 = vld [vmem:[%s292 + $0xb9] sm:$0xff]
        %v667 = vld [vmem:[%s292 + $0xc1] sm:$0xff]
        %v668 = vld [vmem:[%s292 + $0xc9] sm:$0xff]
        %v669 = vld [vmem:[%s292 + $0xd1] sm:$0xff]
        %v670 = vld [vmem:[%s292 + $0xd9] sm:$0xff]
        %v671 = vld [vmem:[%s292 + $0xe1] sm:$0xff]
        %v672 = vld [vmem:[%s292 + $0xe9] sm:$0xff]
        %673 = vst [vmem:[#allocation2 + $0x38] sm:$0xff] %v648
        %674 = vst [vmem:[#allocation2 + $0x80] sm:$0xff] %v649
        %675 = vst [vmem:[#allocation2 + $0xc8] sm:$0xff] %v650
        %676 = vst [vmem:[#allocation2 + $0x110] sm:$0xff] %v651
        %677 = vst [vmem:[#allocation2 + $0x158] sm:$0xff] %v652
        %678 = vst [vmem:[#allocation2 + $0x1a0] sm:$0xff] %v653
        %679 = vst [vmem:[#allocation2 + $0x1e8] sm:$0xff] %v654
        %680 = vst [vmem:[#allocation2 + $0x230] sm:$0xff] %v655
        %681 = vst [vmem:[#allocation2 + $0x278] sm:$0xff] %v656
        %682 = vst [vmem:[#allocation2 + $0x2c0] sm:$0xff] %v657
        %683 = vst [vmem:[#allocation2 + $0x308] sm:$0xff] %v658
        %684 = vst [vmem:[#allocation2 + $0x350] sm:$0xff] %v659
        %685 = vst [vmem:[#allocation2 + $0x398] sm:$0xff] %v660
        %686 = vst [vmem:[#allocation2 + $0x3e0] sm:$0xff] %v661
        %687 = vst [vmem:[#allocation2 + $0x428] sm:$0xff] %v662
        %688 = vst [vmem:[#allocation2 + $0x470] sm:$0xff] %v663
        %689 = vst [vmem:[#allocation2 + $0x4b8] sm:$0xff] %v664
        %690 = vst [vmem:[#allocation2 + $0x500] sm:$0xff] %v665
        %691 = vst [vmem:[#allocation2 + $0x548] sm:$0xff] %v666
        %692 = vst [vmem:[#allocation2 + $0x590] sm:$0xff] %v667
        %693 = vst [vmem:[#allocation2 + $0x5d8] sm:$0xff] %v668
        %694 = vst [vmem:[#allocation2 + $0x620] sm:$0xff] %v669
        %695 = vst [vmem:[#allocation2 + $0x668] sm:$0xff] %v670
        %696 = vst [vmem:[#allocation2 + $0x6b0] sm:$0xff] %v671
        %697 = vst [vmem:[#allocation2 + $0x6f8] sm:$0xff] %v672
        %v698 = vld [vmem:[%s292 + $0x2a] sm:$0xff]
        %v699 = vld [vmem:[%s292 + $0x32] sm:$0xff]
        %v700 = vld [vmem:[%s292 + $0x3a] sm:$0xff]
        %v701 = vld [vmem:[%s292 + $0x42] sm:$0xff]
        %v702 = vld [vmem:[%s292 + $0x4a] sm:$0xff]
        %v703 = vld [vmem:[%s292 + $0x52] sm:$0xff]
        %v704 = vld [vmem:[%s292 + $0x5a] sm:$0xff]
        %v705 = vld [vmem:[%s292 + $0x62] sm:$0xff]
        %v706 = vld [vmem:[%s292 + $0x6a] sm:$0xff]
        %v707 = vld [vmem:[%s292 + $0x72] sm:$0xff]
        %v708 = vld [vmem:[%s292 + $0x7a] sm:$0xff]
        %v709 = vld [vmem:[%s292 + $0x82] sm:$0xff]
        %v710 = vld [vmem:[%s292 + $0x8a] sm:$0xff]
        %v711 = vld [vmem:[%s292 + $0x92] sm:$0xff]
        %v712 = vld [vmem:[%s292 + $0x9a] sm:$0xff]
        %v713 = vld [vmem:[%s292 + $0xa2] sm:$0xff]
        %v714 = vld [vmem:[%s292 + $0xaa] sm:$0xff]
        %v715 = vld [vmem:[%s292 + $0xb2] sm:$0xff]
        %v716 = vld [vmem:[%s292 + $0xba] sm:$0xff]
        %v717 = vld [vmem:[%s292 + $0xc2] sm:$0xff]
        %v718 = vld [vmem:[%s292 + $0xca] sm:$0xff]
        %v719 = vld [vmem:[%s292 + $0xd2] sm:$0xff]
        %v720 = vld [vmem:[%s292 + $0xda] sm:$0xff]
        %v721 = vld [vmem:[%s292 + $0xe2] sm:$0xff]
        %v722 = vld [vmem:[%s292 + $0xea] sm:$0xff]
        %723 = vst [vmem:[#allocation2 + $0x40] sm:$0xff] %v698
        %724 = vst [vmem:[#allocation2 + $0x88] sm:$0xff] %v699
        %725 = vst [vmem:[#allocation2 + $0xd0] sm:$0xff] %v700
        %726 = vst [vmem:[#allocation2 + $0x118] sm:$0xff] %v701
        %727 = vst [vmem:[#allocation2 + $0x160] sm:$0xff] %v702
        %728 = vst [vmem:[#allocation2 + $0x1a8] sm:$0xff] %v703
        %729 = vst [vmem:[#allocation2 + $0x1f0] sm:$0xff] %v704
        %730 = vst [vmem:[#allocation2 + $0x238] sm:$0xff] %v705
        %731 = vst [vmem:[#allocation2 + $0x280] sm:$0xff] %v706
        %732 = vst [vmem:[#allocation2 + $0x2c8] sm:$0xff] %v707
        %733 = vst [vmem:[#allocation2 + $0x310] sm:$0xff] %v708
        %734 = vst [vmem:[#allocation2 + $0x358] sm:$0xff] %v709
        %735 = vst [vmem:[#allocation2 + $0x3a0] sm:$0xff] %v710
        %736 = vst [vmem:[#allocation2 + $0x3e8] sm:$0xff] %v711
        %737 = vst [vmem:[#allocation2 + $0x430] sm:$0xff] %v712
        %738 = vst [vmem:[#allocation2 + $0x478] sm:$0xff] %v713
        %739 = vst [vmem:[#allocation2 + $0x4c0] sm:$0xff] %v714
        %740 = vst [vmem:[#allocation2 + $0x508] sm:$0xff] %v715
        %741 = vst [vmem:[#allocation2 + $0x550] sm:$0xff] %v716
        %742 = vst [vmem:[#allocation2 + $0x598] sm:$0xff] %v717
        %743 = vst [vmem:[#allocation2 + $0x5e0] sm:$0xff] %v718
        %744 = vst [vmem:[#allocation2 + $0x628] sm:$0xff] %v719
        %745 = vst [vmem:[#allocation2 + $0x670] sm:$0xff] %v720
        %746 = vst [vmem:[#allocation2 + $0x6b8] sm:$0xff] %v721
        %747 = vst [vmem:[#allocation2 + $0x700] sm:$0xff] %v722
        %v748 = vld [vmem:[#allocation2] sm:$0xff]
        %v749 = vld [vmem:[#allocation2 + $0x8] sm:$0xff]
        %v750 = vld [vmem:[#allocation2 + $0x10] sm:$0xff]
        %v751 = vld [vmem:[#allocation2 + $0x18] sm:$0xff]
        %v752 = vld [vmem:[#allocation2 + $0x20] sm:$0xff]
        %v753 = vld [vmem:[#allocation2 + $0x28] sm:$0xff]
        %v754 = vld [vmem:[#allocation2 + $0x30] sm:$0xff]
        %v755 = vld [vmem:[#allocation2 + $0x38] sm:$0xff]
        %v756 = vld [vmem:[#allocation2 + $0x40] sm:$0xff]
        %v757 = vld [vmem:[#allocation2 + $0x48] sm:$0xff]
        %v758 = vld [vmem:[#allocation2 + $0x50] sm:$0xff]
        %v759 = vld [vmem:[#allocation2 + $0x58] sm:$0xff]
        %v760 = vld [vmem:[#allocation2 + $0x60] sm:$0xff]
        %v761 = vld [vmem:[#allocation2 + $0x68] sm:$0xff]
        %v762 = vld [vmem:[#allocation2 + $0x70] sm:$0xff]
        %v763 = vld [vmem:[#allocation2 + $0x78] sm:$0xff]
        %v764 = vld [vmem:[#allocation2 + $0x80] sm:$0xff]
        %v765 = vld [vmem:[#allocation2 + $0x88] sm:$0xff]
        %v766 = vld [vmem:[#allocation2 + $0x90] sm:$0xff]
        %v767 = vld [vmem:[#allocation2 + $0x98] sm:$0xff]
        %v768 = vld [vmem:[#allocation2 + $0xa0] sm:$0xff]
        %v769 = vld [vmem:[#allocation2 + $0xa8] sm:$0xff]
        %v770 = vld [vmem:[#allocation2 + $0xb0] sm:$0xff]
        %v771 = vld [vmem:[#allocation2 + $0xb8] sm:$0xff]
        %v772 = vld [vmem:[#allocation2 + $0xc0] sm:$0xff]
        %v773 = vld [vmem:[#allocation2 + $0xc8] sm:$0xff]
        %v774 = vld [vmem:[#allocation2 + $0xd0] sm:$0xff]
        %v775 = vld [vmem:[#allocation2 + $0xd8] sm:$0xff]
        %v776 = vld [vmem:[#allocation2 + $0xe0] sm:$0xff]
        %v777 = vld [vmem:[#allocation2 + $0xe8] sm:$0xff]
        %v778 = vld [vmem:[#allocation2 + $0xf0] sm:$0xff]
        %v779 = vld [vmem:[#allocation2 + $0xf8] sm:$0xff]
        %v780 = vld [vmem:[#allocation2 + $0x100] sm:$0xff]
        %v781 = vld [vmem:[#allocation2 + $0x108] sm:$0xff]
        %v782 = vld [vmem:[#allocation2 + $0x110] sm:$0xff]
        %v783 = vld [vmem:[#allocation2 + $0x118] sm:$0xff]
        %v784 = vld [vmem:[#allocation2 + $0x120] sm:$0xff]
        %v785 = vld [vmem:[#allocation2 + $0x128] sm:$0xff]
        %v786 = vld [vmem:[#allocation2 + $0x130] sm:$0xff]
        %v787 = vld [vmem:[#allocation2 + $0x138] sm:$0xff]
        %v788 = vld [vmem:[#allocation2 + $0x140] sm:$0xff]
        %v789 = vld [vmem:[#allocation2 + $0x148] sm:$0xff]
        %v790 = vld [vmem:[#allocation2 + $0x150] sm:$0xff]
        %v791 = vld [vmem:[#allocation2 + $0x158] sm:$0xff]
        %v792 = vld [vmem:[#allocation2 + $0x160] sm:$0xff]
        %v793 = vld [vmem:[#allocation2 + $0x168] sm:$0xff]
        %v794 = vld [vmem:[#allocation2 + $0x170] sm:$0xff]
        %v795 = vld [vmem:[#allocation2 + $0x178] sm:$0xff]
        %v796 = vld [vmem:[#allocation2 + $0x180] sm:$0xff]
        %v797 = vld [vmem:[#allocation2 + $0x188] sm:$0xff]
        %v798 = vld [vmem:[#allocation2 + $0x190] sm:$0xff]
        %v799 = vld [vmem:[#allocation2 + $0x198] sm:$0xff]
        %v800 = vld [vmem:[#allocation2 + $0x1a0] sm:$0xff]
        %v801 = vld [vmem:[#allocation2 + $0x1a8] sm:$0xff]
        %v802 = vld [vmem:[#allocation2 + $0x1b0] sm:$0xff]
        %v803 = vld [vmem:[#allocation2 + $0x1b8] sm:$0xff]
        %v804 = vld [vmem:[#allocation2 + $0x1c0] sm:$0xff]
        %v805 = vld [vmem:[#allocation2 + $0x1c8] sm:$0xff]
        %v806 = vld [vmem:[#allocation2 + $0x1d0] sm:$0xff]
        %v807 = vld [vmem:[#allocation2 + $0x1d8] sm:$0xff]
        %v808 = vld [vmem:[#allocation2 + $0x1e0] sm:$0xff]
        %v809 = vld [vmem:[#allocation2 + $0x1e8] sm:$0xff]
        %v810 = vld [vmem:[#allocation2 + $0x1f0] sm:$0xff]
        %v811 = vld [vmem:[#allocation2 + $0x1f8] sm:$0xff]
        %v812 = vld [vmem:[#allocation2 + $0x200] sm:$0xff]
        %v813 = vld [vmem:[#allocation2 + $0x208] sm:$0xff]
        %v814 = vld [vmem:[#allocation2 + $0x210] sm:$0xff]
        %v815 = vld [vmem:[#allocation2 + $0x218] sm:$0xff]
        %v816 = vld [vmem:[#allocation2 + $0x220] sm:$0xff]
        %v817 = vld [vmem:[#allocation2 + $0x228] sm:$0xff]
        %v818 = vld [vmem:[#allocation2 + $0x230] sm:$0xff]
        %v819 = vld [vmem:[#allocation2 + $0x238] sm:$0xff]
        %v820 = vld [vmem:[#allocation2 + $0x240] sm:$0xff]
        %v821 = vld [vmem:[#allocation2 + $0x248] sm:$0xff]
        %v822 = vld [vmem:[#allocation2 + $0x250] sm:$0xff]
        %v823 = vld [vmem:[#allocation2 + $0x258] sm:$0xff]
        %v824 = vld [vmem:[#allocation2 + $0x260] sm:$0xff]
        %v825 = vld [vmem:[#allocation2 + $0x268] sm:$0xff]
        %v826 = vld [vmem:[#allocation2 + $0x270] sm:$0xff]
        %v827 = vld [vmem:[#allocation2 + $0x278] sm:$0xff]
        %v828 = vld [vmem:[#allocation2 + $0x280] sm:$0xff]
        %v829 = vld [vmem:[#allocation2 + $0x288] sm:$0xff]
        %v830 = vld [vmem:[#allocation2 + $0x290] sm:$0xff]
        %v831 = vld [vmem:[#allocation2 + $0x298] sm:$0xff]
        %v832 = vld [vmem:[#allocation2 + $0x2a0] sm:$0xff]
        %v833 = vld [vmem:[#allocation2 + $0x2a8] sm:$0xff]
        %v834 = vld [vmem:[#allocation2 + $0x2b0] sm:$0xff]
        %v835 = vld [vmem:[#allocation2 + $0x2b8] sm:$0xff]
        %v836 = vld [vmem:[#allocation2 + $0x2c0] sm:$0xff]
        %v837 = vld [vmem:[#allocation2 + $0x2c8] sm:$0xff]
        %v838 = vld [vmem:[#allocation2 + $0x2d0] sm:$0xff]
        %v839 = vld [vmem:[#allocation2 + $0x2d8] sm:$0xff]
        %v840 = vld [vmem:[#allocation2 + $0x2e0] sm:$0xff]
        %v841 = vld [vmem:[#allocation2 + $0x2e8] sm:$0xff]
        %v842 = vld [vmem:[#allocation2 + $0x2f0] sm:$0xff]
        %v843 = vld [vmem:[#allocation2 + $0x2f8] sm:$0xff]
        %v844 = vld [vmem:[#allocation2 + $0x300] sm:$0xff]
        %v845 = vld [vmem:[#allocation2 + $0x308] sm:$0xff]
        %v846 = vld [vmem:[#allocation2 + $0x310] sm:$0xff]
        %v847 = vld [vmem:[#allocation2 + $0x318] sm:$0xff]
        %v848 = vld [vmem:[#allocation2 + $0x320] sm:$0xff]
        %v849 = vld [vmem:[#allocation2 + $0x328] sm:$0xff]
        %v850 = vld [vmem:[#allocation2 + $0x330] sm:$0xff]
        %v851 = vld [vmem:[#allocation2 + $0x338] sm:$0xff]
        %v852 = vld [vmem:[#allocation2 + $0x340] sm:$0xff]
        %v853 = vld [vmem:[#allocation2 + $0x348] sm:$0xff]
        %v854 = vld [vmem:[#allocation2 + $0x350] sm:$0xff]
        %v855 = vld [vmem:[#allocation2 + $0x358] sm:$0xff]
        %v856 = vld [vmem:[#allocation2 + $0x360] sm:$0xff]
        %v857 = vld [vmem:[#allocation2 + $0x368] sm:$0xff]
        %v858 = vld [vmem:[#allocation2 + $0x370] sm:$0xff]
        %v859 = vld [vmem:[#allocation2 + $0x378] sm:$0xff]
        %v860 = vld [vmem:[#allocation2 + $0x380] sm:$0xff]
        %v861 = vld [vmem:[#allocation2 + $0x388] sm:$0xff]
        %v862 = vld [vmem:[#allocation2 + $0x390] sm:$0xff]
        %v863 = vld [vmem:[#allocation2 + $0x398] sm:$0xff]
        %v864 = vld [vmem:[#allocation2 + $0x3a0] sm:$0xff]
        %v865 = vld [vmem:[#allocation2 + $0x3a8] sm:$0xff]
        %v866 = vld [vmem:[#allocation2 + $0x3b0] sm:$0xff]
        %v867 = vld [vmem:[#allocation2 + $0x3b8] sm:$0xff]
        %v868 = vld [vmem:[#allocation2 + $0x3c0] sm:$0xff]
        %v869 = vld [vmem:[#allocation2 + $0x3c8] sm:$0xff]
        %v870 = vld [vmem:[#allocation2 + $0x3d0] sm:$0xff]
        %v871 = vld [vmem:[#allocation2 + $0x3d8] sm:$0xff]
        %v872 = vld [vmem:[#allocation2 + $0x3e0] sm:$0xff]
        %v873 = vld [vmem:[#allocation2 + $0x3e8] sm:$0xff]
        %v874 = vld [vmem:[#allocation2 + $0x3f0] sm:$0xff]
        %v875 = vld [vmem:[#allocation2 + $0x3f8] sm:$0xff]
        %v876 = vld [vmem:[#allocation2 + $0x400] sm:$0xff]
        %v877 = vld [vmem:[#allocation2 + $0x408] sm:$0xff]
        %v878 = vld [vmem:[#allocation2 + $0x410] sm:$0xff]
        %v879 = vld [vmem:[#allocation2 + $0x418] sm:$0xff]
        %v880 = vld [vmem:[#allocation2 + $0x420] sm:$0xff]
        %v881 = vld [vmem:[#allocation2 + $0x428] sm:$0xff]
        %v882 = vld [vmem:[#allocation2 + $0x430] sm:$0xff]
        %v883 = vld [vmem:[#allocation2 + $0x438] sm:$0xff]
        %v884 = vld [vmem:[#allocation2 + $0x440] sm:$0xff]
        %v885 = vld [vmem:[#allocation2 + $0x448] sm:$0xff]
        %v886 = vld [vmem:[#allocation2 + $0x450] sm:$0xff]
        %v887 = vld [vmem:[#allocation2 + $0x458] sm:$0xff]
        %v888 = vld [vmem:[#allocation2 + $0x460] sm:$0xff]
        %v889 = vld [vmem:[#allocation2 + $0x468] sm:$0xff]
        %v890 = vld [vmem:[#allocation2 + $0x470] sm:$0xff]
        %v891 = vld [vmem:[#allocation2 + $0x478] sm:$0xff]
        %v892 = vld [vmem:[#allocation2 + $0x480] sm:$0xff]
        %v893 = vld [vmem:[#allocation2 + $0x488] sm:$0xff]
        %v894 = vld [vmem:[#allocation2 + $0x490] sm:$0xff]
        %v895 = vld [vmem:[#allocation2 + $0x498] sm:$0xff]
        %v896 = vld [vmem:[#allocation2 + $0x4a0] sm:$0xff]
        %v897 = vld [vmem:[#allocation2 + $0x4a8] sm:$0xff]
        %v898 = vld [vmem:[#allocation2 + $0x4b0] sm:$0xff]
        %v899 = vld [vmem:[#allocation2 + $0x4b8] sm:$0xff]
        %v900 = vld [vmem:[#allocation2 + $0x4c0] sm:$0xff]
        %v901 = vld [vmem:[#allocation2 + $0x4c8] sm:$0xff]
        %v902 = vld [vmem:[#allocation2 + $0x4d0] sm:$0xff]
        %v903 = vld [vmem:[#allocation2 + $0x4d8] sm:$0xff]
        %v904 = vld [vmem:[#allocation2 + $0x4e0] sm:$0xff]
        %v905 = vld [vmem:[#allocation2 + $0x4e8] sm:$0xff]
        %v906 = vld [vmem:[#allocation2 + $0x4f0] sm:$0xff]
        %v907 = vld [vmem:[#allocation2 + $0x4f8] sm:$0xff]
        %v908 = vld [vmem:[#allocation2 + $0x500] sm:$0xff]
        %v909 = vld [vmem:[#allocation2 + $0x508] sm:$0xff]
        %v910 = vld [vmem:[#allocation2 + $0x510] sm:$0xff]
        %v911 = vld [vmem:[#allocation2 + $0x518] sm:$0xff]
        %v912 = vld [vmem:[#allocation2 + $0x520] sm:$0xff]
        %v913 = vld [vmem:[#allocation2 + $0x528] sm:$0xff]
        %v914 = vld [vmem:[#allocation2 + $0x530] sm:$0xff]
        %v915 = vld [vmem:[#allocation2 + $0x538] sm:$0xff]
        %v916 = vld [vmem:[#allocation2 + $0x540] sm:$0xff]
        %v917 = vld [vmem:[#allocation2 + $0x548] sm:$0xff]
        %v918 = vld [vmem:[#allocation2 + $0x550] sm:$0xff]
        %v919 = vld [vmem:[#allocation2 + $0x558] sm:$0xff]
        %v920 = vld [vmem:[#allocation2 + $0x560] sm:$0xff]
        %v921 = vld [vmem:[#allocation2 + $0x568] sm:$0xff]
        %v922 = vld [vmem:[#allocation2 + $0x570] sm:$0xff]
        %v923 = vld [vmem:[#allocation2 + $0x578] sm:$0xff]
        %v924 = vld [vmem:[#allocation2 + $0x580] sm:$0xff]
        %v925 = vld [vmem:[#allocation2 + $0x588] sm:$0xff]
        %v926 = vld [vmem:[#allocation2 + $0x590] sm:$0xff]
        %v927 = vld [vmem:[#allocation2 + $0x598] sm:$0xff]
        %v928 = vld [vmem:[#allocation2 + $0x5a0] sm:$0xff]
        %v929 = vld [vmem:[#allocation2 + $0x5a8] sm:$0xff]
        %v930 = vld [vmem:[#allocation2 + $0x5b0] sm:$0xff]
        %v931 = vld [vmem:[#allocation2 + $0x5b8] sm:$0xff]
        %v932 = vld [vmem:[#allocation2 + $0x5c0] sm:$0xff]
        %v933 = vld [vmem:[#allocation2 + $0x5c8] sm:$0xff]
        %v934 = vld [vmem:[#allocation2 + $0x5d0] sm:$0xff]
        %v935 = vld [vmem:[#allocation2 + $0x5d8] sm:$0xff]
        %v936 = vld [vmem:[#allocation2 + $0x5e0] sm:$0xff]
        %v937 = vld [vmem:[#allocation2 + $0x5e8] sm:$0xff]
        %v938 = vld [vmem:[#allocation2 + $0x5f0] sm:$0xff]
        %v939 = vld [vmem:[#allocation2 + $0x5f8] sm:$0xff]
        %v940 = vld [vmem:[#allocation2 + $0x600] sm:$0xff]
        %v941 = vld [vmem:[#allocation2 + $0x608] sm:$0xff]
        %v942 = vld [vmem:[#allocation2 + $0x610] sm:$0xff]
        %v943 = vld [vmem:[#allocation2 + $0x618] sm:$0xff]
        %v944 = vld [vmem:[#allocation2 + $0x620] sm:$0xff]
        %v945 = vld [vmem:[#allocation2 + $0x628] sm:$0xff]
        %v946 = vld [vmem:[#allocation2 + $0x630] sm:$0xff]
        %v947 = vld [vmem:[#allocation2 + $0x638] sm:$0xff]
        %v948 = vld [vmem:[#allocation2 + $0x640] sm:$0xff]
        %v949 = vld [vmem:[#allocation2 + $0x648] sm:$0xff]
        %v950 = vld [vmem:[#allocation2 + $0x650] sm:$0xff]
        %v951 = vld [vmem:[#allocation2 + $0x658] sm:$0xff]
        %v952 = vld [vmem:[#allocation2 + $0x660] sm:$0xff]
        %v953 = vld [vmem:[#allocation2 + $0x668] sm:$0xff]
        %v954 = vld [vmem:[#allocation2 + $0x670] sm:$0xff]
        %v955 = vld [vmem:[#allocation2 + $0x678] sm:$0xff]
        %v956 = vld [vmem:[#allocation2 + $0x680] sm:$0xff]
        %v957 = vld [vmem:[#allocation2 + $0x688] sm:$0xff]
        %v958 = vld [vmem:[#allocation2 + $0x690] sm:$0xff]
        %v959 = vld [vmem:[#allocation2 + $0x698] sm:$0xff]
        %v960 = vld [vmem:[#allocation2 + $0x6a0] sm:$0xff]
        %v961 = vld [vmem:[#allocation2 + $0x6a8] sm:$0xff]
        %v962 = vld [vmem:[#allocation2 + $0x6b0] sm:$0xff]
        %v963 = vld [vmem:[#allocation2 + $0x6b8] sm:$0xff]
        %v964 = vld [vmem:[#allocation2 + $0x6c0] sm:$0xff]
        %v965 = vld [vmem:[#allocation2 + $0x6c8] sm:$0xff]
        %v966 = vld [vmem:[#allocation2 + $0x6d0] sm:$0xff]
        %v967 = vld [vmem:[#allocation2 + $0x6d8] sm:$0xff]
        %v968 = vld [vmem:[#allocation2 + $0x6e0] sm:$0xff]
        %v969 = vld [vmem:[#allocation2 + $0x6e8] sm:$0xff]
        %v970 = vld [vmem:[#allocation2 + $0x6f0] sm:$0xff]
        %v971 = vld [vmem:[#allocation2 + $0x6f8] sm:$0xff]
        %v972 = vld [vmem:[#allocation2 + $0x700] sm:$0xff]
        %v973 = vld [vmem:[%s1] sm:$0xff]
        %v974 = vld [vmem:[%s1 + $0x8] sm:$0xff]
        %v975 = vld [vmem:[%s1 + $0x10] sm:$0xff]
        %v976 = vld [vmem:[%s1 + $0x18] sm:$0xff]
        %v977 = vld [vmem:[%s1 + $0x20] sm:$0xff]
        %v978 = vld [vmem:[%s1 + $0x28] sm:$0xff]
        %v979 = vld [vmem:[%s1 + $0x30] sm:$0xff]
        %v980 = vld [vmem:[%s1 + $0x38] sm:$0xff]
        %v981 = vld [vmem:[%s1 + $0x40] sm:$0xff]
        %v982 = vld [vmem:[%s1 + $0x48] sm:$0xff]
        %v983 = vld [vmem:[%s1 + $0x50] sm:$0xff]
        %v984 = vld [vmem:[%s1 + $0x58] sm:$0xff]
        %v985 = vld [vmem:[%s1 + $0x60] sm:$0xff]
        %v986 = vld [vmem:[%s1 + $0x68] sm:$0xff]
        %v987 = vld [vmem:[%s1 + $0x70] sm:$0xff]
        %v988 = vld [vmem:[%s1 + $0x78] sm:$0xff]
        %v989 = vld [vmem:[%s1 + $0x80] sm:$0xff]
        %v990 = vld [vmem:[%s1 + $0x88] sm:$0xff]
        %v991 = vld [vmem:[%s1 + $0x90] sm:$0xff]
        %v992 = vld [vmem:[%s1 + $0x98] sm:$0xff]
        %v993 = vld [vmem:[%s1 + $0xa0] sm:$0xff]
        %v994 = vld [vmem:[%s1 + $0xa8] sm:$0xff]
        %v995 = vld [vmem:[%s1 + $0xb0] sm:$0xff]
        %v996 = vld [vmem:[%s1 + $0xb8] sm:$0xff]
        %v997 = vld [vmem:[%s1 + $0xc0] sm:$0xff]
        %v998 = vld [vmem:[%s1 + $0xc8] sm:$0xff]
        %v999 = vld [vmem:[%s1 + $0xd0] sm:$0xff]
        %v1000 = vld [vmem:[%s1 + $0xd8] sm:$0xff]
        %v1001 = vld [vmem:[%s1 + $0xe0] sm:$0xff]
        %v1002 = vld [vmem:[%s1 + $0xe8] sm:$0xff]
        %v1003 = vld [vmem:[%s1 + $0xf0] sm:$0xff]
        %v1004 = vld [vmem:[%s1 + $0xf8] sm:$0xff]
        %v1005 = vld [vmem:[%s1 + $0x100] sm:$0xff]
        %v1006 = vld [vmem:[%s1 + $0x108] sm:$0xff]
        %v1007 = vld [vmem:[%s1 + $0x110] sm:$0xff]
        %v1008 = vld [vmem:[%s1 + $0x118] sm:$0xff]
        %v1009 = vld [vmem:[%s1 + $0x120] sm:$0xff]
        %v1010 = vld [vmem:[%s1 + $0x128] sm:$0xff]
        %v1011 = vld [vmem:[%s1 + $0x130] sm:$0xff]
        %v1012 = vld [vmem:[%s1 + $0x138] sm:$0xff]
        %v1013 = vld [vmem:[%s1 + $0x140] sm:$0xff]
        %v1014 = vld [vmem:[%s1 + $0x148] sm:$0xff]
        %v1015 = vld [vmem:[%s1 + $0x150] sm:$0xff]
        %v1016 = vld [vmem:[%s1 + $0x158] sm:$0xff]
        %v1017 = vld [vmem:[%s1 + $0x160] sm:$0xff]
        %v1018 = vld [vmem:[%s1 + $0x168] sm:$0xff]
        %v1019 = vld [vmem:[%s1 + $0x170] sm:$0xff]
        %v1020 = vld [vmem:[%s1 + $0x178] sm:$0xff]
        %v1021 = vld [vmem:[%s1 + $0x180] sm:$0xff]
        %v1022 = vld [vmem:[%s1 + $0x188] sm:$0xff]
        %v1023 = vld [vmem:[%s1 + $0x190] sm:$0xff]
        %v1024 = vld [vmem:[%s1 + $0x198] sm:$0xff]
        %v1025 = vld [vmem:[%s1 + $0x1a0] sm:$0xff]
        %v1026 = vld [vmem:[%s1 + $0x1a8] sm:$0xff]
        %v1027 = vld [vmem:[%s1 + $0x1b0] sm:$0xff]
        %v1028 = vld [vmem:[%s1 + $0x1b8] sm:$0xff]
        %v1029 = vld [vmem:[%s1 + $0x1c0] sm:$0xff]
        %v1030 = vld [vmem:[%s1 + $0x1c8] sm:$0xff]
        %v1031 = vld [vmem:[%s1 + $0x1d0] sm:$0xff]
        %v1032 = vld [vmem:[%s1 + $0x1d8] sm:$0xff]
        %v1033 = vld [vmem:[%s1 + $0x1e0] sm:$0xff]
        %v1034 = vld [vmem:[%s1 + $0x1e8] sm:$0xff]
        %v1035 = vld [vmem:[%s1 + $0x1f0] sm:$0xff]
        %v1036 = vld [vmem:[%s1 + $0x1f8] sm:$0xff]
        %v1037 = vld [vmem:[%s1 + $0x200] sm:$0xff]
        %v1038 = vld [vmem:[%s1 + $0x208] sm:$0xff]
        %v1039 = vld [vmem:[%s1 + $0x210] sm:$0xff]
        %v1040 = vld [vmem:[%s1 + $0x218] sm:$0xff]
        %v1041 = vld [vmem:[%s1 + $0x220] sm:$0xff]
        %v1042 = vld [vmem:[%s1 + $0x228] sm:$0xff]
        %v1043 = vld [vmem:[%s1 + $0x230] sm:$0xff]
        %v1044 = vld [vmem:[%s1 + $0x238] sm:$0xff]
        %v1045 = vld [vmem:[%s1 + $0x240] sm:$0xff]
        %v1046 = vld [vmem:[%s1 + $0x248] sm:$0xff]
        %v1047 = vld [vmem:[%s1 + $0x250] sm:$0xff]
        %v1048 = vld [vmem:[%s1 + $0x258] sm:$0xff]
        %v1049 = vld [vmem:[%s1 + $0x260] sm:$0xff]
        %v1050 = vld [vmem:[%s1 + $0x268] sm:$0xff]
        %v1051 = vld [vmem:[%s1 + $0x270] sm:$0xff]
        %v1052 = vld [vmem:[%s1 + $0x278] sm:$0xff]
        %v1053 = vld [vmem:[%s1 + $0x280] sm:$0xff]
        %v1054 = vld [vmem:[%s1 + $0x288] sm:$0xff]
        %v1055 = vld [vmem:[%s1 + $0x290] sm:$0xff]
        %v1056 = vld [vmem:[%s1 + $0x298] sm:$0xff]
        %v1057 = vld [vmem:[%s1 + $0x2a0] sm:$0xff]
        %v1058 = vld [vmem:[%s1 + $0x2a8] sm:$0xff]
        %v1059 = vld [vmem:[%s1 + $0x2b0] sm:$0xff]
        %v1060 = vld [vmem:[%s1 + $0x2b8] sm:$0xff]
        %v1061 = vld [vmem:[%s1 + $0x2c0] sm:$0xff]
        %v1062 = vld [vmem:[%s1 + $0x2c8] sm:$0xff]
        %v1063 = vld [vmem:[%s1 + $0x2d0] sm:$0xff]
        %v1064 = vld [vmem:[%s1 + $0x2d8] sm:$0xff]
        %v1065 = vld [vmem:[%s1 + $0x2e0] sm:$0xff]
        %v1066 = vld [vmem:[%s1 + $0x2e8] sm:$0xff]
        %v1067 = vld [vmem:[%s1 + $0x2f0] sm:$0xff]
        %v1068 = vld [vmem:[%s1 + $0x2f8] sm:$0xff]
        %v1069 = vld [vmem:[%s1 + $0x300] sm:$0xff]
        %v1070 = vld [vmem:[%s1 + $0x308] sm:$0xff]
        %v1071 = vld [vmem:[%s1 + $0x310] sm:$0xff]
        %v1072 = vld [vmem:[%s1 + $0x318] sm:$0xff]
        %v1073 = vld [vmem:[%s1 + $0x320] sm:$0xff]
        %v1074 = vld [vmem:[%s1 + $0x328] sm:$0xff]
        %v1075 = vld [vmem:[%s1 + $0x330] sm:$0xff]
        %v1076 = vld [vmem:[%s1 + $0x338] sm:$0xff]
        %v1077 = vld [vmem:[%s1 + $0x340] sm:$0xff]
        %v1078 = vld [vmem:[%s1 + $0x348] sm:$0xff]
        %v1079 = vld [vmem:[%s1 + $0x350] sm:$0xff]
        %v1080 = vld [vmem:[%s1 + $0x358] sm:$0xff]
        %v1081 = vld [vmem:[%s1 + $0x360] sm:$0xff]
        %v1082 = vld [vmem:[%s1 + $0x368] sm:$0xff]
        %v1083 = vld [vmem:[%s1 + $0x370] sm:$0xff]
        %v1084 = vld [vmem:[%s1 + $0x378] sm:$0xff]
        %v1085 = vld [vmem:[%s1 + $0x380] sm:$0xff]
        %v1086 = vld [vmem:[%s1 + $0x388] sm:$0xff]
        %v1087 = vld [vmem:[%s1 + $0x390] sm:$0xff]
        %v1088 = vld [vmem:[%s1 + $0x398] sm:$0xff]
        %v1089 = vld [vmem:[%s1 + $0x3a0] sm:$0xff]
        %v1090 = vld [vmem:[%s1 + $0x3a8] sm:$0xff]
        %v1091 = vld [vmem:[%s1 + $0x3b0] sm:$0xff]
        %v1092 = vld [vmem:[%s1 + $0x3b8] sm:$0xff]
        %v1093 = vld [vmem:[%s1 + $0x3c0] sm:$0xff]
        %v1094 = vld [vmem:[%s1 + $0x3c8] sm:$0xff]
        %v1095 = vld [vmem:[%s1 + $0x3d0] sm:$0xff]
        %v1096 = vld [vmem:[%s1 + $0x3d8] sm:$0xff]
        %v1097 = vld [vmem:[%s1 + $0x3e0] sm:$0xff]
        %v1098 = vld [vmem:[%s1 + $0x3e8] sm:$0xff]
        %v1099 = vld [vmem:[%s1 + $0x3f0] sm:$0xff]
        %v1100 = vld [vmem:[%s1 + $0x3f8] sm:$0xff]
        %v1101 = vld [vmem:[%s1 + $0x400] sm:$0xff]
        %v1102 = vld [vmem:[%s1 + $0x408] sm:$0xff]
        %v1103 = vld [vmem:[%s1 + $0x410] sm:$0xff]
        %v1104 = vld [vmem:[%s1 + $0x418] sm:$0xff]
        %v1105 = vld [vmem:[%s1 + $0x420] sm:$0xff]
        %v1106 = vld [vmem:[%s1 + $0x428] sm:$0xff]
        %v1107 = vld [vmem:[%s1 + $0x430] sm:$0xff]
        %v1108 = vld [vmem:[%s1 + $0x438] sm:$0xff]
        %v1109 = vld [vmem:[%s1 + $0x440] sm:$0xff]
        %v1110 = vld [vmem:[%s1 + $0x448] sm:$0xff]
        %v1111 = vld [vmem:[%s1 + $0x450] sm:$0xff]
        %v1112 = vld [vmem:[%s1 + $0x458] sm:$0xff]
        %v1113 = vld [vmem:[%s1 + $0x460] sm:$0xff]
        %v1114 = vld [vmem:[%s1 + $0x468] sm:$0xff]
        %v1115 = vld [vmem:[%s1 + $0x470] sm:$0xff]
        %v1116 = vld [vmem:[%s1 + $0x478] sm:$0xff]
        %v1117 = vld [vmem:[%s2] sm:$0x1]
        %v1119 = vlaneseq
        %v1120 = vshrl.u32 %v1119, 7
        %v1121 = vsub.s32 0, %v1120
        %v1122 = vrot.slane %v1117, %v1121
        %1124 = vmatprep.subr.mxu0 0.0
        %1125 = vmatpush1.msra.mxu0 %v973
        %1126 = vmatprep.subr.mxu0 0.0
        %1127 = vmatpush1.msra.mxu0 %v974
        %1128 = vmatprep.subr.mxu0 0.0
        %1129 = vmatpush1.msra.mxu0 %v975
        %1130 = vmatprep.subr.mxu0 0.0
        %1131 = vmatpush1.msra.mxu0 %v976
        %1132 = vmatprep.subr.mxu0 0.0
        %1133 = vmatpush1.msra.mxu0 %v977
        %1134 = vmatprep.subr.mxu0 0.0
        %1135 = vmatpush1.msra.mxu0 %v978
        %1136 = vmatprep.subr.mxu0 0.0
        %1137 = vmatpush1.msra.mxu0 %v979
        %1138 = vmatprep.subr.mxu0 0.0
        %1139 = vmatpush1.msra.mxu0 %v980
        %1140 = vmatprep.subr.mxu0 0.0
        %1141 = vmatpush1.msra.mxu0 %v981
        %1142 = vmatprep.subr.mxu0 0.0
        %1143 = vmatpush1.msra.mxu0 %v982
        %1144 = vmatprep.subr.mxu0 0.0
        %1145 = vmatpush1.msra.mxu0 %v983
        %1146 = vmatprep.subr.mxu0 0.0
        %1147 = vmatpush1.msra.mxu0 %v984
        %1148 = vmatprep.subr.mxu0 0.0
        %1149 = vmatpush1.msra.mxu0 %v985
        %1150 = vmatprep.subr.mxu0 0.0
        %1151 = vmatpush1.msra.mxu0 %v986
        %1152 = vmatprep.subr.mxu0 0.0
        %1153 = vmatpush1.msra.mxu0 %v987
        %1154 = vmatprep.subr.mxu0 0.0
        %1155 = vmatpush1.msra.mxu0 %v988
        %1156 = vmatprep.subr.mxu0 0.0
        %1157 = vmatpush1.msra.mxu0 %v989
        %1158 = vmatprep.subr.mxu0 0.0
        %1159 = vmatpush1.msra.mxu0 %v990
        %1160 = vmatprep.subr.mxu0 0.0
        %1161 = vmatpush1.msra.mxu0 %v991
        %1162 = vmatprep.subr.mxu0 0.0
        %1163 = vmatpush1.msra.mxu0 %v992
        %1164 = vmatprep.subr.mxu0 0.0
        %1165 = vmatpush1.msra.mxu0 %v993
        %1166 = vmatprep.subr.mxu0 0.0
        %1167 = vmatpush1.msra.mxu0 %v994
        %1168 = vmatprep.subr.mxu0 0.0
        %1169 = vmatpush1.msra.mxu0 %v995
        %1170 = vmatprep.subr.mxu0 0.0
        %1171 = vmatpush1.msra.mxu0 %v996
        %1172 = vmatprep.subr.mxu0 0.0
        %1173 = vmatpush1.msra.mxu0 %v997
        %1174 = vmatprep.subr.mxu0 0.0
        %1175 = vmatpush1.msra.mxu0 %v998
        %1176 = vmatprep.subr.mxu0 0.0
        %1177 = vmatpush1.msra.mxu0 %v999
        %1178 = vmatprep.subr.mxu0 0.0
        %1179 = vmatpush1.msra.mxu0 %v1000
        %1180 = vmatprep.subr.mxu0 0.0
        %1181 = vmatpush1.msra.mxu0 %v1001
        %1182 = vmatprep.subr.mxu0 0.0
        %1183 = vmatpush1.msra.mxu0 %v1002
        %1184 = vmatprep.subr.mxu0 0.0
        %1185 = vmatpush1.msra.mxu0 %v1003
        %1186 = vmatprep.subr.mxu0 0.0
        %1187 = vmatpush1.msra.mxu0 %v1004
        %1188 = vmatprep.mubr.f32.mxu0 %v749
        %1189 = vmatmul.mubr.f32.gmra.mrb[0].mxu0 %v748
        %v1190 = vpop.f32.mrb[0].mxu0
        %v1191 = vadd.f32 %v1122, %v1190
        %v1192 = vpop.f32.mrb[0].mxu0
        %1193 = vmatprep.mubr.f32.mxu0 %v758
        %1194 = vmatmul.mubr.f32.gmra.mrb[0].mxu0 %v757
        %v1195 = vpop.f32.mrb[0].mxu0
        %v1196 = vadd.f32 %v1122, %v1195
        %v1197 = vpop.f32.mrb[0].mxu0
        %1198 = vmatprep.mubr.f32.mxu0 %v767
        %1199 = vmatmul.mubr.f32.gmra.mrb[0].mxu0 %v766
        %v1200 = vpop.f32.mrb[0].mxu0
        %v1201 = vadd.f32 %v1122, %v1200
        %v1202 = vpop.f32.mrb[0].mxu0
        %1203 = vmatprep.mubr.f32.mxu0 %v776
        %1204 = vmatmul.mubr.f32.gmra.mrb[0].mxu0 %v775
        %v1205 = vpop.f32.mrb[0].mxu0
        %v1206 = vadd.f32 %v1122, %v1205
        %v1207 = vpop.f32.mrb[0].mxu0
        %1208 = vmatprep.mubr.f32.mxu0 %v785
        %1209 = vmatmul.mubr.f32.gmra.mrb[0].mxu0 %v784
        %v1210 = vpop.f32.mrb[0].mxu0
        %v1211 = vadd.f32 %v1122, %v1210
        %v1212 = vpop.f32.mrb[0].mxu0
        %1213 = vmatprep.mubr.f32.mxu0 %v794
        %1214 = vmatmul.mubr.f32.gmra.mrb[0].mxu0 %v793
        %v1215 = vpop.f32.mrb[0].mxu0
        %v1216 = vadd.f32 %v1122, %v1215
        %v1217 = vpop.f32.mrb[0].mxu0
        %1218 = vmatprep.mubr.f32.mxu0 %v803
        %1219 = vmatmul.mubr.f32.gmra.mrb[0].mxu0 %v802
        %v1220 = vpop.f32.mrb[0].mxu0
        %v1221 = vadd.f32 %v1122, %v1220
        %v1222 = vpop.f32.mrb[0].mxu0
        %1223 = vmatprep.mubr.f32.mxu0 %v812
        %1224 = vmatmul.mubr.f32.gmra.mrb[0].mxu0 %v811
        %v1225 = vpop.f32.mrb[0].mxu0
        %v1226 = vadd.f32 %v1122, %v1225
        %v1227 = vpop.f32.mrb[0].mxu0
        %1228 = vmatprep.mubr.f32.mxu0 %v821
        %1229 = vmatmul.mubr.f32.gmra.mrb[0].mxu0 %v820
        %v1230 = vpop.f32.mrb[0].mxu0
        %v1231 = vadd.f32 %v1122, %v1230
        %v1232 = vpop.f32.mrb[0].mxu0
        %1233 = vmatprep.mubr.f32.mxu0 %v830
        %1234 = vmatmul.mubr.f32.gmra.mrb[0].mxu0 %v829
        %v1235 = vpop.f32.mrb[0].mxu0
        %v1236 = vadd.f32 %v1122, %v1235
        %v1237 = vpop.f32.mrb[0].mxu0
        %1238 = vmatprep.mubr.f32.mxu0 %v839
        %1239 = vmatmul.mubr.f32.gmra.mrb[0].mxu0 %v838
        %v1240 = vpop.f32.mrb[0].mxu0
        %v1241 = vadd.f32 %v1122, %v1240
        %v1242 = vpop.f32.mrb[0].mxu0
        %1243 = vmatprep.mubr.f32.mxu0 %v848
        %1244 = vmatmul.mubr.f32.gmra.mrb[0].mxu0 %v847
        %v1245 = vpop.f32.mrb[0].mxu0
        %v1246 = vadd.f32 %v1122, %v1245
        %v1247 = vpop.f32.mrb[0].mxu0
        %1248 = vmatprep.mubr.f32.mxu0 %v857
        %1249 = vmatmul.mubr.f32.gmra.mrb[0].mxu0 %v856
        %v1250 = vpop.f32.mrb[0].mxu0
        %v1251 = vadd.f32 %v1122, %v1250
        %v1252 = vpop.f32.mrb[0].mxu0
        %1253 = vmatprep.mubr.f32.mxu0 %v866
        %1254 = vmatmul.mubr.f32.gmra.mrb[0].mxu0 %v865
        %v1255 = vpop.f32.mrb[0].mxu0
        %v1256 = vadd.f32 %v1122, %v1255
        %v1257 = vpop.f32.mrb[0].mxu0
        %1258 = vmatprep.mubr.f32.mxu0 %v875
        %1259 = vmatmul.mubr.f32.gmra.mrb[0].mxu0 %v874
        %v1260 = vpop.f32.mrb[0].mxu0
        %v1261 = vadd.f32 %v1122, %v1260
        %v1262 = vpop.f32.mrb[0].mxu0
        %1263 = vmatprep.mubr.f32.mxu0 %v884
        %1264 = vmatmul.mubr.f32.gmra.mrb[0].mxu0 %v883
        %v1265 = vpop.f32.mrb[0].mxu0
        %v1266 = vadd.f32 %v1122, %v1265
        %v1267 = vpop.f32.mrb[0].mxu0
        %1268 = vmatprep.mubr.f32.mxu0 %v893
        %1269 = vmatmul.mubr.f32.gmra.mrb[0].mxu0 %v892
        %v1270 = vpop.f32.mrb[0].mxu0
        %v1271 = vadd.f32 %v1122, %v1270
        %v1272 = vpop.f32.mrb[0].mxu0
        %1273 = vmatprep.mubr.f32.mxu0 %v902
        %1274 = vmatmul.mubr.f32.gmra.mrb[0].mxu0 %v901
        %v1275 = vpop.f32.mrb[0].mxu0
        %v1276 = vadd.f32 %v1122, %v1275
        %v1277 = vpop.f32.mrb[0].mxu0
        %1278 = vmatprep.mubr.f32.mxu0 %v911
        %1279 = vmatmul.mubr.f32.gmra.mrb[0].mxu0 %v910
        %v1280 = vpop.f32.mrb[0].mxu0
        %v1281 = vadd.f32 %v1122, %v1280
        %v1282 = vpop.f32.mrb[0].mxu0
        %1283 = vmatprep.mubr.f32.mxu0 %v920
        %1284 = vmatmul.mubr.f32.gmra.mrb[0].mxu0 %v919
        %v1285 = vpop.f32.mrb[0].mxu0
        %v1286 = vadd.f32 %v1122, %v1285
        %v1287 = vpop.f32.mrb[0].mxu0
        %1288 = vmatprep.mubr.f32.mxu0 %v929
        %1289 = vmatmul.mubr.f32.gmra.mrb[0].mxu0 %v928
        %v1290 = vpop.f32.mrb[0].mxu0
        %v1291 = vadd.f32 %v1122, %v1290
        %v1292 = vpop.f32.mrb[0].mxu0
        %1293 = vmatprep.mubr.f32.mxu0 %v938
        %1294 = vmatmul.mubr.f32.gmra.mrb[0].mxu0 %v937
        %v1295 = vpop.f32.mrb[0].mxu0
        %v1296 = vadd.f32 %v1122, %v1295
        %v1297 = vpop.f32.mrb[0].mxu0
        %1298 = vmatprep.mubr.f32.mxu0 %v947
        %1299 = vmatmul.mubr.f32.gmra.mrb[0].mxu0 %v946
        %v1300 = vpop.f32.mrb[0].mxu0
        %v1301 = vadd.f32 %v1122, %v1300
        %v1302 = vpop.f32.mrb[0].mxu0
        %1303 = vmatprep.mubr.f32.mxu0 %v956
        %1304 = vmatmul.mubr.f32.gmra.mrb[0].mxu0 %v955
        %v1305 = vpop.f32.mrb[0].mxu0
        %v1306 = vadd.f32 %v1122, %v1305
        %v1307 = vpop.f32.mrb[0].mxu0
        %1308 = vmatprep.mubr.f32.mxu0 %v965
        %1309 = vmatmul.mubr.f32.gmra.mrb[0].mxu0 %v964
        %v1310 = vpop.f32.mrb[0].mxu0
        %v1311 = vadd.f32 %v1122, %v1310
        %v1312 = vpop.f32.mrb[0].mxu0
        %1313 = vdwg.mxu0
        %1314 = vmatprep.subr.mxu0 0.0
        %1315 = vmatpush1.msra.mxu0 %v1005
        %1316 = vmatprep.subr.mxu0 0.0
        %1317 = vmatpush1.msra.mxu0 %v1006
        %1318 = vmatprep.subr.mxu0 0.0
        %1319 = vmatpush1.msra.mxu0 %v1007
        %1320 = vmatprep.subr.mxu0 0.0
        %1321 = vmatpush1.msra.mxu0 %v1008
        %1322 = vmatprep.subr.mxu0 0.0
        %1323 = vmatpush1.msra.mxu0 %v1009
        %1324 = vmatprep.subr.mxu0 0.0
        %1325 = vmatpush1.msra.mxu0 %v1010
        %1326 = vmatprep.subr.mxu0 0.0
        %1327 = vmatpush1.msra.mxu0 %v1011
        %1328 = vmatprep.subr.mxu0 0.0
        %1329 = vmatpush1.msra.mxu0 %v1012
        %1330 = vmatprep.subr.mxu0 0.0
        %1331 = vmatpush1.msra.mxu0 %v1013
        %1332 = vmatprep.subr.mxu0 0.0
        %1333 = vmatpush1.msra.mxu0 %v1014
        %1334 = vmatprep.subr.mxu0 0.0
        %1335 = vmatpush1.msra.mxu0 %v1015
        %1336 = vmatprep.subr.mxu0 0.0
        %1337 = vmatpush1.msra.mxu0 %v1016
        %1338 = vmatprep.subr.mxu0 0.0
        %1339 = vmatpush1.msra.mxu0 %v1017
        %1340 = vmatprep.subr.mxu0 0.0
        %1341 = vmatpush1.msra.mxu0 %v1018
        %1342 = vmatprep.subr.mxu0 0.0
        %1343 = vmatpush1.msra.mxu0 %v1019
        %1344 = vmatprep.subr.mxu0 0.0
        %1345 = vmatpush1.msra.mxu0 %v1020
        %1346 = vmatprep.subr.mxu0 0.0
        %1347 = vmatpush1.msra.mxu0 %v1021
        %1348 = vmatprep.subr.mxu0 0.0
        %1349 = vmatpush1.msra.mxu0 %v1022
        %1350 = vmatprep.subr.mxu0 0.0
        %1351 = vmatpush1.msra.mxu0 %v1023
        %1352 = vmatprep.subr.mxu0 0.0
        %1353 = vmatpush1.msra.mxu0 %v1024
        %1354 = vmatprep.subr.mxu0 0.0
        %1355 = vmatpush1.msra.mxu0 %v1025
        %1356 = vmatprep.subr.mxu0 0.0
        %1357 = vmatpush1.msra.mxu0 %v1026
        %1358 = vmatprep.subr.mxu0 0.0
        %1359 = vmatpush1.msra.mxu0 %v1027
        %1360 = vmatprep.subr.mxu0 0.0
        %1361 = vmatpush1.msra.mxu0 %v1028
        %1362 = vmatprep.subr.mxu0 0.0
        %1363 = vmatpush1.msra.mxu0 %v1029
        %1364 = vmatprep.subr.mxu0 0.0
        %1365 = vmatpush1.msra.mxu0 %v1030
        %1366 = vmatprep.subr.mxu0 0.0
        %1367 = vmatpush1.msra.mxu0 %v1031
        %1368 = vmatprep.subr.mxu0 0.0
        %1369 = vmatpush1.msra.mxu0 %v1032
        %1370 = vmatprep.subr.mxu0 0.0
        %1371 = vmatpush1.msra.mxu0 %v1033
        %1372 = vmatprep.subr.mxu0 0.0
        %1373 = vmatpush1.msra.mxu0 %v1034
        %1374 = vmatprep.subr.mxu0 0.0
        %1375 = vmatpush1.msra.mxu0 %v1035
        %1376 = vmatprep.subr.mxu0 0.0
        %1377 = vmatpush1.msra.mxu0 %v1036
        %1378 = vmatprep.mubr.f32.mxu0 %v751
        %1379 = vmatmul.mubr.f32.gmra.mrb[0].mxu0 %v750
        %v1380 = vpop.f32.mrb[0].mxu0
        %v1381 = vadd.f32 %v1191, %v1380
        %v1382 = vpop.f32.mrb[0].mxu0
        %1383 = vmatprep.mubr.f32.mxu0 %v760
        %1384 = vmatmul.mubr.f32.gmra.mrb[0].mxu0 %v759
        %v1385 = vpop.f32.mrb[0].mxu0
        %v1386 = vadd.f32 %v1196, %v1385
        %v1387 = vpop.f32.mrb[0].mxu0
        %1388 = vmatprep.mubr.f32.mxu0 %v769
        %1389 = vmatmul.mubr.f32.gmra.mrb[0].mxu0 %v768
        %v1390 = vpop.f32.mrb[0].mxu0
        %v1391 = vadd.f32 %v1201, %v1390
        %v1392 = vpop.f32.mrb[0].mxu0
        %1393 = vmatprep.mubr.f32.mxu0 %v778
        %1394 = vmatmul.mubr.f32.gmra.mrb[0].mxu0 %v777
        %v1395 = vpop.f32.mrb[0].mxu0
        %v1396 = vadd.f32 %v1206, %v1395
        %v1397 = vpop.f32.mrb[0].mxu0
        %1398 = vmatprep.mubr.f32.mxu0 %v787
        %1399 = vmatmul.mubr.f32.gmra.mrb[0].mxu0 %v786
        %v1400 = vpop.f32.mrb[0].mxu0
        %v1401 = vadd.f32 %v1211, %v1400
        %v1402 = vpop.f32.mrb[0].mxu0
        %1403 = vmatprep.mubr.f32.mxu0 %v796
        %1404 = vmatmul.mubr.f32.gmra.mrb[0].mxu0 %v795
        %v1405 = vpop.f32.mrb[0].mxu0
        %v1406 = vadd.f32 %v1216, %v1405
        %v1407 = vpop.f32.mrb[0].mxu0
        %1408 = vmatprep.mubr.f32.mxu0 %v805
        %1409 = vmatmul.mubr.f32.gmra.mrb[0].mxu0 %v804
        %v1410 = vpop.f32.mrb[0].mxu0
        %v1411 = vadd.f32 %v1221, %v1410
        %v1412 = vpop.f32.mrb[0].mxu0
        %1413 = vmatprep.mubr.f32.mxu0 %v814
        %1414 = vmatmul.mubr.f32.gmra.mrb[0].mxu0 %v813
        %v1415 = vpop.f32.mrb[0].mxu0
        %v1416 = vadd.f32 %v1226, %v1415
        %v1417 = vpop.f32.mrb[0].mxu0
        %1418 = vmatprep.mubr.f32.mxu0 %v823
        %1419 = vmatmul.mubr.f32.gmra.mrb[0].mxu0 %v822
        %v1420 = vpop.f32.mrb[0].mxu0
        %v1421 = vadd.f32 %v1231, %v1420
        %v1422 = vpop.f32.mrb[0].mxu0
        %1423 = vmatprep.mubr.f32.mxu0 %v832
        %1424 = vmatmul.mubr.f32.gmra.mrb[0].mxu0 %v831
        %v1425 = vpop.f32.mrb[0].mxu0
        %v1426 = vadd.f32 %v1236, %v1425
        %v1427 = vpop.f32.mrb[0].mxu0
        %1428 = vmatprep.mubr.f32.mxu0 %v841
        %1429 = vmatmul.mubr.f32.gmra.mrb[0].mxu0 %v840
        %v1430 = vpop.f32.mrb[0].mxu0
        %v1431 = vadd.f32 %v1241, %v1430
        %v1432 = vpop.f32.mrb[0].mxu0
        %1433 = vmatprep.mubr.f32.mxu0 %v850
        %1434 = vmatmul.mubr.f32.gmra.mrb[0].mxu0 %v849
        %v1435 = vpop.f32.mrb[0].mxu0
        %v1436 = vadd.f32 %v1246, %v1435
        %v1437 = vpop.f32.mrb[0].mxu0
        %1438 = vmatprep.mubr.f32.mxu0 %v859
        %1439 = vmatmul.mubr.f32.gmra.mrb[0].mxu0 %v858
        %v1440 = vpop.f32.mrb[0].mxu0
        %v1441 = vadd.f32 %v1251, %v1440
        %v1442 = vpop.f32.mrb[0].mxu0
        %1443 = vmatprep.mubr.f32.mxu0 %v868
        %1444 = vmatmul.mubr.f32.gmra.mrb[0].mxu0 %v867
        %v1445 = vpop.f32.mrb[0].mxu0
        %v1446 = vadd.f32 %v1256, %v1445
        %v1447 = vpop.f32.mrb[0].mxu0
        %1448 = vmatprep.mubr.f32.mxu0 %v877
        %1449 = vmatmul.mubr.f32.gmra.mrb[0].mxu0 %v876
        %v1450 = vpop.f32.mrb[0].mxu0
        %v1451 = vadd.f32 %v1261, %v1450
        %v1452 = vpop.f32.mrb[0].mxu0
        %1453 = vmatprep.mubr.f32.mxu0 %v886
        %1454 = vmatmul.mubr.f32.gmra.mrb[0].mxu0 %v885
        %v1455 = vpop.f32.mrb[0].mxu0
        %v1456 = vadd.f32 %v1266, %v1455
        %v1457 = vpop.f32.mrb[0].mxu0
        %1458 = vmatprep.mubr.f32.mxu0 %v895
        %1459 = vmatmul.mubr.f32.gmra.mrb[0].mxu0 %v894
        %v1460 = vpop.f32.mrb[0].mxu0
        %v1461 = vadd.f32 %v1271, %v1460
        %v1462 = vpop.f32.mrb[0].mxu0
        %1463 = vmatprep.mubr.f32.mxu0 %v904
        %1464 = vmatmul.mubr.f32.gmra.mrb[0].mxu0 %v903
        %v1465 = vpop.f32.mrb[0].mxu0
        %v1466 = vadd.f32 %v1276, %v1465
        %v1467 = vpop.f32.mrb[0].mxu0
        %1468 = vmatprep.mubr.f32.mxu0 %v913
        %1469 = vmatmul.mubr.f32.gmra.mrb[0].mxu0 %v912
        %v1470 = vpop.f32.mrb[0].mxu0
        %v1471 = vadd.f32 %v1281, %v1470
        %v1472 = vpop.f32.mrb[0].mxu0
        %1473 = vmatprep.mubr.f32.mxu0 %v922
        %1474 = vmatmul.mubr.f32.gmra.mrb[0].mxu0 %v921
        %v1475 = vpop.f32.mrb[0].mxu0
        %v1476 = vadd.f32 %v1286, %v1475
        %v1477 = vpop.f32.mrb[0].mxu0
        %1478 = vmatprep.mubr.f32.mxu0 %v931
        %1479 = vmatmul.mubr.f32.gmra.mrb[0].mxu0 %v930
        %v1480 = vpop.f32.mrb[0].mxu0
        %v1481 = vadd.f32 %v1291, %v1480
        %v1482 = vpop.f32.mrb[0].mxu0
        %1483 = vmatprep.mubr.f32.mxu0 %v940
        %1484 = vmatmul.mubr.f32.gmra.mrb[0].mxu0 %v939
        %v1485 = vpop.f32.mrb[0].mxu0
        %v1486 = vadd.f32 %v1296, %v1485
        %v1487 = vpop.f32.mrb[0].mxu0
        %1488 = vmatprep.mubr.f32.mxu0 %v949
        %1489 = vmatmul.mubr.f32.gmra.mrb[0].mxu0 %v948
        %v1490 = vpop.f32.mrb[0].mxu0
        %v1491 = vadd.f32 %v1301, %v1490
        %v1492 = vpop.f32.mrb[0].mxu0
        %1493 = vmatprep.mubr.f32.mxu0 %v958
        %1494 = vmatmul.mubr.f32.gmra.mrb[0].mxu0 %v957
        %v1495 = vpop.f32.mrb[0].mxu0
        %v1496 = vadd.f32 %v1306, %v1495
        %v1497 = vpop.f32.mrb[0].mxu0
        %1498 = vmatprep.mubr.f32.mxu0 %v967
        %1499 = vmatmul.mubr.f32.gmra.mrb[0].mxu0 %v966
        %v1500 = vpop.f32.mrb[0].mxu0
        %v1501 = vadd.f32 %v1311, %v1500
        %v1502 = vpop.f32.mrb[0].mxu0
        %1503 = vdwg.mxu0
        %1504 = vmatprep.subr.mxu0 0.0
        %1505 = vmatpush1.msra.mxu0 %v1037
        %1506 = vmatprep.subr.mxu0 0.0
        %1507 = vmatpush1.msra.mxu0 %v1038
        %1508 = vmatprep.subr.mxu0 0.0
        %1509 = vmatpush1.msra.mxu0 %v1039
        %1510 = vmatprep.subr.mxu0 0.0
        %1511 = vmatpush1.msra.mxu0 %v1040
        %1512 = vmatprep.subr.mxu0 0.0
        %1513 = vmatpush1.msra.mxu0 %v1041
        %1514 = vmatprep.subr.mxu0 0.0
        %1515 = vmatpush1.msra.mxu0 %v1042
        %1516 = vmatprep.subr.mxu0 0.0
        %1517 = vmatpush1.msra.mxu0 %v1043
        %1518 = vmatprep.subr.mxu0 0.0
        %1519 = vmatpush1.msra.mxu0 %v1044
        %1520 = vmatprep.subr.mxu0 0.0
        %1521 = vmatpush1.msra.mxu0 %v1045
        %1522 = vmatprep.subr.mxu0 0.0
        %1523 = vmatpush1.msra.mxu0 %v1046
        %1524 = vmatprep.subr.mxu0 0.0
        %1525 = vmatpush1.msra.mxu0 %v1047
        %1526 = vmatprep.subr.mxu0 0.0
        %1527 = vmatpush1.msra.mxu0 %v1048
        %1528 = vmatprep.subr.mxu0 0.0
        %1529 = vmatpush1.msra.mxu0 %v1049
        %1530 = vmatprep.subr.mxu0 0.0
        %1531 = vmatpush1.msra.mxu0 %v1050
        %1532 = vmatprep.subr.mxu0 0.0
        %1533 = vmatpush1.msra.mxu0 %v1051
        %1534 = vmatprep.subr.mxu0 0.0
        %1535 = vmatpush1.msra.mxu0 %v1052
        %1536 = vmatprep.subr.mxu0 0.0
        %1537 = vmatpush1.msra.mxu0 %v1053
        %1538 = vmatprep.subr.mxu0 0.0
        %1539 = vmatpush1.msra.mxu0 %v1054
        %1540 = vmatprep.subr.mxu0 0.0
        %1541 = vmatpush1.msra.mxu0 %v1055
        %1542 = vmatprep.subr.mxu0 0.0
        %1543 = vmatpush1.msra.mxu0 %v1056
        %1544 = vmatprep.subr.mxu0 0.0
        %1545 = vmatpush1.msra.mxu0 %v1057
        %1546 = vmatprep.subr.mxu0 0.0
        %1547 = vmatpush1.msra.mxu0 %v1058
        %1548 = vmatprep.subr.mxu0 0.0
        %1549 = vmatpush1.msra.mxu0 %v1059
        %1550 = vmatprep.subr.mxu0 0.0
        %1551 = vmatpush1.msra.mxu0 %v1060
        %1552 = vmatprep.subr.mxu0 0.0
        %1553 = vmatpush1.msra.mxu0 %v1061
        %1554 = vmatprep.subr.mxu0 0.0
        %1555 = vmatpush1.msra.mxu0 %v1062
        %1556 = vmatprep.subr.mxu0 0.0
        %1557 = vmatpush1.msra.mxu0 %v1063
        %1558 = vmatprep.subr.mxu0 0.0
        %1559 = vmatpush1.msra.mxu0 %v1064
        %1560 = vmatprep.subr.mxu0 0.0
        %1561 = vmatpush1.msra.mxu0 %v1065
        %1562 = vmatprep.subr.mxu0 0.0
        %1563 = vmatpush1.msra.mxu0 %v1066
        %1564 = vmatprep.subr.mxu0 0.0
        %1565 = vmatpush1.msra.mxu0 %v1067
        %1566 = vmatprep.subr.mxu0 0.0
        %1567 = vmatpush1.msra.mxu0 %v1068
        %1568 = vmatprep.mubr.f32.mxu0 %v753
        %1569 = vmatmul.mubr.f32.gmra.mrb[0].mxu0 %v752
        %v1570 = vpop.f32.mrb[0].mxu0
        %v1571 = vadd.f32 %v1381, %v1570
        %v1572 = vpop.f32.mrb[0].mxu0
        %1573 = vmatprep.mubr.f32.mxu0 %v762
        %1574 = vmatmul.mubr.f32.gmra.mrb[0].mxu0 %v761
        %v1575 = vpop.f32.mrb[0].mxu0
        %v1576 = vadd.f32 %v1386, %v1575
        %v1577 = vpop.f32.mrb[0].mxu0
        %1578 = vmatprep.mubr.f32.mxu0 %v771
        %1579 = vmatmul.mubr.f32.gmra.mrb[0].mxu0 %v770
        %v1580 = vpop.f32.mrb[0].mxu0
        %v1581 = vadd.f32 %v1391, %v1580
        %v1582 = vpop.f32.mrb[0].mxu0
        %1583 = vmatprep.mubr.f32.mxu0 %v780
        %1584 = vmatmul.mubr.f32.gmra.mrb[0].mxu0 %v779
        %v1585 = vpop.f32.mrb[0].mxu0
        %v1586 = vadd.f32 %v1396, %v1585
        %v1587 = vpop.f32.mrb[0].mxu0
        %1588 = vmatprep.mubr.f32.mxu0 %v789
        %1589 = vmatmul.mubr.f32.gmra.mrb[0].mxu0 %v788
        %v1590 = vpop.f32.mrb[0].mxu0
        %v1591 = vadd.f32 %v1401, %v1590
        %v1592 = vpop.f32.mrb[0].mxu0
        %1593 = vmatprep.mubr.f32.mxu0 %v798
        %1594 = vmatmul.mubr.f32.gmra.mrb[0].mxu0 %v797
        %v1595 = vpop.f32.mrb[0].mxu0
        %v1596 = vadd.f32 %v1406, %v1595
        %v1597 = vpop.f32.mrb[0].mxu0
        %1598 = vmatprep.mubr.f32.mxu0 %v807
        %1599 = vmatmul.mubr.f32.gmra.mrb[0].mxu0 %v806
        %v1600 = vpop.f32.mrb[0].mxu0
        %v1601 = vadd.f32 %v1411, %v1600
        %v1602 = vpop.f32.mrb[0].mxu0
        %1603 = vmatprep.mubr.f32.mxu0 %v816
        %1604 = vmatmul.mubr.f32.gmra.mrb[0].mxu0 %v815
        %v1605 = vpop.f32.mrb[0].mxu0
        %v1606 = vadd.f32 %v1416, %v1605
        %v1607 = vpop.f32.mrb[0].mxu0
        %1608 = vmatprep.mubr.f32.mxu0 %v825
        %1609 = vmatmul.mubr.f32.gmra.mrb[0].mxu0 %v824
        %v1610 = vpop.f32.mrb[0].mxu0
        %v1611 = vadd.f32 %v1421, %v1610
        %v1612 = vpop.f32.mrb[0].mxu0
        %1613 = vmatprep.mubr.f32.mxu0 %v834
        %1614 = vmatmul.mubr.f32.gmra.mrb[0].mxu0 %v833
        %v1615 = vpop.f32.mrb[0].mxu0
        %v1616 = vadd.f32 %v1426, %v1615
        %v1617 = vpop.f32.mrb[0].mxu0
        %1618 = vmatprep.mubr.f32.mxu0 %v843
        %1619 = vmatmul.mubr.f32.gmra.mrb[0].mxu0 %v842
        %v1620 = vpop.f32.mrb[0].mxu0
        %v1621 = vadd.f32 %v1431, %v1620
        %v1622 = vpop.f32.mrb[0].mxu0
        %1623 = vmatprep.mubr.f32.mxu0 %v852
        %1624 = vmatmul.mubr.f32.gmra.mrb[0].mxu0 %v851
        %v1625 = vpop.f32.mrb[0].mxu0
        %v1626 = vadd.f32 %v1436, %v1625
        %v1627 = vpop.f32.mrb[0].mxu0
        %1628 = vmatprep.mubr.f32.mxu0 %v861
        %1629 = vmatmul.mubr.f32.gmra.mrb[0].mxu0 %v860
        %v1630 = vpop.f32.mrb[0].mxu0
        %v1631 = vadd.f32 %v1441, %v1630
        %v1632 = vpop.f32.mrb[0].mxu0
        %1633 = vmatprep.mubr.f32.mxu0 %v870
        %1634 = vmatmul.mubr.f32.gmra.mrb[0].mxu0 %v869
        %v1635 = vpop.f32.mrb[0].mxu0
        %v1636 = vadd.f32 %v1446, %v1635
        %v1637 = vpop.f32.mrb[0].mxu0
        %1638 = vmatprep.mubr.f32.mxu0 %v879
        %1639 = vmatmul.mubr.f32.gmra.mrb[0].mxu0 %v878
        %v1640 = vpop.f32.mrb[0].mxu0
        %v1641 = vadd.f32 %v1451, %v1640
        %v1642 = vpop.f32.mrb[0].mxu0
        %1643 = vmatprep.mubr.f32.mxu0 %v888
        %1644 = vmatmul.mubr.f32.gmra.mrb[0].mxu0 %v887
        %v1645 = vpop.f32.mrb[0].mxu0
        %v1646 = vadd.f32 %v1456, %v1645
        %v1647 = vpop.f32.mrb[0].mxu0
        %1648 = vmatprep.mubr.f32.mxu0 %v897
        %1649 = vmatmul.mubr.f32.gmra.mrb[0].mxu0 %v896
        %v1650 = vpop.f32.mrb[0].mxu0
        %v1651 = vadd.f32 %v1461, %v1650
        %v1652 = vpop.f32.mrb[0].mxu0
        %1653 = vmatprep.mubr.f32.mxu0 %v906
        %1654 = vmatmul.mubr.f32.gmra.mrb[0].mxu0 %v905
        %v1655 = vpop.f32.mrb[0].mxu0
        %v1656 = vadd.f32 %v1466, %v1655
        %v1657 = vpop.f32.mrb[0].mxu0
        %1658 = vmatprep.mubr.f32.mxu0 %v915
        %1659 = vmatmul.mubr.f32.gmra.mrb[0].mxu0 %v914
        %v1660 = vpop.f32.mrb[0].mxu0
        %v1661 = vadd.f32 %v1471, %v1660
        %v1662 = vpop.f32.mrb[0].mxu0
        %1663 = vmatprep.mubr.f32.mxu0 %v924
        %1664 = vmatmul.mubr.f32.gmra.mrb[0].mxu0 %v923
        %v1665 = vpop.f32.mrb[0].mxu0
        %v1666 = vadd.f32 %v1476, %v1665
        %v1667 = vpop.f32.mrb[0].mxu0
        %1668 = vmatprep.mubr.f32.mxu0 %v933
        %1669 = vmatmul.mubr.f32.gmra.mrb[0].mxu0 %v932
        %v1670 = vpop.f32.mrb[0].mxu0
        %v1671 = vadd.f32 %v1481, %v1670
        %v1672 = vpop.f32.mrb[0].mxu0
        %1673 = vmatprep.mubr.f32.mxu0 %v942
        %1674 = vmatmul.mubr.f32.gmra.mrb[0].mxu0 %v941
        %v1675 = vpop.f32.mrb[0].mxu0
        %v1676 = vadd.f32 %v1486, %v1675
        %v1677 = vpop.f32.mrb[0].mxu0
        %1678 = vmatprep.mubr.f32.mxu0 %v951
        %1679 = vmatmul.mubr.f32.gmra.mrb[0].mxu0 %v950
        %v1680 = vpop.f32.mrb[0].mxu0
        %v1681 = vadd.f32 %v1491, %v1680
        %v1682 = vpop.f32.mrb[0].mxu0
        %1683 = vmatprep.mubr.f32.mxu0 %v960
        %1684 = vmatmul.mubr.f32.gmra.mrb[0].mxu0 %v959
        %v1685 = vpop.f32.mrb[0].mxu0
        %v1686 = vadd.f32 %v1496, %v1685
        %v1687 = vpop.f32.mrb[0].mxu0
        %1688 = vmatprep.mubr.f32.mxu0 %v969
        %1689 = vmatmul.mubr.f32.gmra.mrb[0].mxu0 %v968
        %v1690 = vpop.f32.mrb[0].mxu0
        %v1691 = vadd.f32 %v1501, %v1690
        %v1692 = vpop.f32.mrb[0].mxu0
        %1693 = vdwg.mxu0
        %1694 = vmatprep.subr.mxu0 0.0
        %1695 = vmatpush1.msra.mxu0 %v1069
        %1696 = vmatprep.subr.mxu0 0.0
        %1697 = vmatpush1.msra.mxu0 %v1070
        %1698 = vmatprep.subr.mxu0 0.0
        %1699 = vmatpush1.msra.mxu0 %v1071
        %1700 = vmatprep.subr.mxu0 0.0
        %1701 = vmatpush1.msra.mxu0 %v1072
        %1702 = vmatprep.subr.mxu0 0.0
        %1703 = vmatpush1.msra.mxu0 %v1073
        %1704 = vmatprep.subr.mxu0 0.0
        %1705 = vmatpush1.msra.mxu0 %v1074
        %1706 = vmatprep.subr.mxu0 0.0
        %1707 = vmatpush1.msra.mxu0 %v1075
        %1708 = vmatprep.subr.mxu0 0.0
        %1709 = vmatpush1.msra.mxu0 %v1076
        %1710 = vmatprep.subr.mxu0 0.0
        %1711 = vmatpush1.msra.mxu0 %v1077
        %1712 = vmatprep.subr.mxu0 0.0
        %1713 = vmatpush1.msra.mxu0 %v1078
        %1714 = vmatprep.subr.mxu0 0.0
        %1715 = vmatpush1.msra.mxu0 %v1079
        %1716 = vmatprep.subr.mxu0 0.0
        %1717 = vmatpush1.msra.mxu0 %v1080
        %1718 = vmatprep.subr.mxu0 0.0
        %1719 = vmatpush1.msra.mxu0 %v1081
        %1720 = vmatprep.subr.mxu0 0.0
        %1721 = vmatpush1.msra.mxu0 %v1082
        %1722 = vmatprep.subr.mxu0 0.0
        %1723 = vmatpush1.msra.mxu0 %v1083
        %1724 = vmatprep.subr.mxu0 0.0
        %1725 = vmatpush1.msra.mxu0 %v1084
        %1726 = vmatprep.subr.mxu0 0.0
        %1727 = vmatpush1.msra.mxu0 %v1085
        %1728 = vmatprep.subr.mxu0 0.0
        %1729 = vmatpush1.msra.mxu0 %v1086
        %1730 = vmatprep.subr.mxu0 0.0
        %1731 = vmatpush1.msra.mxu0 %v1087
        %1732 = vmatprep.subr.mxu0 0.0
        %1733 = vmatpush1.msra.mxu0 %v1088
        %1734 = vmatprep.subr.mxu0 0.0
        %1735 = vmatpush1.msra.mxu0 %v1089
        %1736 = vmatprep.subr.mxu0 0.0
        %1737 = vmatpush1.msra.mxu0 %v1090
        %1738 = vmatprep.subr.mxu0 0.0
        %1739 = vmatpush1.msra.mxu0 %v1091
        %1740 = vmatprep.subr.mxu0 0.0
        %1741 = vmatpush1.msra.mxu0 %v1092
        %1742 = vmatprep.subr.mxu0 0.0
        %1743 = vmatpush1.msra.mxu0 %v1093
        %1744 = vmatprep.subr.mxu0 0.0
        %1745 = vmatpush1.msra.mxu0 %v1094
        %1746 = vmatprep.subr.mxu0 0.0
        %1747 = vmatpush1.msra.mxu0 %v1095
        %1748 = vmatprep.subr.mxu0 0.0
        %1749 = vmatpush1.msra.mxu0 %v1096
        %1750 = vmatprep.subr.mxu0 0.0
        %1751 = vmatpush1.msra.mxu0 %v1097
        %1752 = vmatprep.subr.mxu0 0.0
        %1753 = vmatpush1.msra.mxu0 %v1098
        %1754 = vmatprep.subr.mxu0 0.0
        %1755 = vmatpush1.msra.mxu0 %v1099
        %1756 = vmatprep.subr.mxu0 0.0
        %1757 = vmatpush1.msra.mxu0 %v1100
        %1758 = vmatprep.mubr.f32.mxu0 %v755
        %1759 = vmatmul.mubr.f32.gmra.mrb[0].mxu0 %v754
        %v1760 = vpop.f32.mrb[0].mxu0
        %v1761 = vadd.f32 %v1571, %v1760
        %v1762 = vpop.f32.mrb[0].mxu0
        %1763 = vmatprep.mubr.f32.mxu0 %v764
        %1764 = vmatmul.mubr.f32.gmra.mrb[0].mxu0 %v763
        %v1765 = vpop.f32.mrb[0].mxu0
        %v1766 = vadd.f32 %v1576, %v1765
        %v1767 = vpop.f32.mrb[0].mxu0
        %1768 = vmatprep.mubr.f32.mxu0 %v773
        %1769 = vmatmul.mubr.f32.gmra.mrb[0].mxu0 %v772
        %v1770 = vpop.f32.mrb[0].mxu0
        %v1771 = vadd.f32 %v1581, %v1770
        %v1772 = vpop.f32.mrb[0].mxu0
        %1773 = vmatprep.mubr.f32.mxu0 %v782
        %1774 = vmatmul.mubr.f32.gmra.mrb[0].mxu0 %v781
        %v1775 = vpop.f32.mrb[0].mxu0
        %v1776 = vadd.f32 %v1586, %v1775
        %v1777 = vpop.f32.mrb[0].mxu0
        %1778 = vmatprep.mubr.f32.mxu0 %v791
        %1779 = vmatmul.mubr.f32.gmra.mrb[0].mxu0 %v790
        %v1780 = vpop.f32.mrb[0].mxu0
        %v1781 = vadd.f32 %v1591, %v1780
        %v1782 = vpop.f32.mrb[0].mxu0
        %1783 = vmatprep.mubr.f32.mxu0 %v800
        %1784 = vmatmul.mubr.f32.gmra.mrb[0].mxu0 %v799
        %v1785 = vpop.f32.mrb[0].mxu0
        %v1786 = vadd.f32 %v1596, %v1785
        %v1787 = vpop.f32.mrb[0].mxu0
        %1788 = vmatprep.mubr.f32.mxu0 %v809
        %1789 = vmatmul.mubr.f32.gmra.mrb[0].mxu0 %v808
        %v1790 = vpop.f32.mrb[0].mxu0
        %v1791 = vadd.f32 %v1601, %v1790
        %v1792 = vpop.f32.mrb[0].mxu0
        %1793 = vmatprep.mubr.f32.mxu0 %v818
        %1794 = vmatmul.mubr.f32.gmra.mrb[0].mxu0 %v817
        %v1795 = vpop.f32.mrb[0].mxu0
        %v1796 = vadd.f32 %v1606, %v1795
        %v1797 = vpop.f32.mrb[0].mxu0
        %1798 = vmatprep.mubr.f32.mxu0 %v827
        %1799 = vmatmul.mubr.f32.gmra.mrb[0].mxu0 %v826
        %v1800 = vpop.f32.mrb[0].mxu0
        %v1801 = vadd.f32 %v1611, %v1800
        %v1802 = vpop.f32.mrb[0].mxu0
        %1803 = vmatprep.mubr.f32.mxu0 %v836
        %1804 = vmatmul.mubr.f32.gmra.mrb[0].mxu0 %v835
        %v1805 = vpop.f32.mrb[0].mxu0
        %v1806 = vadd.f32 %v1616, %v1805
        %v1807 = vpop.f32.mrb[0].mxu0
        %1808 = vmatprep.mubr.f32.mxu0 %v845
        %1809 = vmatmul.mubr.f32.gmra.mrb[0].mxu0 %v844
        %v1810 = vpop.f32.mrb[0].mxu0
        %v1811 = vadd.f32 %v1621, %v1810
        %v1812 = vpop.f32.mrb[0].mxu0
        %1813 = vmatprep.mubr.f32.mxu0 %v854
        %1814 = vmatmul.mubr.f32.gmra.mrb[0].mxu0 %v853
        %v1815 = vpop.f32.mrb[0].mxu0
        %v1816 = vadd.f32 %v1626, %v1815
        %v1817 = vpop.f32.mrb[0].mxu0
        %1818 = vmatprep.mubr.f32.mxu0 %v863
        %1819 = vmatmul.mubr.f32.gmra.mrb[0].mxu0 %v862
        %v1820 = vpop.f32.mrb[0].mxu0
        %v1821 = vadd.f32 %v1631, %v1820
        %v1822 = vpop.f32.mrb[0].mxu0
        %1823 = vmatprep.mubr.f32.mxu0 %v872
        %1824 = vmatmul.mubr.f32.gmra.mrb[0].mxu0 %v871
        %v1825 = vpop.f32.mrb[0].mxu0
        %v1826 = vadd.f32 %v1636, %v1825
        %v1827 = vpop.f32.mrb[0].mxu0
        %1828 = vmatprep.mubr.f32.mxu0 %v881
        %1829 = vmatmul.mubr.f32.gmra.mrb[0].mxu0 %v880
        %v1830 = vpop.f32.mrb[0].mxu0
        %v1831 = vadd.f32 %v1641, %v1830
        %v1832 = vpop.f32.mrb[0].mxu0
        %1833 = vmatprep.mubr.f32.mxu0 %v890
        %1834 = vmatmul.mubr.f32.gmra.mrb[0].mxu0 %v889
        %v1835 = vpop.f32.mrb[0].mxu0
        %v1836 = vadd.f32 %v1646, %v1835
        %v1837 = vpop.f32.mrb[0].mxu0
        %1838 = vmatprep.mubr.f32.mxu0 %v899
        %1839 = vmatmul.mubr.f32.gmra.mrb[0].mxu0 %v898
        %v1840 = vpop.f32.mrb[0].mxu0
        %v1841 = vadd.f32 %v1651, %v1840
        %v1842 = vpop.f32.mrb[0].mxu0
        %1843 = vmatprep.mubr.f32.mxu0 %v908
        %1844 = vmatmul.mubr.f32.gmra.mrb[0].mxu0 %v907
        %v1845 = vpop.f32.mrb[0].mxu0
        %v1846 = vadd.f32 %v1656, %v1845
        %v1847 = vpop.f32.mrb[0].mxu0
        %1848 = vmatprep.mubr.f32.mxu0 %v917
        %1849 = vmatmul.mubr.f32.gmra.mrb[0].mxu0 %v916
        %v1850 = vpop.f32.mrb[0].mxu0
        %v1851 = vadd.f32 %v1661, %v1850
        %v1852 = vpop.f32.mrb[0].mxu0
        %1853 = vmatprep.mubr.f32.mxu0 %v926
        %1854 = vmatmul.mubr.f32.gmra.mrb[0].mxu0 %v925
        %v1855 = vpop.f32.mrb[0].mxu0
        %v1856 = vadd.f32 %v1666, %v1855
        %v1857 = vpop.f32.mrb[0].mxu0
        %1858 = vmatprep.mubr.f32.mxu0 %v935
        %1859 = vmatmul.mubr.f32.gmra.mrb[0].mxu0 %v934
        %v1860 = vpop.f32.mrb[0].mxu0
        %v1861 = vadd.f32 %v1671, %v1860
        %v1862 = vpop.f32.mrb[0].mxu0
        %1863 = vmatprep.mubr.f32.mxu0 %v944
        %1864 = vmatmul.mubr.f32.gmra.mrb[0].mxu0 %v943
        %v1865 = vpop.f32.mrb[0].mxu0
        %v1866 = vadd.f32 %v1676, %v1865
        %v1867 = vpop.f32.mrb[0].mxu0
        %1868 = vmatprep.mubr.f32.mxu0 %v953
        %1869 = vmatmul.mubr.f32.gmra.mrb[0].mxu0 %v952
        %v1870 = vpop.f32.mrb[0].mxu0
        %v1871 = vadd.f32 %v1681, %v1870
        %v1872 = vpop.f32.mrb[0].mxu0
        %1873 = vmatprep.mubr.f32.mxu0 %v962
        %1874 = vmatmul.mubr.f32.gmra.mrb[0].mxu0 %v961
        %v1875 = vpop.f32.mrb[0].mxu0
        %v1876 = vadd.f32 %v1686, %v1875
        %v1877 = vpop.f32.mrb[0].mxu0
        %1878 = vmatprep.mubr.f32.mxu0 %v971
        %1879 = vmatmul.mubr.f32.gmra.mrb[0].mxu0 %v970
        %v1880 = vpop.f32.mrb[0].mxu0
        %v1881 = vadd.f32 %v1691, %v1880
        %v1882 = vpop.f32.mrb[0].mxu0
        %1883 = vdwg.mxu0
        %1884 = vmatprep.subr.mxu0 0.0
        %1885 = vmatpush1.msra.mxu0 %v1101
        %1886 = vmatprep.subr.mxu0 0.0
        %1887 = vmatpush1.msra.mxu0 %v1102
        %1888 = vmatprep.subr.mxu0 0.0
        %1889 = vmatpush1.msra.mxu0 %v1103
        %1890 = vmatprep.subr.mxu0 0.0
        %1891 = vmatpush1.msra.mxu0 %v1104
        %1892 = vmatprep.subr.mxu0 0.0
        %1893 = vmatpush1.msra.mxu0 %v1105
        %1894 = vmatprep.subr.mxu0 0.0
        %1895 = vmatpush1.msra.mxu0 %v1106
        %1896 = vmatprep.subr.mxu0 0.0
        %1897 = vmatpush1.msra.mxu0 %v1107
        %1898 = vmatprep.subr.mxu0 0.0
        %1899 = vmatpush1.msra.mxu0 %v1108
        %1900 = vmatprep.subr.mxu0 0.0
        %1901 = vmatpush1.msra.mxu0 %v1109
        %1902 = vmatprep.subr.mxu0 0.0
        %1903 = vmatpush1.msra.mxu0 %v1110
        %1904 = vmatprep.subr.mxu0 0.0
        %1905 = vmatpush1.msra.mxu0 %v1111
        %1906 = vmatprep.subr.mxu0 0.0
        %1907 = vmatpush1.msra.mxu0 %v1112
        %1908 = vmatprep.subr.mxu0 0.0
        %1909 = vmatpush1.msra.mxu0 %v1113
        %1910 = vmatprep.subr.mxu0 0.0
        %1911 = vmatpush1.msra.mxu0 %v1114
        %1912 = vmatprep.subr.mxu0 0.0
        %1913 = vmatpush1.msra.mxu0 %v1115
        %1914 = vmatprep.subr.mxu0 0.0
        %1915 = vmatpush1.msra.mxu0 %v1116
        %1916 = vmatprep.subr.mxu0 0.0
        %1917 = vmatpush1.msra.mxu0 0.0
        %1918 = vmatprep.subr.mxu0 0.0
        %1919 = vmatpush1.msra.mxu0 0.0
        %1920 = vmatprep.subr.mxu0 0.0
        %1921 = vmatpush1.msra.mxu0 0.0
        %1922 = vmatprep.subr.mxu0 0.0
        %1923 = vmatpush1.msra.mxu0 0.0
        %1924 = vmatprep.subr.mxu0 0.0
        %1925 = vmatpush1.msra.mxu0 0.0
        %1926 = vmatprep.subr.mxu0 0.0
        %1927 = vmatpush1.msra.mxu0 0.0
        %1928 = vmatprep.subr.mxu0 0.0
        %1929 = vmatpush1.msra.mxu0 0.0
        %1930 = vmatprep.subr.mxu0 0.0
        %1931 = vmatpush1.msra.mxu0 0.0
        %1932 = vmatprep.subr.mxu0 0.0
        %1933 = vmatpush1.msra.mxu0 0.0
        %1934 = vmatprep.subr.mxu0 0.0
        %1935 = vmatpush1.msra.mxu0 0.0
        %1936 = vmatprep.subr.mxu0 0.0
        %1937 = vmatpush1.msra.mxu0 0.0
        %1938 = vmatprep.subr.mxu0 0.0
        %1939 = vmatpush1.msra.mxu0 0.0
        %1940 = vmatprep.subr.mxu0 0.0
        %1941 = vmatpush1.msra.mxu0 0.0
        %1942 = vmatprep.subr.mxu0 0.0
        %1943 = vmatpush1.msra.mxu0 0.0
        %1944 = vmatprep.subr.mxu0 0.0
        %1945 = vmatpush1.msra.mxu0 0.0
        %1946 = vmatprep.subr.mxu0 0.0
        %1947 = vmatpush1.msra.mxu0 0.0
        %1948 = vmatprep.mubr.f32.mxu0 0.0
        %1949 = vmatmul.mubr.f32.gmra.mrb[0].mxu0 %v756
        %v1950 = vpop.f32.mrb[0].mxu0
        %v1951 = vadd.f32 %v1761, %v1950
        %v1952 = vpop.f32.mrb[0].mxu0
        %1953 = vmatprep.mubr.f32.mxu0 0.0
        %1954 = vmatmul.mubr.f32.gmra.mrb[0].mxu0 %v765
        %v1955 = vpop.f32.mrb[0].mxu0
        %v1956 = vadd.f32 %v1766, %v1955
        %v1957 = vpop.f32.mrb[0].mxu0
        %1958 = vmatprep.mubr.f32.mxu0 0.0
        %1959 = vmatmul.mubr.f32.gmra.mrb[0].mxu0 %v774
        %v1960 = vpop.f32.mrb[0].mxu0
        %v1961 = vadd.f32 %v1771, %v1960
        %v1962 = vpop.f32.mrb[0].mxu0
        %1963 = vmatprep.mubr.f32.mxu0 0.0
        %1964 = vmatmul.mubr.f32.gmra.mrb[0].mxu0 %v783
        %v1965 = vpop.f32.mrb[0].mxu0
        %v1966 = vadd.f32 %v1776, %v1965
        %v1967 = vpop.f32.mrb[0].mxu0
        %1968 = vmatprep.mubr.f32.mxu0 0.0
        %1969 = vmatmul.mubr.f32.gmra.mrb[0].mxu0 %v792
        %v1970 = vpop.f32.mrb[0].mxu0
        %v1971 = vadd.f32 %v1781, %v1970
        %v1972 = vpop.f32.mrb[0].mxu0
        %1973 = vmatprep.mubr.f32.mxu0 0.0
        %1974 = vmatmul.mubr.f32.gmra.mrb[0].mxu0 %v801
        %v1975 = vpop.f32.mrb[0].mxu0
        %v1976 = vadd.f32 %v1786, %v1975
        %v1977 = vpop.f32.mrb[0].mxu0
        %1978 = vmatprep.mubr.f32.mxu0 0.0
        %1979 = vmatmul.mubr.f32.gmra.mrb[0].mxu0 %v810
        %v1980 = vpop.f32.mrb[0].mxu0
        %v1981 = vadd.f32 %v1791, %v1980
        %v1982 = vpop.f32.mrb[0].mxu0
        %1983 = vmatprep.mubr.f32.mxu0 0.0
        %1984 = vmatmul.mubr.f32.gmra.mrb[0].mxu0 %v819
        %v1985 = vpop.f32.mrb[0].mxu0
        %v1986 = vadd.f32 %v1796, %v1985
        %v1987 = vpop.f32.mrb[0].mxu0
        %1988 = vmatprep.mubr.f32.mxu0 0.0
        %1989 = vmatmul.mubr.f32.gmra.mrb[0].mxu0 %v828
        %v1990 = vpop.f32.mrb[0].mxu0
        %v1991 = vadd.f32 %v1801, %v1990
        %v1992 = vpop.f32.mrb[0].mxu0
        %1993 = vmatprep.mubr.f32.mxu0 0.0
        %1994 = vmatmul.mubr.f32.gmra.mrb[0].mxu0 %v837
        %v1995 = vpop.f32.mrb[0].mxu0
        %v1996 = vadd.f32 %v1806, %v1995
        %v1997 = vpop.f32.mrb[0].mxu0
        %1998 = vmatprep.mubr.f32.mxu0 0.0
        %1999 = vmatmul.mubr.f32.gmra.mrb[0].mxu0 %v846
        %v2000 = vpop.f32.mrb[0].mxu0
        %v2001 = vadd.f32 %v1811, %v2000
        %v2002 = vpop.f32.mrb[0].mxu0
        %2003 = vmatprep.mubr.f32.mxu0 0.0
        %2004 = vmatmul.mubr.f32.gmra.mrb[0].mxu0 %v855
        %v2005 = vpop.f32.mrb[0].mxu0
        %v2006 = vadd.f32 %v1816, %v2005
        %v2007 = vpop.f32.mrb[0].mxu0
        %2008 = vmatprep.mubr.f32.mxu0 0.0
        %2009 = vmatmul.mubr.f32.gmra.mrb[0].mxu0 %v864
        %v2010 = vpop.f32.mrb[0].mxu0
        %v2011 = vadd.f32 %v1821, %v2010
        %v2012 = vpop.f32.mrb[0].mxu0
        %2013 = vmatprep.mubr.f32.mxu0 0.0
        %2014 = vmatmul.mubr.f32.gmra.mrb[0].mxu0 %v873
        %v2015 = vpop.f32.mrb[0].mxu0
        %v2016 = vadd.f32 %v1826, %v2015
        %v2017 = vpop.f32.mrb[0].mxu0
        %2018 = vmatprep.mubr.f32.mxu0 0.0
        %2019 = vmatmul.mubr.f32.gmra.mrb[0].mxu0 %v882
        %v2020 = vpop.f32.mrb[0].mxu0
        %v2021 = vadd.f32 %v1831, %v2020
        %v2022 = vpop.f32.mrb[0].mxu0
        %2023 = vmatprep.mubr.f32.mxu0 0.0
        %2024 = vmatmul.mubr.f32.gmra.mrb[0].mxu0 %v891
        %v2025 = vpop.f32.mrb[0].mxu0
        %v2026 = vadd.f32 %v1836, %v2025
        %v2027 = vpop.f32.mrb[0].mxu0
        %2028 = vmatprep.mubr.f32.mxu0 0.0
        %2029 = vmatmul.mubr.f32.gmra.mrb[0].mxu0 %v900
        %v2030 = vpop.f32.mrb[0].mxu0
        %v2031 = vadd.f32 %v1841, %v2030
        %v2032 = vpop.f32.mrb[0].mxu0
        %2033 = vmatprep.mubr.f32.mxu0 0.0
        %2034 = vmatmul.mubr.f32.gmra.mrb[0].mxu0 %v909
        %v2035 = vpop.f32.mrb[0].mxu0
        %v2036 = vadd.f32 %v1846, %v2035
        %v2037 = vpop.f32.mrb[0].mxu0
        %2038 = vmatprep.mubr.f32.mxu0 0.0
        %2039 = vmatmul.mubr.f32.gmra.mrb[0].mxu0 %v918
        %v2040 = vpop.f32.mrb[0].mxu0
        %v2041 = vadd.f32 %v1851, %v2040
        %v2042 = vpop.f32.mrb[0].mxu0
        %2043 = vmatprep.mubr.f32.mxu0 0.0
        %2044 = vmatmul.mubr.f32.gmra.mrb[0].mxu0 %v927
        %v2045 = vpop.f32.mrb[0].mxu0
        %v2046 = vadd.f32 %v1856, %v2045
        %v2047 = vpop.f32.mrb[0].mxu0
        %2048 = vmatprep.mubr.f32.mxu0 0.0
        %2049 = vmatmul.mubr.f32.gmra.mrb[0].mxu0 %v936
        %v2050 = vpop.f32.mrb[0].mxu0
        %v2051 = vadd.f32 %v1861, %v2050
        %v2052 = vpop.f32.mrb[0].mxu0
        %2053 = vmatprep.mubr.f32.mxu0 0.0
        %2054 = vmatmul.mubr.f32.gmra.mrb[0].mxu0 %v945
        %v2055 = vpop.f32.mrb[0].mxu0
        %v2056 = vadd.f32 %v1866, %v2055
        %v2057 = vpop.f32.mrb[0].mxu0
        %2058 = vmatprep.mubr.f32.mxu0 0.0
        %2059 = vmatmul.mubr.f32.gmra.mrb[0].mxu0 %v954
        %v2060 = vpop.f32.mrb[0].mxu0
        %v2061 = vadd.f32 %v1871, %v2060
        %v2062 = vpop.f32.mrb[0].mxu0
        %2063 = vmatprep.mubr.f32.mxu0 0.0
        %2064 = vmatmul.mubr.f32.gmra.mrb[0].mxu0 %v963
        %v2065 = vpop.f32.mrb[0].mxu0
        %v2066 = vadd.f32 %v1876, %v2065
        %v2067 = vpop.f32.mrb[0].mxu0
        %2068 = vmatprep.mubr.f32.mxu0 0.0
        %2069 = vmatmul.mubr.f32.gmra.mrb[0].mxu0 %v972
        %v2070 = vpop.f32.mrb[0].mxu0
        %v2071 = vadd.f32 %v1881, %v2070
        %v2072 = vpop.f32.mrb[0].mxu0
        %2073 = vdwg.mxu0
        %v2074 = vmax.f32 %v1951, 0.0
        %v2075 = vmax.f32 %v1956, 0.0
        %v2076 = vmax.f32 %v1961, 0.0
        %v2077 = vmax.f32 %v1966, 0.0
        %v2078 = vmax.f32 %v1971, 0.0
        %v2079 = vmax.f32 %v1976, 0.0
        %v2080 = vmax.f32 %v1981, 0.0
        %v2081 = vmax.f32 %v1986, 0.0
        %v2082 = vmax.f32 %v1991, 0.0
        %v2083 = vmax.f32 %v1996, 0.0
        %v2084 = vmax.f32 %v2001, 0.0
        %v2085 = vmax.f32 %v2006, 0.0
        %v2086 = vmax.f32 %v2011, 0.0
        %v2087 = vmax.f32 %v2016, 0.0
        %v2088 = vmax.f32 %v2021, 0.0
        %v2089 = vmax.f32 %v2026, 0.0
        %v2090 = vmax.f32 %v2031, 0.0
        %v2091 = vmax.f32 %v2036, 0.0
        %v2092 = vmax.f32 %v2041, 0.0
        %v2093 = vmax.f32 %v2046, 0.0
        %v2094 = vmax.f32 %v2051, 0.0
        %v2095 = vmax.f32 %v2056, 0.0
        %v2096 = vmax.f32 %v2061, 0.0
        %v2097 = vmax.f32 %v2066, 0.0
        %v2098 = vmax.f32 %v2071, 0.0
        %v2099 = vld [vmem:[%s297] sm:$0xff]
        %v2100 = vld [vmem:[%s297 + $0x8] sm:$0xff]
        %v2101 = vld [vmem:[%s297 + $0x10] sm:$0xff]
        %v2102 = vld [vmem:[%s297 + $0x18] sm:$0xff]
        %v2103 = vld [vmem:[%s297 + $0x20] sm:$0xff]
        %v2104 = vld [vmem:[%s297 + $0x28] sm:$0xff]
        %v2105 = vld [vmem:[%s297 + $0x30] sm:$0xff]
        %v2106 = vld [vmem:[%s297 + $0x38] sm:$0xff]
        %v2107 = vld [vmem:[%s297 + $0x40] sm:$0xff]
        %v2108 = vld [vmem:[%s297 + $0x48] sm:$0xff]
        %v2109 = vld [vmem:[%s297 + $0x50] sm:$0xff]
        %v2110 = vld [vmem:[%s297 + $0x58] sm:$0xff]
        %v2111 = vld [vmem:[%s297 + $0x60] sm:$0xff]
        %v2112 = vld [vmem:[%s297 + $0x68] sm:$0xff]
        %v2113 = vld [vmem:[%s297 + $0x70] sm:$0xff]
        %v2114 = vld [vmem:[%s297 + $0x78] sm:$0xff]
        %v2115 = vld [vmem:[%s297 + $0x80] sm:$0xff]
        %v2116 = vld [vmem:[%s297 + $0x88] sm:$0xff]
        %v2117 = vld [vmem:[%s297 + $0x90] sm:$0xff]
        %v2118 = vld [vmem:[%s297 + $0x98] sm:$0xff]
        %v2119 = vld [vmem:[%s297 + $0xa0] sm:$0xff]
        %v2120 = vld [vmem:[%s297 + $0xa8] sm:$0xff]
        %v2121 = vld [vmem:[%s297 + $0xb0] sm:$0xff]
        %v2122 = vld [vmem:[%s297 + $0xb8] sm:$0xff]
        %v2123 = vld [vmem:[%s297 + $0xc0] sm:$0xff]
        %2125 = vset.pattern.permute.xlu0 0
        %2126 = vperm.xlu0 %2125, %v2099
        %v2127 = vpop.permute.xlu0 %2126
        %2130 = vset.pattern.permute.xlu0 0
        %2131 = vperm.xlu0 %2130, %v2100
        %v2132 = vpop.permute.xlu0 %2131
        %2135 = vset.pattern.permute.xlu0 0
        %2136 = vperm.xlu0 %2135, %v2101
        %v2137 = vpop.permute.xlu0 %2136
        %2140 = vset.pattern.permute.xlu0 0
        %2141 = vperm.xlu0 %2140, %v2102
        %v2142 = vpop.permute.xlu0 %2141
        %2145 = vset.pattern.permute.xlu0 0
        %2146 = vperm.xlu0 %2145, %v2103
        %v2147 = vpop.permute.xlu0 %2146
        %2150 = vset.pattern.permute.xlu0 0
        %2151 = vperm.xlu0 %2150, %v2104
        %v2152 = vpop.permute.xlu0 %2151
        %2155 = vset.pattern.permute.xlu0 0
        %2156 = vperm.xlu0 %2155, %v2105
        %v2157 = vpop.permute.xlu0 %2156
        %2160 = vset.pattern.permute.xlu0 0
        %2161 = vperm.xlu0 %2160, %v2106
        %v2162 = vpop.permute.xlu0 %2161
        %2165 = vset.pattern.permute.xlu0 0
        %2166 = vperm.xlu0 %2165, %v2107
        %v2167 = vpop.permute.xlu0 %2166
        %2170 = vset.pattern.permute.xlu0 0
        %2171 = vperm.xlu0 %2170, %v2108
        %v2172 = vpop.permute.xlu0 %2171
        %2175 = vset.pattern.permute.xlu0 0
        %2176 = vperm.xlu0 %2175, %v2109
        %v2177 = vpop.permute.xlu0 %2176
        %2180 = vset.pattern.permute.xlu0 0
        %2181 = vperm.xlu0 %2180, %v2110
        %v2182 = vpop.permute.xlu0 %2181
        %2185 = vset.pattern.permute.xlu0 0
        %2186 = vperm.xlu0 %2185, %v2111
        %v2187 = vpop.permute.xlu0 %2186
        %2190 = vset.pattern.permute.xlu0 0
        %2191 = vperm.xlu0 %2190, %v2112
        %v2192 = vpop.permute.xlu0 %2191
        %2195 = vset.pattern.permute.xlu0 0
        %2196 = vperm.xlu0 %2195, %v2113
        %v2197 = vpop.permute.xlu0 %2196
        %2200 = vset.pattern.permute.xlu0 0
        %2201 = vperm.xlu0 %2200, %v2114
        %v2202 = vpop.permute.xlu0 %2201
        %2205 = vset.pattern.permute.xlu0 0
        %2206 = vperm.xlu0 %2205, %v2115
        %v2207 = vpop.permute.xlu0 %2206
        %2210 = vset.pattern.permute.xlu0 0
        %2211 = vperm.xlu0 %2210, %v2116
        %v2212 = vpop.permute.xlu0 %2211
        %2215 = vset.pattern.permute.xlu0 0
        %2216 = vperm.xlu0 %2215, %v2117
        %v2217 = vpop.permute.xlu0 %2216
        %2220 = vset.pattern.permute.xlu0 0
        %2221 = vperm.xlu0 %2220, %v2118
        %v2222 = vpop.permute.xlu0 %2221
        %2225 = vset.pattern.permute.xlu0 0
        %2226 = vperm.xlu0 %2225, %v2119
        %v2227 = vpop.permute.xlu0 %2226
        %2230 = vset.pattern.permute.xlu0 0
        %2231 = vperm.xlu0 %2230, %v2120
        %v2232 = vpop.permute.xlu0 %2231
        %2235 = vset.pattern.permute.xlu0 0
        %2236 = vperm.xlu0 %2235, %v2121
        %v2237 = vpop.permute.xlu0 %2236
        %2240 = vset.pattern.permute.xlu0 0
        %2241 = vperm.xlu0 %2240, %v2122
        %v2242 = vpop.permute.xlu0 %2241
        %2245 = vset.pattern.permute.xlu0 0
        %2246 = vperm.xlu0 %2245, %v2123
        %v2247 = vpop.permute.xlu0 %2246
        %v2249 = vmul.f32 %v2074, %v2127
        %v2250 = vmul.f32 %v2075, %v2132
        %v2251 = vmul.f32 %v2076, %v2137
        %v2252 = vmul.f32 %v2077, %v2142
        %v2253 = vmul.f32 %v2078, %v2147
        %v2254 = vmul.f32 %v2079, %v2152
        %v2255 = vmul.f32 %v2080, %v2157
        %v2256 = vmul.f32 %v2081, %v2162
        %v2257 = vmul.f32 %v2082, %v2167
        %v2258 = vmul.f32 %v2083, %v2172
        %v2259 = vmul.f32 %v2084, %v2177
        %v2260 = vmul.f32 %v2085, %v2182
        %v2261 = vmul.f32 %v2086, %v2187
        %v2262 = vmul.f32 %v2087, %v2192
        %v2263 = vmul.f32 %v2088, %v2197
        %v2264 = vmul.f32 %v2089, %v2202
        %v2265 = vmul.f32 %v2090, %v2207
        %v2266 = vmul.f32 %v2091, %v2212
        %v2267 = vmul.f32 %v2092, %v2217
        %v2268 = vmul.f32 %v2093, %v2222
        %v2269 = vmul.f32 %v2094, %v2227
        %v2270 = vmul.f32 %v2095, %v2232
        %v2271 = vmul.f32 %v2096, %v2237
        %v2272 = vmul.f32 %v2097, %v2242
        %v2273 = vmul.f32 %v2098, %v2247
        %2274 = vst [vmem:[#allocation3] sm:$0xff] %v2249
        %2275 = vst [vmem:[#allocation3 + $0x8] sm:$0xff] %v2250
        %2276 = vst [vmem:[#allocation3 + $0x10] sm:$0xff] %v2251
        %2277 = vst [vmem:[#allocation3 + $0x18] sm:$0xff] %v2252
        %2278 = vst [vmem:[#allocation3 + $0x20] sm:$0xff] %v2253
        %2279 = vst [vmem:[#allocation3 + $0x28] sm:$0xff] %v2254
        %2280 = vst [vmem:[#allocation3 + $0x30] sm:$0xff] %v2255
        %2281 = vst [vmem:[#allocation3 + $0x38] sm:$0xff] %v2256
        %2282 = vst [vmem:[#allocation3 + $0x40] sm:$0xff] %v2257
        %2283 = vst [vmem:[#allocation3 + $0x48] sm:$0xff] %v2258
        %2284 = vst [vmem:[#allocation3 + $0x50] sm:$0xff] %v2259
        %2285 = vst [vmem:[#allocation3 + $0x58] sm:$0xff] %v2260
        %2286 = vst [vmem:[#allocation3 + $0x60] sm:$0xff] %v2261
        %2287 = vst [vmem:[#allocation3 + $0x68] sm:$0xff] %v2262
        %2288 = vst [vmem:[#allocation3 + $0x70] sm:$0xff] %v2263
        %2289 = vst [vmem:[#allocation3 + $0x78] sm:$0xff] %v2264
        %2290 = vst [vmem:[#allocation3 + $0x80] sm:$0xff] %v2265
        %2291 = vst [vmem:[#allocation3 + $0x88] sm:$0xff] %v2266
        %2292 = vst [vmem:[#allocation3 + $0x90] sm:$0xff] %v2267
        %2293 = vst [vmem:[#allocation3 + $0x98] sm:$0xff] %v2268
        %2294 = vst [vmem:[#allocation3 + $0xa0] sm:$0xff] %v2269
        %2295 = vst [vmem:[#allocation3 + $0xa8] sm:$0xff] %v2270
        %2296 = vst [vmem:[#allocation3 + $0xb0] sm:$0xff] %v2271
        %2297 = vst [vmem:[#allocation3 + $0xb8] sm:$0xff] %v2272
        %2298 = vst [vmem:[#allocation3 + $0xc0] sm:$0xff] %v2273
        %2299 = vst [vmem:[#allocation3 + $0xc8] sm:$0xff] 0.0
        %v2300 = vld [vmem:[#allocation3] sm:$0xff]
        %v2301 = vld [vmem:[#allocation3 + $0x8] sm:$0xff]
        %v2302 = vld [vmem:[#allocation3 + $0x10] sm:$0xff]
        %v2303 = vld [vmem:[#allocation3 + $0x18] sm:$0xff]
        %v2304 = vld [vmem:[#allocation3 + $0x20] sm:$0xff]
        %v2305 = vld [vmem:[#allocation3 + $0x28] sm:$0xff]
        %v2306 = vld [vmem:[#allocation3 + $0x30] sm:$0xff]
        %v2307 = vld [vmem:[#allocation3 + $0x38] sm:$0xff]
        %v2308 = vld [vmem:[#allocation3 + $0x40] sm:$0xff]
        %v2309 = vld [vmem:[#allocation3 + $0x48] sm:$0xff]
        %v2310 = vld [vmem:[#allocation3 + $0x50] sm:$0xff]
        %v2311 = vld [vmem:[#allocation3 + $0x58] sm:$0xff]
        %v2312 = vld [vmem:[#allocation3 + $0x60] sm:$0xff]
        %v2313 = vld [vmem:[#allocation3 + $0x68] sm:$0xff]
        %v2314 = vld [vmem:[#allocation3 + $0x70] sm:$0xff]
        %v2315 = vld [vmem:[#allocation3 + $0x78] sm:$0xff]
        %v2316 = vld [vmem:[#allocation3 + $0x80] sm:$0xff]
        %v2317 = vld [vmem:[#allocation3 + $0x88] sm:$0xff]
        %v2318 = vld [vmem:[#allocation3 + $0x90] sm:$0xff]
        %v2319 = vld [vmem:[#allocation3 + $0x98] sm:$0xff]
        %2320 = vst [vmem:[#allocation4] sm:$0xff] %v2300
        %2321 = vst [vmem:[#allocation4 + $0x48] sm:$0xff] %v2301
        %2322 = vst [vmem:[#allocation4 + $0x90] sm:$0xff] %v2302
        %2323 = vst [vmem:[#allocation4 + $0xd8] sm:$0xff] %v2303
        %2324 = vst [vmem:[#allocation4 + $0x120] sm:$0xff] %v2304
        %2325 = vst [vmem:[#allocation4 + $0x168] sm:$0xff] %v2305
        %2326 = vst [vmem:[#allocation4 + $0x1b0] sm:$0xff] %v2306
        %2327 = vst [vmem:[#allocation4 + $0x1f8] sm:$0xff] %v2307
        %2328 = vst [vmem:[#allocation4 + $0x240] sm:$0xff] %v2308
        %2329 = vst [vmem:[#allocation4 + $0x288] sm:$0xff] %v2309
        %2330 = vst [vmem:[#allocation4 + $0x2d0] sm:$0xff] %v2310
        %2331 = vst [vmem:[#allocation4 + $0x318] sm:$0xff] %v2311
        %2332 = vst [vmem:[#allocation4 + $0x360] sm:$0xff] %v2312
        %2333 = vst [vmem:[#allocation4 + $0x3a8] sm:$0xff] %v2313
        %2334 = vst [vmem:[#allocation4 + $0x3f0] sm:$0xff] %v2314
        %2335 = vst [vmem:[#allocation4 + $0x438] sm:$0xff] %v2315
        %2336 = vst [vmem:[#allocation4 + $0x480] sm:$0xff] %v2316
        %2337 = vst [vmem:[#allocation4 + $0x4c8] sm:$0xff] %v2317
        %2338 = vst [vmem:[#allocation4 + $0x510] sm:$0xff] %v2318
        %2339 = vst [vmem:[#allocation4 + $0x558] sm:$0xff] %v2319
        %v2340 = vld [vmem:[#allocation3 + $0x1] sm:$0xff]
        %v2341 = vld [vmem:[#allocation3 + $0x9] sm:$0xff]
        %v2342 = vld [vmem:[#allocation3 + $0x11] sm:$0xff]
        %v2343 = vld [vmem:[#allocation3 + $0x19] sm:$0xff]
        %v2344 = vld [vmem:[#allocation3 + $0x21] sm:$0xff]
        %v2345 = vld [vmem:[#allocation3 + $0x29] sm:$0xff]
        %v2346 = vld [vmem:[#allocation3 + $0x31] sm:$0xff]
        %v2347 = vld [vmem:[#allocation3 + $0x39] sm:$0xff]
        %v2348 = vld [vmem:[#allocation3 + $0x41] sm:$0xff]
        %v2349 = vld [vmem:[#allocation3 + $0x49] sm:$0xff]
        %v2350 = vld [vmem:[#allocation3 + $0x51] sm:$0xff]
        %v2351 = vld [vmem:[#allocation3 + $0x59] sm:$0xff]
        %v2352 = vld [vmem:[#allocation3 + $0x61] sm:$0xff]
        %v2353 = vld [vmem:[#allocation3 + $0x69] sm:$0xff]
        %v2354 = vld [vmem:[#allocation3 + $0x71] sm:$0xff]
        %v2355 = vld [vmem:[#allocation3 + $0x79] sm:$0xff]
        %v2356 = vld [vmem:[#allocation3 + $0x81] sm:$0xff]
        %v2357 = vld [vmem:[#allocation3 + $0x89] sm:$0xff]
        %v2358 = vld [vmem:[#allocation3 + $0x91] sm:$0xff]
        %v2359 = vld [vmem:[#allocation3 + $0x99] sm:$0xff]
        %2360 = vst [vmem:[#allocation4 + $0x8] sm:$0xff] %v2340
        %2361 = vst [vmem:[#allocation4 + $0x50] sm:$0xff] %v2341
        %2362 = vst [vmem:[#allocation4 + $0x98] sm:$0xff] %v2342
        %2363 = vst [vmem:[#allocation4 + $0xe0] sm:$0xff] %v2343
        %2364 = vst [vmem:[#allocation4 + $0x128] sm:$0xff] %v2344
        %2365 = vst [vmem:[#allocation4 + $0x170] sm:$0xff] %v2345
        %2366 = vst [vmem:[#allocation4 + $0x1b8] sm:$0xff] %v2346
        %2367 = vst [vmem:[#allocation4 + $0x200] sm:$0xff] %v2347
        %2368 = vst [vmem:[#allocation4 + $0x248] sm:$0xff] %v2348
        %2369 = vst [vmem:[#allocation4 + $0x290] sm:$0xff] %v2349
        %2370 = vst [vmem:[#allocation4 + $0x2d8] sm:$0xff] %v2350
        %2371 = vst [vmem:[#allocation4 + $0x320] sm:$0xff] %v2351
        %2372 = vst [vmem:[#allocation4 + $0x368] sm:$0xff] %v2352
        %2373 = vst [vmem:[#allocation4 + $0x3b0] sm:$0xff] %v2353
        %2374 = vst [vmem:[#allocation4 + $0x3f8] sm:$0xff] %v2354
        %2375 = vst [vmem:[#allocation4 + $0x440] sm:$0xff] %v2355
        %2376 = vst [vmem:[#allocation4 + $0x488] sm:$0xff] %v2356
        %2377 = vst [vmem:[#allocation4 + $0x4d0] sm:$0xff] %v2357
        %2378 = vst [vmem:[#allocation4 + $0x518] sm:$0xff] %v2358
        %2379 = vst [vmem:[#allocation4 + $0x560] sm:$0xff] %v2359
        %v2380 = vld [vmem:[#allocation3 + $0x2] sm:$0xff]
        %v2381 = vld [vmem:[#allocation3 + $0xa] sm:$0xff]
        %v2382 = vld [vmem:[#allocation3 + $0x12] sm:$0xff]
        %v2383 = vld [vmem:[#allocation3 + $0x1a] sm:$0xff]
        %v2384 = vld [vmem:[#allocation3 + $0x22] sm:$0xff]
        %v2385 = vld [vmem:[#allocation3 + $0x2a] sm:$0xff]
        %v2386 = vld [vmem:[#allocation3 + $0x32] sm:$0xff]
        %v2387 = vld [vmem:[#allocation3 + $0x3a] sm:$0xff]
        %v2388 = vld [vmem:[#allocation3 + $0x42] sm:$0xff]
        %v2389 = vld [vmem:[#allocation3 + $0x4a] sm:$0xff]
        %v2390 = vld [vmem:[#allocation3 + $0x52] sm:$0xff]
        %v2391 = vld [vmem:[#allocation3 + $0x5a] sm:$0xff]
        %v2392 = vld [vmem:[#allocation3 + $0x62] sm:$0xff]
        %v2393 = vld [vmem:[#allocation3 + $0x6a] sm:$0xff]
        %v2394 = vld [vmem:[#allocation3 + $0x72] sm:$0xff]
        %v2395 = vld [vmem:[#allocation3 + $0x7a] sm:$0xff]
        %v2396 = vld [vmem:[#allocation3 + $0x82] sm:$0xff]
        %v2397 = vld [vmem:[#allocation3 + $0x8a] sm:$0xff]
        %v2398 = vld [vmem:[#allocation3 + $0x92] sm:$0xff]
        %v2399 = vld [vmem:[#allocation3 + $0x9a] sm:$0xff]
        %2400 = vst [vmem:[#allocation4 + $0x10] sm:$0xff] %v2380
        %2401 = vst [vmem:[#allocation4 + $0x58] sm:$0xff] %v2381
        %2402 = vst [vmem:[#allocation4 + $0xa0] sm:$0xff] %v2382
        %2403 = vst [vmem:[#allocation4 + $0xe8] sm:$0xff] %v2383
        %2404 = vst [vmem:[#allocation4 + $0x130] sm:$0xff] %v2384
        %2405 = vst [vmem:[#allocation4 + $0x178] sm:$0xff] %v2385
        %2406 = vst [vmem:[#allocation4 + $0x1c0] sm:$0xff] %v2386
        %2407 = vst [vmem:[#allocation4 + $0x208] sm:$0xff] %v2387
        %2408 = vst [vmem:[#allocation4 + $0x250] sm:$0xff] %v2388
        %2409 = vst [vmem:[#allocation4 + $0x298] sm:$0xff] %v2389
        %2410 = vst [vmem:[#allocation4 + $0x2e0] sm:$0xff] %v2390
        %2411 = vst [vmem:[#allocation4 + $0x328] sm:$0xff] %v2391
        %2412 = vst [vmem:[#allocation4 + $0x370] sm:$0xff] %v2392
        %2413 = vst [vmem:[#allocation4 + $0x3b8] sm:$0xff] %v2393
        %2414 = vst [vmem:[#allocation4 + $0x400] sm:$0xff] %v2394
        %2415 = vst [vmem:[#allocation4 + $0x448] sm:$0xff] %v2395
        %2416 = vst [vmem:[#allocation4 + $0x490] sm:$0xff] %v2396
        %2417 = vst [vmem:[#allocation4 + $0x4d8] sm:$0xff] %v2397
        %2418 = vst [vmem:[#allocation4 + $0x520] sm:$0xff] %v2398
        %2419 = vst [vmem:[#allocation4 + $0x568] sm:$0xff] %v2399
        %v2420 = vld [vmem:[#allocation3 + $0x14] sm:$0xff]
        %v2421 = vld [vmem:[#allocation3 + $0x1c] sm:$0xff]
        %v2422 = vld [vmem:[#allocation3 + $0x24] sm:$0xff]
        %v2423 = vld [vmem:[#allocation3 + $0x2c] sm:$0xff]
        %v2424 = vld [vmem:[#allocation3 + $0x34] sm:$0xff]
        %v2425 = vld [vmem:[#allocation3 + $0x3c] sm:$0xff]
        %v2426 = vld [vmem:[#allocation3 + $0x44] sm:$0xff]
        %v2427 = vld [vmem:[#allocation3 + $0x4c] sm:$0xff]
        %v2428 = vld [vmem:[#allocation3 + $0x54] sm:$0xff]
        %v2429 = vld [vmem:[#allocation3 + $0x5c] sm:$0xff]
        %v2430 = vld [vmem:[#allocation3 + $0x64] sm:$0xff]
        %v2431 = vld [vmem:[#allocation3 + $0x6c] sm:$0xff]
        %v2432 = vld [vmem:[#allocation3 + $0x74] sm:$0xff]
        %v2433 = vld [vmem:[#allocation3 + $0x7c] sm:$0xff]
        %v2434 = vld [vmem:[#allocation3 + $0x84] sm:$0xff]
        %v2435 = vld [vmem:[#allocation3 + $0x8c] sm:$0xff]
        %v2436 = vld [vmem:[#allocation3 + $0x94] sm:$0xff]
        %v2437 = vld [vmem:[#allocation3 + $0x9c] sm:$0xff]
        %v2438 = vld [vmem:[#allocation3 + $0xa4] sm:$0xff]
        %v2439 = vld [vmem:[#allocation3 + $0xac] sm:$0xff]
        %2440 = vst [vmem:[#allocation4 + $0x18] sm:$0xff] %v2420
        %2441 = vst [vmem:[#allocation4 + $0x60] sm:$0xff] %v2421
        %2442 = vst [vmem:[#allocation4 + $0xa8] sm:$0xff] %v2422
        %2443 = vst [vmem:[#allocation4 + $0xf0] sm:$0xff] %v2423
        %2444 = vst [vmem:[#allocation4 + $0x138] sm:$0xff] %v2424
        %2445 = vst [vmem:[#allocation4 + $0x180] sm:$0xff] %v2425
        %2446 = vst [vmem:[#allocation4 + $0x1c8] sm:$0xff] %v2426
        %2447 = vst [vmem:[#allocation4 + $0x210] sm:$0xff] %v2427
        %2448 = vst [vmem:[#allocation4 + $0x258] sm:$0xff] %v2428
        %2449 = vst [vmem:[#allocation4 + $0x2a0] sm:$0xff] %v2429
        %2450 = vst [vmem:[#allocation4 + $0x2e8] sm:$0xff] %v2430
        %2451 = vst [vmem:[#allocation4 + $0x330] sm:$0xff] %v2431
        %2452 = vst [vmem:[#allocation4 + $0x378] sm:$0xff] %v2432
        %2453 = vst [vmem:[#allocation4 + $0x3c0] sm:$0xff] %v2433
        %2454 = vst [vmem:[#allocation4 + $0x408] sm:$0xff] %v2434
        %2455 = vst [vmem:[#allocation4 + $0x450] sm:$0xff] %v2435
        %2456 = vst [vmem:[#allocation4 + $0x498] sm:$0xff] %v2436
        %2457 = vst [vmem:[#allocation4 + $0x4e0] sm:$0xff] %v2437
        %2458 = vst [vmem:[#allocation4 + $0x528] sm:$0xff] %v2438
        %2459 = vst [vmem:[#allocation4 + $0x570] sm:$0xff] %v2439
        %v2460 = vld [vmem:[#allocation3 + $0x15] sm:$0xff]
        %v2461 = vld [vmem:[#allocation3 + $0x1d] sm:$0xff]
        %v2462 = vld [vmem:[#allocation3 + $0x25] sm:$0xff]
        %v2463 = vld [vmem:[#allocation3 + $0x2d] sm:$0xff]
        %v2464 = vld [vmem:[#allocation3 + $0x35] sm:$0xff]
        %v2465 = vld [vmem:[#allocation3 + $0x3d] sm:$0xff]
        %v2466 = vld [vmem:[#allocation3 + $0x45] sm:$0xff]
        %v2467 = vld [vmem:[#allocation3 + $0x4d] sm:$0xff]
        %v2468 = vld [vmem:[#allocation3 + $0x55] sm:$0xff]
        %v2469 = vld [vmem:[#allocation3 + $0x5d] sm:$0xff]
        %v2470 = vld [vmem:[#allocation3 + $0x65] sm:$0xff]
        %v2471 = vld [vmem:[#allocation3 + $0x6d] sm:$0xff]
        %v2472 = vld [vmem:[#allocation3 + $0x75] sm:$0xff]
        %v2473 = vld [vmem:[#allocation3 + $0x7d] sm:$0xff]
        %v2474 = vld [vmem:[#allocation3 + $0x85] sm:$0xff]
        %v2475 = vld [vmem:[#allocation3 + $0x8d] sm:$0xff]
        %v2476 = vld [vmem:[#allocation3 + $0x95] sm:$0xff]
        %v2477 = vld [vmem:[#allocation3 + $0x9d] sm:$0xff]
        %v2478 = vld [vmem:[#allocation3 + $0xa5] sm:$0xff]
        %v2479 = vld [vmem:[#allocation3 + $0xad] sm:$0xff]
        %2480 = vst [vmem:[#allocation4 + $0x20] sm:$0xff] %v2460
        %2481 = vst [vmem:[#allocation4 + $0x68] sm:$0xff] %v2461
        %2482 = vst [vmem:[#allocation4 + $0xb0] sm:$0xff] %v2462
        %2483 = vst [vmem:[#allocation4 + $0xf8] sm:$0xff] %v2463
        %2484 = vst [vmem:[#allocation4 + $0x140] sm:$0xff] %v2464
        %2485 = vst [vmem:[#allocation4 + $0x188] sm:$0xff] %v2465
        %2486 = vst [vmem:[#allocation4 + $0x1d0] sm:$0xff] %v2466
        %2487 = vst [vmem:[#allocation4 + $0x218] sm:$0xff] %v2467
        %2488 = vst [vmem:[#allocation4 + $0x260] sm:$0xff] %v2468
        %2489 = vst [vmem:[#allocation4 + $0x2a8] sm:$0xff] %v2469
        %2490 = vst [vmem:[#allocation4 + $0x2f0] sm:$0xff] %v2470
        %2491 = vst [vmem:[#allocation4 + $0x338] sm:$0xff] %v2471
        %2492 = vst [vmem:[#allocation4 + $0x380] sm:$0xff] %v2472
        %2493 = vst [vmem:[#allocation4 + $0x3c8] sm:$0xff] %v2473
        %2494 = vst [vmem:[#allocation4 + $0x410] sm:$0xff] %v2474
        %2495 = vst [vmem:[#allocation4 + $0x458] sm:$0xff] %v2475
        %2496 = vst [vmem:[#allocation4 + $0x4a0] sm:$0xff] %v2476
        %2497 = vst [vmem:[#allocation4 + $0x4e8] sm:$0xff] %v2477
        %2498 = vst [vmem:[#allocation4 + $0x530] sm:$0xff] %v2478
        %2499 = vst [vmem:[#allocation4 + $0x578] sm:$0xff] %v2479
        %v2500 = vld [vmem:[#allocation3 + $0x16] sm:$0xff]
        %v2501 = vld [vmem:[#allocation3 + $0x1e] sm:$0xff]
        %v2502 = vld [vmem:[#allocation3 + $0x26] sm:$0xff]
        %v2503 = vld [vmem:[#allocation3 + $0x2e] sm:$0xff]
        %v2504 = vld [vmem:[#allocation3 + $0x36] sm:$0xff]
        %v2505 = vld [vmem:[#allocation3 + $0x3e] sm:$0xff]
        %v2506 = vld [vmem:[#allocation3 + $0x46] sm:$0xff]
        %v2507 = vld [vmem:[#allocation3 + $0x4e] sm:$0xff]
        %v2508 = vld [vmem:[#allocation3 + $0x56] sm:$0xff]
        %v2509 = vld [vmem:[#allocation3 + $0x5e] sm:$0xff]
        %v2510 = vld [vmem:[#allocation3 + $0x66] sm:$0xff]
        %v2511 = vld [vmem:[#allocation3 + $0x6e] sm:$0xff]
        %v2512 = vld [vmem:[#allocation3 + $0x76] sm:$0xff]
        %v2513 = vld [vmem:[#allocation3 + $0x7e] sm:$0xff]
        %v2514 = vld [vmem:[#allocation3 + $0x86] sm:$0xff]
        %v2515 = vld [vmem:[#allocation3 + $0x8e] sm:$0xff]
        %v2516 = vld [vmem:[#allocation3 + $0x96] sm:$0xff]
        %v2517 = vld [vmem:[#allocation3 + $0x9e] sm:$0xff]
        %v2518 = vld [vmem:[#allocation3 + $0xa6] sm:$0xff]
        %v2519 = vld [vmem:[#allocation3 + $0xae] sm:$0xff]
        %2520 = vst [vmem:[#allocation4 + $0x28] sm:$0xff] %v2500
        %2521 = vst [vmem:[#allocation4 + $0x70] sm:$0xff] %v2501
        %2522 = vst [vmem:[#allocation4 + $0xb8] sm:$0xff] %v2502
        %2523 = vst [vmem:[#allocation4 + $0x100] sm:$0xff] %v2503
        %2524 = vst [vmem:[#allocation4 + $0x148] sm:$0xff] %v2504
        %2525 = vst [vmem:[#allocation4 + $0x190] sm:$0xff] %v2505
        %2526 = vst [vmem:[#allocation4 + $0x1d8] sm:$0xff] %v2506
        %2527 = vst [vmem:[#allocation4 + $0x220] sm:$0xff] %v2507
        %2528 = vst [vmem:[#allocation4 + $0x268] sm:$0xff] %v2508
        %2529 = vst [vmem:[#allocation4 + $0x2b0] sm:$0xff] %v2509
        %2530 = vst [vmem:[#allocation4 + $0x2f8] sm:$0xff] %v2510
        %2531 = vst [vmem:[#allocation4 + $0x340] sm:$0xff] %v2511
        %2532 = vst [vmem:[#allocation4 + $0x388] sm:$0xff] %v2512
        %2533 = vst [vmem:[#allocation4 + $0x3d0] sm:$0xff] %v2513
        %2534 = vst [vmem:[#allocation4 + $0x418] sm:$0xff] %v2514
        %2535 = vst [vmem:[#allocation4 + $0x460] sm:$0xff] %v2515
        %2536 = vst [vmem:[#allocation4 + $0x4a8] sm:$0xff] %v2516
        %2537 = vst [vmem:[#allocation4 + $0x4f0] sm:$0xff] %v2517
        %2538 = vst [vmem:[#allocation4 + $0x538] sm:$0xff] %v2518
        %2539 = vst [vmem:[#allocation4 + $0x580] sm:$0xff] %v2519
        %v2540 = vld [vmem:[#allocation3 + $0x28] sm:$0xff]
        %v2541 = vld [vmem:[#allocation3 + $0x30] sm:$0xff]
        %v2542 = vld [vmem:[#allocation3 + $0x38] sm:$0xff]
        %v2543 = vld [vmem:[#allocation3 + $0x40] sm:$0xff]
        %v2544 = vld [vmem:[#allocation3 + $0x48] sm:$0xff]
        %v2545 = vld [vmem:[#allocation3 + $0x50] sm:$0xff]
        %v2546 = vld [vmem:[#allocation3 + $0x58] sm:$0xff]
        %v2547 = vld [vmem:[#allocation3 + $0x60] sm:$0xff]
        %v2548 = vld [vmem:[#allocation3 + $0x68] sm:$0xff]
        %v2549 = vld [vmem:[#allocation3 + $0x70] sm:$0xff]
        %v2550 = vld [vmem:[#allocation3 + $0x78] sm:$0xff]
        %v2551 = vld [vmem:[#allocation3 + $0x80] sm:$0xff]
        %v2552 = vld [vmem:[#allocation3 + $0x88] sm:$0xff]
        %v2553 = vld [vmem:[#allocation3 + $0x90] sm:$0xff]
        %v2554 = vld [vmem:[#allocation3 + $0x98] sm:$0xff]
        %v2555 = vld [vmem:[#allocation3 + $0xa0] sm:$0xff]
        %v2556 = vld [vmem:[#allocation3 + $0xa8] sm:$0xff]
        %v2557 = vld [vmem:[#allocation3 + $0xb0] sm:$0xff]
        %v2558 = vld [vmem:[#allocation3 + $0xb8] sm:$0xff]
        %v2559 = vld [vmem:[#allocation3 + $0xc0] sm:$0xff]
        %2560 = vst [vmem:[#allocation4 + $0x30] sm:$0xff] %v2540
        %2561 = vst [vmem:[#allocation4 + $0x78] sm:$0xff] %v2541
        %2562 = vst [vmem:[#allocation4 + $0xc0] sm:$0xff] %v2542
        %2563 = vst [vmem:[#allocation4 + $0x108] sm:$0xff] %v2543
        %2564 = vst [vmem:[#allocation4 + $0x150] sm:$0xff] %v2544
        %2565 = vst [vmem:[#allocation4 + $0x198] sm:$0xff] %v2545
        %2566 = vst [vmem:[#allocation4 + $0x1e0] sm:$0xff] %v2546
        %2567 = vst [vmem:[#allocation4 + $0x228] sm:$0xff] %v2547
        %2568 = vst [vmem:[#allocation4 + $0x270] sm:$0xff] %v2548
        %2569 = vst [vmem:[#allocation4 + $0x2b8] sm:$0xff] %v2549
        %2570 = vst [vmem:[#allocation4 + $0x300] sm:$0xff] %v2550
        %2571 = vst [vmem:[#allocation4 + $0x348] sm:$0xff] %v2551
        %2572 = vst [vmem:[#allocation4 + $0x390] sm:$0xff] %v2552
        %2573 = vst [vmem:[#allocation4 + $0x3d8] sm:$0xff] %v2553
        %2574 = vst [vmem:[#allocation4 + $0x420] sm:$0xff] %v2554
        %2575 = vst [vmem:[#allocation4 + $0x468] sm:$0xff] %v2555
        %2576 = vst [vmem:[#allocation4 + $0x4b0] sm:$0xff] %v2556
        %2577 = vst [vmem:[#allocation4 + $0x4f8] sm:$0xff] %v2557
        %2578 = vst [vmem:[#allocation4 + $0x540] sm:$0xff] %v2558
        %2579 = vst [vmem:[#allocation4 + $0x588] sm:$0xff] %v2559
        %v2580 = vld [vmem:[#allocation3 + $0x29] sm:$0xff]
        %v2581 = vld [vmem:[#allocation3 + $0x31] sm:$0xff]
        %v2582 = vld [vmem:[#allocation3 + $0x39] sm:$0xff]
        %v2583 = vld [vmem:[#allocation3 + $0x41] sm:$0xff]
        %v2584 = vld [vmem:[#allocation3 + $0x49] sm:$0xff]
        %v2585 = vld [vmem:[#allocation3 + $0x51] sm:$0xff]
        %v2586 = vld [vmem:[#allocation3 + $0x59] sm:$0xff]
        %v2587 = vld [vmem:[#allocation3 + $0x61] sm:$0xff]
        %v2588 = vld [vmem:[#allocation3 + $0x69] sm:$0xff]
        %v2589 = vld [vmem:[#allocation3 + $0x71] sm:$0xff]
        %v2590 = vld [vmem:[#allocation3 + $0x79] sm:$0xff]
        %v2591 = vld [vmem:[#allocation3 + $0x81] sm:$0xff]
        %v2592 = vld [vmem:[#allocation3 + $0x89] sm:$0xff]
        %v2593 = vld [vmem:[#allocation3 + $0x91] sm:$0xff]
        %v2594 = vld [vmem:[#allocation3 + $0x99] sm:$0xff]
        %v2595 = vld [vmem:[#allocation3 + $0xa1] sm:$0xff]
        %v2596 = vld [vmem:[#allocation3 + $0xa9] sm:$0xff]
        %v2597 = vld [vmem:[#allocation3 + $0xb1] sm:$0xff]
        %v2598 = vld [vmem:[#allocation3 + $0xb9] sm:$0xff]
        %v2599 = vld [vmem:[#allocation3 + $0xc1] sm:$0xff]
        %2600 = vst [vmem:[#allocation4 + $0x38] sm:$0xff] %v2580
        %2601 = vst [vmem:[#allocation4 + $0x80] sm:$0xff] %v2581
        %2602 = vst [vmem:[#allocation4 + $0xc8] sm:$0xff] %v2582
        %2603 = vst [vmem:[#allocation4 + $0x110] sm:$0xff] %v2583
        %2604 = vst [vmem:[#allocation4 + $0x158] sm:$0xff] %v2584
        %2605 = vst [vmem:[#allocation4 + $0x1a0] sm:$0xff] %v2585
        %2606 = vst [vmem:[#allocation4 + $0x1e8] sm:$0xff] %v2586
        %2607 = vst [vmem:[#allocation4 + $0x230] sm:$0xff] %v2587
        %2608 = vst [vmem:[#allocation4 + $0x278] sm:$0xff] %v2588
        %2609 = vst [vmem:[#allocation4 + $0x2c0] sm:$0xff] %v2589
        %2610 = vst [vmem:[#allocation4 + $0x308] sm:$0xff] %v2590
        %2611 = vst [vmem:[#allocation4 + $0x350] sm:$0xff] %v2591
        %2612 = vst [vmem:[#allocation4 + $0x398] sm:$0xff] %v2592
        %2613 = vst [vmem:[#allocation4 + $0x3e0] sm:$0xff] %v2593
        %2614 = vst [vmem:[#allocation4 + $0x428] sm:$0xff] %v2594
        %2615 = vst [vmem:[#allocation4 + $0x470] sm:$0xff] %v2595
        %2616 = vst [vmem:[#allocation4 + $0x4b8] sm:$0xff] %v2596
        %2617 = vst [vmem:[#allocation4 + $0x500] sm:$0xff] %v2597
        %2618 = vst [vmem:[#allocation4 + $0x548] sm:$0xff] %v2598
        %2619 = vst [vmem:[#allocation4 + $0x590] sm:$0xff] %v2599
        %v2620 = vld [vmem:[#allocation3 + $0x2a] sm:$0xff]
        %v2621 = vld [vmem:[#allocation3 + $0x32] sm:$0xff]
        %v2622 = vld [vmem:[#allocation3 + $0x3a] sm:$0xff]
        %v2623 = vld [vmem:[#allocation3 + $0x42] sm:$0xff]
        %v2624 = vld [vmem:[#allocation3 + $0x4a] sm:$0xff]
        %v2625 = vld [vmem:[#allocation3 + $0x52] sm:$0xff]
        %v2626 = vld [vmem:[#allocation3 + $0x5a] sm:$0xff]
        %v2627 = vld [vmem:[#allocation3 + $0x62] sm:$0xff]
        %v2628 = vld [vmem:[#allocation3 + $0x6a] sm:$0xff]
        %v2629 = vld [vmem:[#allocation3 + $0x72] sm:$0xff]
        %v2630 = vld [vmem:[#allocation3 + $0x7a] sm:$0xff]
        %v2631 = vld [vmem:[#allocation3 + $0x82] sm:$0xff]
        %v2632 = vld [vmem:[#allocation3 + $0x8a] sm:$0xff]
        %v2633 = vld [vmem:[#allocation3 + $0x92] sm:$0xff]
        %v2634 = vld [vmem:[#allocation3 + $0x9a] sm:$0xff]
        %v2635 = vld [vmem:[#allocation3 + $0xa2] sm:$0xff]
        %v2636 = vld [vmem:[#allocation3 + $0xaa] sm:$0xff]
        %v2637 = vld [vmem:[#allocation3 + $0xb2] sm:$0xff]
        %v2638 = vld [vmem:[#allocation3 + $0xba] sm:$0xff]
        %v2639 = vld [vmem:[#allocation3 + $0xc2] sm:$0xff]
        %2640 = vst [vmem:[#allocation4 + $0x40] sm:$0xff] %v2620
        %2641 = vst [vmem:[#allocation4 + $0x88] sm:$0xff] %v2621
        %2642 = vst [vmem:[#allocation4 + $0xd0] sm:$0xff] %v2622
        %2643 = vst [vmem:[#allocation4 + $0x118] sm:$0xff] %v2623
        %2644 = vst [vmem:[#allocation4 + $0x160] sm:$0xff] %v2624
        %2645 = vst [vmem:[#allocation4 + $0x1a8] sm:$0xff] %v2625
        %2646 = vst [vmem:[#allocation4 + $0x1f0] sm:$0xff] %v2626
        %2647 = vst [vmem:[#allocation4 + $0x238] sm:$0xff] %v2627
        %2648 = vst [vmem:[#allocation4 + $0x280] sm:$0xff] %v2628
        %2649 = vst [vmem:[#allocation4 + $0x2c8] sm:$0xff] %v2629
        %2650 = vst [vmem:[#allocation4 + $0x310] sm:$0xff] %v2630
        %2651 = vst [vmem:[#allocation4 + $0x358] sm:$0xff] %v2631
        %2652 = vst [vmem:[#allocation4 + $0x3a0] sm:$0xff] %v2632
        %2653 = vst [vmem:[#allocation4 + $0x3e8] sm:$0xff] %v2633
        %2654 = vst [vmem:[#allocation4 + $0x430] sm:$0xff] %v2634
        %2655 = vst [vmem:[#allocation4 + $0x478] sm:$0xff] %v2635
        %2656 = vst [vmem:[#allocation4 + $0x4c0] sm:$0xff] %v2636
        %2657 = vst [vmem:[#allocation4 + $0x508] sm:$0xff] %v2637
        %2658 = vst [vmem:[#allocation4 + $0x550] sm:$0xff] %v2638
        %2659 = vst [vmem:[#allocation4 + $0x598] sm:$0xff] %v2639
        %v2660 = vld [vmem:[#allocation4] sm:$0xff]
        %v2661 = vld [vmem:[#allocation4 + $0x8] sm:$0xff]
        %v2662 = vld [vmem:[#allocation4 + $0x10] sm:$0xff]
        %v2663 = vld [vmem:[#allocation4 + $0x18] sm:$0xff]
        %v2664 = vld [vmem:[#allocation4 + $0x20] sm:$0xff]
        %v2665 = vld [vmem:[#allocation4 + $0x28] sm:$0xff]
        %v2666 = vld [vmem:[#allocation4 + $0x30] sm:$0xff]
        %v2667 = vld [vmem:[#allocation4 + $0x38] sm:$0xff]
        %v2668 = vld [vmem:[#allocation4 + $0x40] sm:$0xff]
        %v2669 = vld [vmem:[#allocation4 + $0x48] sm:$0xff]
        %v2670 = vld [vmem:[#allocation4 + $0x50] sm:$0xff]
        %v2671 = vld [vmem:[#allocation4 + $0x58] sm:$0xff]
        %v2672 = vld [vmem:[#allocation4 + $0x60] sm:$0xff]
        %v2673 = vld [vmem:[#allocation4 + $0x68] sm:$0xff]
        %v2674 = vld [vmem:[#allocation4 + $0x70] sm:$0xff]
        %v2675 = vld [vmem:[#allocation4 + $0x78] sm:$0xff]
        %v2676 = vld [vmem:[#allocation4 + $0x80] sm:$0xff]
        %v2677 = vld [vmem:[#allocation4 + $0x88] sm:$0xff]
        %v2678 = vld [vmem:[#allocation4 + $0x90] sm:$0xff]
        %v2679 = vld [vmem:[#allocation4 + $0x98] sm:$0xff]
        %v2680 = vld [vmem:[#allocation4 + $0xa0] sm:$0xff]
        %v2681 = vld [vmem:[#allocation4 + $0xa8] sm:$0xff]
        %v2682 = vld [vmem:[#allocation4 + $0xb0] sm:$0xff]
        %v2683 = vld [vmem:[#allocation4 + $0xb8] sm:$0xff]
        %v2684 = vld [vmem:[#allocation4 + $0xc0] sm:$0xff]
        %v2685 = vld [vmem:[#allocation4 + $0xc8] sm:$0xff]
        %v2686 = vld [vmem:[#allocation4 + $0xd0] sm:$0xff]
        %v2687 = vld [vmem:[#allocation4 + $0xd8] sm:$0xff]
        %v2688 = vld [vmem:[#allocation4 + $0xe0] sm:$0xff]
        %v2689 = vld [vmem:[#allocation4 + $0xe8] sm:$0xff]
        %v2690 = vld [vmem:[#allocation4 + $0xf0] sm:$0xff]
        %v2691 = vld [vmem:[#allocation4 + $0xf8] sm:$0xff]
        %v2692 = vld [vmem:[#allocation4 + $0x100] sm:$0xff]
        %v2693 = vld [vmem:[#allocation4 + $0x108] sm:$0xff]
        %v2694 = vld [vmem:[#allocation4 + $0x110] sm:$0xff]
        %v2695 = vld [vmem:[#allocation4 + $0x118] sm:$0xff]
        %v2696 = vld [vmem:[#allocation4 + $0x120] sm:$0xff]
        %v2697 = vld [vmem:[#allocation4 + $0x128] sm:$0xff]
        %v2698 = vld [vmem:[#allocation4 + $0x130] sm:$0xff]
        %v2699 = vld [vmem:[#allocation4 + $0x138] sm:$0xff]
        %v2700 = vld [vmem:[#allocation4 + $0x140] sm:$0xff]
        %v2701 = vld [vmem:[#allocation4 + $0x148] sm:$0xff]
        %v2702 = vld [vmem:[#allocation4 + $0x150] sm:$0xff]
        %v2703 = vld [vmem:[#allocation4 + $0x158] sm:$0xff]
        %v2704 = vld [vmem:[#allocation4 + $0x160] sm:$0xff]
        %v2705 = vld [vmem:[#allocation4 + $0x168] sm:$0xff]
        %v2706 = vld [vmem:[#allocation4 + $0x170] sm:$0xff]
        %v2707 = vld [vmem:[#allocation4 + $0x178] sm:$0xff]
        %v2708 = vld [vmem:[#allocation4 + $0x180] sm:$0xff]
        %v2709 = vld [vmem:[#allocation4 + $0x188] sm:$0xff]
        %v2710 = vld [vmem:[#allocation4 + $0x190] sm:$0xff]
        %v2711 = vld [vmem:[#allocation4 + $0x198] sm:$0xff]
        %v2712 = vld [vmem:[#allocation4 + $0x1a0] sm:$0xff]
        %v2713 = vld [vmem:[#allocation4 + $0x1a8] sm:$0xff]
        %v2714 = vld [vmem:[#allocation4 + $0x1b0] sm:$0xff]
        %v2715 = vld [vmem:[#allocation4 + $0x1b8] sm:$0xff]
        %v2716 = vld [vmem:[#allocation4 + $0x1c0] sm:$0xff]
        %v2717 = vld [vmem:[#allocation4 + $0x1c8] sm:$0xff]
        %v2718 = vld [vmem:[#allocation4 + $0x1d0] sm:$0xff]
        %v2719 = vld [vmem:[#allocation4 + $0x1d8] sm:$0xff]
        %v2720 = vld [vmem:[#allocation4 + $0x1e0] sm:$0xff]
        %v2721 = vld [vmem:[#allocation4 + $0x1e8] sm:$0xff]
        %v2722 = vld [vmem:[#allocation4 + $0x1f0] sm:$0xff]
        %v2723 = vld [vmem:[#allocation4 + $0x1f8] sm:$0xff]
        %v2724 = vld [vmem:[#allocation4 + $0x200] sm:$0xff]
        %v2725 = vld [vmem:[#allocation4 + $0x208] sm:$0xff]
        %v2726 = vld [vmem:[#allocation4 + $0x210] sm:$0xff]
        %v2727 = vld [vmem:[#allocation4 + $0x218] sm:$0xff]
        %v2728 = vld [vmem:[#allocation4 + $0x220] sm:$0xff]
        %v2729 = vld [vmem:[#allocation4 + $0x228] sm:$0xff]
        %v2730 = vld [vmem:[#allocation4 + $0x230] sm:$0xff]
        %v2731 = vld [vmem:[#allocation4 + $0x238] sm:$0xff]
        %v2732 = vld [vmem:[#allocation4 + $0x240] sm:$0xff]
        %v2733 = vld [vmem:[#allocation4 + $0x248] sm:$0xff]
        %v2734 = vld [vmem:[#allocation4 + $0x250] sm:$0xff]
        %v2735 = vld [vmem:[#allocation4 + $0x258] sm:$0xff]
        %v2736 = vld [vmem:[#allocation4 + $0x260] sm:$0xff]
        %v2737 = vld [vmem:[#allocation4 + $0x268] sm:$0xff]
        %v2738 = vld [vmem:[#allocation4 + $0x270] sm:$0xff]
        %v2739 = vld [vmem:[#allocation4 + $0x278] sm:$0xff]
        %v2740 = vld [vmem:[#allocation4 + $0x280] sm:$0xff]
        %v2741 = vld [vmem:[#allocation4 + $0x288] sm:$0xff]
        %v2742 = vld [vmem:[#allocation4 + $0x290] sm:$0xff]
        %v2743 = vld [vmem:[#allocation4 + $0x298] sm:$0xff]
        %v2744 = vld [vmem:[#allocation4 + $0x2a0] sm:$0xff]
        %v2745 = vld [vmem:[#allocation4 + $0x2a8] sm:$0xff]
        %v2746 = vld [vmem:[#allocation4 + $0x2b0] sm:$0xff]
        %v2747 = vld [vmem:[#allocation4 + $0x2b8] sm:$0xff]
        %v2748 = vld [vmem:[#allocation4 + $0x2c0] sm:$0xff]
        %v2749 = vld [vmem:[#allocation4 + $0x2c8] sm:$0xff]
        %v2750 = vld [vmem:[#allocation4 + $0x2d0] sm:$0xff]
        %v2751 = vld [vmem:[#allocation4 + $0x2d8] sm:$0xff]
        %v2752 = vld [vmem:[#allocation4 + $0x2e0] sm:$0xff]
        %v2753 = vld [vmem:[#allocation4 + $0x2e8] sm:$0xff]
        %v2754 = vld [vmem:[#allocation4 + $0x2f0] sm:$0xff]
        %v2755 = vld [vmem:[#allocation4 + $0x2f8] sm:$0xff]
        %v2756 = vld [vmem:[#allocation4 + $0x300] sm:$0xff]
        %v2757 = vld [vmem:[#allocation4 + $0x308] sm:$0xff]
        %v2758 = vld [vmem:[#allocation4 + $0x310] sm:$0xff]
        %v2759 = vld [vmem:[#allocation4 + $0x318] sm:$0xff]
        %v2760 = vld [vmem:[#allocation4 + $0x320] sm:$0xff]
        %v2761 = vld [vmem:[#allocation4 + $0x328] sm:$0xff]
        %v2762 = vld [vmem:[#allocation4 + $0x330] sm:$0xff]
        %v2763 = vld [vmem:[#allocation4 + $0x338] sm:$0xff]
        %v2764 = vld [vmem:[#allocation4 + $0x340] sm:$0xff]
        %v2765 = vld [vmem:[#allocation4 + $0x348] sm:$0xff]
        %v2766 = vld [vmem:[#allocation4 + $0x350] sm:$0xff]
        %v2767 = vld [vmem:[#allocation4 + $0x358] sm:$0xff]
        %v2768 = vld [vmem:[#allocation4 + $0x360] sm:$0xff]
        %v2769 = vld [vmem:[#allocation4 + $0x368] sm:$0xff]
        %v2770 = vld [vmem:[#allocation4 + $0x370] sm:$0xff]
        %v2771 = vld [vmem:[#allocation4 + $0x378] sm:$0xff]
        %v2772 = vld [vmem:[#allocation4 + $0x380] sm:$0xff]
        %v2773 = vld [vmem:[#allocation4 + $0x388] sm:$0xff]
        %v2774 = vld [vmem:[#allocation4 + $0x390] sm:$0xff]
        %v2775 = vld [vmem:[#allocation4 + $0x398] sm:$0xff]
        %v2776 = vld [vmem:[#allocation4 + $0x3a0] sm:$0xff]
        %v2777 = vld [vmem:[#allocation4 + $0x3a8] sm:$0xff]
        %v2778 = vld [vmem:[#allocation4 + $0x3b0] sm:$0xff]
        %v2779 = vld [vmem:[#allocation4 + $0x3b8] sm:$0xff]
        %v2780 = vld [vmem:[#allocation4 + $0x3c0] sm:$0xff]
        %v2781 = vld [vmem:[#allocation4 + $0x3c8] sm:$0xff]
        %v2782 = vld [vmem:[#allocation4 + $0x3d0] sm:$0xff]
        %v2783 = vld [vmem:[#allocation4 + $0x3d8] sm:$0xff]
        %v2784 = vld [vmem:[#allocation4 + $0x3e0] sm:$0xff]
        %v2785 = vld [vmem:[#allocation4 + $0x3e8] sm:$0xff]
        %v2786 = vld [vmem:[#allocation4 + $0x3f0] sm:$0xff]
        %v2787 = vld [vmem:[#allocation4 + $0x3f8] sm:$0xff]
        %v2788 = vld [vmem:[#allocation4 + $0x400] sm:$0xff]
        %v2789 = vld [vmem:[#allocation4 + $0x408] sm:$0xff]
        %v2790 = vld [vmem:[#allocation4 + $0x410] sm:$0xff]
        %v2791 = vld [vmem:[#allocation4 + $0x418] sm:$0xff]
        %v2792 = vld [vmem:[#allocation4 + $0x420] sm:$0xff]
        %v2793 = vld [vmem:[#allocation4 + $0x428] sm:$0xff]
        %v2794 = vld [vmem:[#allocation4 + $0x430] sm:$0xff]
        %v2795 = vld [vmem:[#allocation4 + $0x438] sm:$0xff]
        %v2796 = vld [vmem:[#allocation4 + $0x440] sm:$0xff]
        %v2797 = vld [vmem:[#allocation4 + $0x448] sm:$0xff]
        %v2798 = vld [vmem:[#allocation4 + $0x450] sm:$0xff]
        %v2799 = vld [vmem:[#allocation4 + $0x458] sm:$0xff]
        %v2800 = vld [vmem:[#allocation4 + $0x460] sm:$0xff]
        %v2801 = vld [vmem:[#allocation4 + $0x468] sm:$0xff]
        %v2802 = vld [vmem:[#allocation4 + $0x470] sm:$0xff]
        %v2803 = vld [vmem:[#allocation4 + $0x478] sm:$0xff]
        %v2804 = vld [vmem:[#allocation4 + $0x480] sm:$0xff]
        %v2805 = vld [vmem:[#allocation4 + $0x488] sm:$0xff]
        %v2806 = vld [vmem:[#allocation4 + $0x490] sm:$0xff]
        %v2807 = vld [vmem:[#allocation4 + $0x498] sm:$0xff]
        %v2808 = vld [vmem:[#allocation4 + $0x4a0] sm:$0xff]
        %v2809 = vld [vmem:[#allocation4 + $0x4a8] sm:$0xff]
        %v2810 = vld [vmem:[#allocation4 + $0x4b0] sm:$0xff]
        %v2811 = vld [vmem:[#allocation4 + $0x4b8] sm:$0xff]
        %v2812 = vld [vmem:[#allocation4 + $0x4c0] sm:$0xff]
        %v2813 = vld [vmem:[#allocation4 + $0x4c8] sm:$0xff]
        %v2814 = vld [vmem:[#allocation4 + $0x4d0] sm:$0xff]
        %v2815 = vld [vmem:[#allocation4 + $0x4d8] sm:$0xff]
        %v2816 = vld [vmem:[#allocation4 + $0x4e0] sm:$0xff]
        %v2817 = vld [vmem:[#allocation4 + $0x4e8] sm:$0xff]
        %v2818 = vld [vmem:[#allocation4 + $0x4f0] sm:$0xff]
        %v2819 = vld [vmem:[#allocation4 + $0x4f8] sm:$0xff]
        %v2820 = vld [vmem:[#allocation4 + $0x500] sm:$0xff]
        %v2821 = vld [vmem:[#allocation4 + $0x508] sm:$0xff]
        %v2822 = vld [vmem:[#allocation4 + $0x510] sm:$0xff]
        %v2823 = vld [vmem:[#allocation4 + $0x518] sm:$0xff]
        %v2824 = vld [vmem:[#allocation4 + $0x520] sm:$0xff]
        %v2825 = vld [vmem:[#allocation4 + $0x528] sm:$0xff]
        %v2826 = vld [vmem:[#allocation4 + $0x530] sm:$0xff]
        %v2827 = vld [vmem:[#allocation4 + $0x538] sm:$0xff]
        %v2828 = vld [vmem:[#allocation4 + $0x540] sm:$0xff]
        %v2829 = vld [vmem:[#allocation4 + $0x548] sm:$0xff]
        %v2830 = vld [vmem:[#allocation4 + $0x550] sm:$0xff]
        %v2831 = vld [vmem:[#allocation4 + $0x558] sm:$0xff]
        %v2832 = vld [vmem:[#allocation4 + $0x560] sm:$0xff]
        %v2833 = vld [vmem:[#allocation4 + $0x568] sm:$0xff]
        %v2834 = vld [vmem:[#allocation4 + $0x570] sm:$0xff]
        %v2835 = vld [vmem:[#allocation4 + $0x578] sm:$0xff]
        %v2836 = vld [vmem:[#allocation4 + $0x580] sm:$0xff]
        %v2837 = vld [vmem:[#allocation4 + $0x588] sm:$0xff]
        %v2838 = vld [vmem:[#allocation4 + $0x590] sm:$0xff]
        %v2839 = vld [vmem:[#allocation4 + $0x598] sm:$0xff]
        %v2840 = vld [vmem:[%s3] sm:$0xff]
        %v2841 = vld [vmem:[%s3 + $0x8] sm:$0xff]
        %v2842 = vld [vmem:[%s3 + $0x10] sm:$0xff]
        %v2843 = vld [vmem:[%s3 + $0x18] sm:$0xff]
        %v2844 = vld [vmem:[%s3 + $0x20] sm:$0xff]
        %v2845 = vld [vmem:[%s3 + $0x28] sm:$0xff]
        %v2846 = vld [vmem:[%s3 + $0x30] sm:$0xff]
        %v2847 = vld [vmem:[%s3 + $0x38] sm:$0xff]
        %v2848 = vld [vmem:[%s3 + $0x40] sm:$0xff]
        %v2849 = vld [vmem:[%s3 + $0x48] sm:$0xff]
        %v2850 = vld [vmem:[%s3 + $0x50] sm:$0xff]
        %v2851 = vld [vmem:[%s3 + $0x58] sm:$0xff]
        %v2852 = vld [vmem:[%s3 + $0x60] sm:$0xff]
        %v2853 = vld [vmem:[%s3 + $0x68] sm:$0xff]
        %v2854 = vld [vmem:[%s3 + $0x70] sm:$0xff]
        %v2855 = vld [vmem:[%s3 + $0x78] sm:$0xff]
        %v2856 = vld [vmem:[%s3 + $0x80] sm:$0xff]
        %v2857 = vld [vmem:[%s3 + $0x88] sm:$0xff]
        %v2858 = vld [vmem:[%s3 + $0x90] sm:$0xff]
        %v2859 = vld [vmem:[%s3 + $0x98] sm:$0xff]
        %v2860 = vld [vmem:[%s3 + $0xa0] sm:$0xff]
        %v2861 = vld [vmem:[%s3 + $0xa8] sm:$0xff]
        %v2862 = vld [vmem:[%s3 + $0xb0] sm:$0xff]
        %v2863 = vld [vmem:[%s3 + $0xb8] sm:$0xff]
        %v2864 = vld [vmem:[%s3 + $0xc0] sm:$0xff]
        %v2865 = vld [vmem:[%s3 + $0xc8] sm:$0xff]
        %v2866 = vld [vmem:[%s3 + $0xd0] sm:$0xff]
        %v2867 = vld [vmem:[%s3 + $0xd8] sm:$0xff]
        %v2868 = vld [vmem:[%s3 + $0xe0] sm:$0xff]
        %v2869 = vld [vmem:[%s3 + $0xe8] sm:$0xff]
        %v2870 = vld [vmem:[%s3 + $0xf0] sm:$0xff]
        %v2871 = vld [vmem:[%s3 + $0xf8] sm:$0xff]
        %v2872 = vld [vmem:[%s3 + $0x100] sm:$0xff]
        %v2873 = vld [vmem:[%s3 + $0x108] sm:$0xff]
        %v2874 = vld [vmem:[%s3 + $0x110] sm:$0xff]
        %v2875 = vld [vmem:[%s3 + $0x118] sm:$0xff]
        %v2876 = vld [vmem:[%s3 + $0x120] sm:$0xff]
        %v2877 = vld [vmem:[%s3 + $0x128] sm:$0xff]
        %v2878 = vld [vmem:[%s3 + $0x130] sm:$0xff]
        %v2879 = vld [vmem:[%s3 + $0x138] sm:$0xff]
        %v2880 = vld [vmem:[%s3 + $0x140] sm:$0xff]
        %v2881 = vld [vmem:[%s3 + $0x148] sm:$0xff]
        %v2882 = vld [vmem:[%s3 + $0x150] sm:$0xff]
        %v2883 = vld [vmem:[%s3 + $0x158] sm:$0xff]
        %v2884 = vld [vmem:[%s3 + $0x160] sm:$0xff]
        %v2885 = vld [vmem:[%s3 + $0x168] sm:$0xff]
        %v2886 = vld [vmem:[%s3 + $0x170] sm:$0xff]
        %v2887 = vld [vmem:[%s3 + $0x178] sm:$0xff]
        %v2888 = vld [vmem:[%s3 + $0x180] sm:$0xff]
        %v2889 = vld [vmem:[%s3 + $0x188] sm:$0xff]
        %v2890 = vld [vmem:[%s3 + $0x190] sm:$0xff]
        %v2891 = vld [vmem:[%s3 + $0x198] sm:$0xff]
        %v2892 = vld [vmem:[%s3 + $0x1a0] sm:$0xff]
        %v2893 = vld [vmem:[%s3 + $0x1a8] sm:$0xff]
        %v2894 = vld [vmem:[%s3 + $0x1b0] sm:$0xff]
        %v2895 = vld [vmem:[%s3 + $0x1b8] sm:$0xff]
        %v2896 = vld [vmem:[%s3 + $0x1c0] sm:$0xff]
        %v2897 = vld [vmem:[%s3 + $0x1c8] sm:$0xff]
        %v2898 = vld [vmem:[%s3 + $0x1d0] sm:$0xff]
        %v2899 = vld [vmem:[%s3 + $0x1d8] sm:$0xff]
        %v2900 = vld [vmem:[%s3 + $0x1e0] sm:$0xff]
        %v2901 = vld [vmem:[%s3 + $0x1e8] sm:$0xff]
        %v2902 = vld [vmem:[%s3 + $0x1f0] sm:$0xff]
        %v2903 = vld [vmem:[%s3 + $0x1f8] sm:$0xff]
        %v2904 = vld [vmem:[%s3 + $0x200] sm:$0xff]
        %v2905 = vld [vmem:[%s3 + $0x208] sm:$0xff]
        %v2906 = vld [vmem:[%s3 + $0x210] sm:$0xff]
        %v2907 = vld [vmem:[%s3 + $0x218] sm:$0xff]
        %v2908 = vld [vmem:[%s3 + $0x220] sm:$0xff]
        %v2909 = vld [vmem:[%s3 + $0x228] sm:$0xff]
        %v2910 = vld [vmem:[%s3 + $0x230] sm:$0xff]
        %v2911 = vld [vmem:[%s3 + $0x238] sm:$0xff]
        %v2912 = vld [vmem:[%s3 + $0x240] sm:$0xff]
        %v2913 = vld [vmem:[%s3 + $0x248] sm:$0xff]
        %v2914 = vld [vmem:[%s3 + $0x250] sm:$0xff]
        %v2915 = vld [vmem:[%s3 + $0x258] sm:$0xff]
        %v2916 = vld [vmem:[%s3 + $0x260] sm:$0xff]
        %v2917 = vld [vmem:[%s3 + $0x268] sm:$0xff]
        %v2918 = vld [vmem:[%s3 + $0x270] sm:$0xff]
        %v2919 = vld [vmem:[%s3 + $0x278] sm:$0xff]
        %v2920 = vld [vmem:[%s3 + $0x280] sm:$0xff]
        %v2921 = vld [vmem:[%s3 + $0x288] sm:$0xff]
        %v2922 = vld [vmem:[%s3 + $0x290] sm:$0xff]
        %v2923 = vld [vmem:[%s3 + $0x298] sm:$0xff]
        %v2924 = vld [vmem:[%s3 + $0x2a0] sm:$0xff]
        %v2925 = vld [vmem:[%s3 + $0x2a8] sm:$0xff]
        %v2926 = vld [vmem:[%s3 + $0x2b0] sm:$0xff]
        %v2927 = vld [vmem:[%s3 + $0x2b8] sm:$0xff]
        %v2928 = vld [vmem:[%s3 + $0x2c0] sm:$0xff]
        %v2929 = vld [vmem:[%s3 + $0x2c8] sm:$0xff]
        %v2930 = vld [vmem:[%s3 + $0x2d0] sm:$0xff]
        %v2931 = vld [vmem:[%s3 + $0x2d8] sm:$0xff]
        %v2932 = vld [vmem:[%s3 + $0x2e0] sm:$0xff]
        %v2933 = vld [vmem:[%s3 + $0x2e8] sm:$0xff]
        %v2934 = vld [vmem:[%s3 + $0x2f0] sm:$0xff]
        %v2935 = vld [vmem:[%s3 + $0x2f8] sm:$0xff]
        %v2936 = vld [vmem:[%s3 + $0x300] sm:$0xff]
        %v2937 = vld [vmem:[%s3 + $0x308] sm:$0xff]
        %v2938 = vld [vmem:[%s3 + $0x310] sm:$0xff]
        %v2939 = vld [vmem:[%s3 + $0x318] sm:$0xff]
        %v2940 = vld [vmem:[%s3 + $0x320] sm:$0xff]
        %v2941 = vld [vmem:[%s3 + $0x328] sm:$0xff]
        %v2942 = vld [vmem:[%s3 + $0x330] sm:$0xff]
        %v2943 = vld [vmem:[%s3 + $0x338] sm:$0xff]
        %v2944 = vld [vmem:[%s3 + $0x340] sm:$0xff]
        %v2945 = vld [vmem:[%s3 + $0x348] sm:$0xff]
        %v2946 = vld [vmem:[%s3 + $0x350] sm:$0xff]
        %v2947 = vld [vmem:[%s3 + $0x358] sm:$0xff]
        %v2948 = vld [vmem:[%s3 + $0x360] sm:$0xff]
        %v2949 = vld [vmem:[%s3 + $0x368] sm:$0xff]
        %v2950 = vld [vmem:[%s3 + $0x370] sm:$0xff]
        %v2951 = vld [vmem:[%s3 + $0x378] sm:$0xff]
        %v2952 = vld [vmem:[%s3 + $0x380] sm:$0xff]
        %v2953 = vld [vmem:[%s3 + $0x388] sm:$0xff]
        %v2954 = vld [vmem:[%s3 + $0x390] sm:$0xff]
        %v2955 = vld [vmem:[%s3 + $0x398] sm:$0xff]
        %v2956 = vld [vmem:[%s3 + $0x3a0] sm:$0xff]
        %v2957 = vld [vmem:[%s3 + $0x3a8] sm:$0xff]
        %v2958 = vld [vmem:[%s3 + $0x3b0] sm:$0xff]
        %v2959 = vld [vmem:[%s3 + $0x3b8] sm:$0xff]
        %v2960 = vld [vmem:[%s3 + $0x3c0] sm:$0xff]
        %v2961 = vld [vmem:[%s3 + $0x3c8] sm:$0xff]
        %v2962 = vld [vmem:[%s3 + $0x3d0] sm:$0xff]
        %v2963 = vld [vmem:[%s3 + $0x3d8] sm:$0xff]
        %v2964 = vld [vmem:[%s3 + $0x3e0] sm:$0xff]
        %v2965 = vld [vmem:[%s3 + $0x3e8] sm:$0xff]
        %v2966 = vld [vmem:[%s3 + $0x3f0] sm:$0xff]
        %v2967 = vld [vmem:[%s3 + $0x3f8] sm:$0xff]
        %v2968 = vld [vmem:[%s3 + $0x400] sm:$0xff]
        %v2969 = vld [vmem:[%s3 + $0x408] sm:$0xff]
        %v2970 = vld [vmem:[%s3 + $0x410] sm:$0xff]
        %v2971 = vld [vmem:[%s3 + $0x418] sm:$0xff]
        %v2972 = vld [vmem:[%s3 + $0x420] sm:$0xff]
        %v2973 = vld [vmem:[%s3 + $0x428] sm:$0xff]
        %v2974 = vld [vmem:[%s3 + $0x430] sm:$0xff]
        %v2975 = vld [vmem:[%s3 + $0x438] sm:$0xff]
        %v2976 = vld [vmem:[%s3 + $0x440] sm:$0xff]
        %v2977 = vld [vmem:[%s3 + $0x448] sm:$0xff]
        %v2978 = vld [vmem:[%s3 + $0x450] sm:$0xff]
        %v2979 = vld [vmem:[%s3 + $0x458] sm:$0xff]
        %v2980 = vld [vmem:[%s3 + $0x460] sm:$0xff]
        %v2981 = vld [vmem:[%s3 + $0x468] sm:$0xff]
        %v2982 = vld [vmem:[%s3 + $0x470] sm:$0xff]
        %v2983 = vld [vmem:[%s3 + $0x478] sm:$0xff]
        %v2984 = vld [vmem:[%s4] sm:$0x1]
        %v2986 = vlaneseq
        %v2987 = vshrl.u32 %v2986, 7
        %v2988 = vsub.s32 0, %v2987
        %v2989 = vrot.slane %v2984, %v2988
        %2991 = vmatprep.subr.mxu0 0.0
        %2992 = vmatpush1.msra.mxu0 %v2840
        %2993 = vmatprep.subr.mxu0 0.0
        %2994 = vmatpush1.msra.mxu0 %v2841
        %2995 = vmatprep.subr.mxu0 0.0
        %2996 = vmatpush1.msra.mxu0 %v2842
        %2997 = vmatprep.subr.mxu0 0.0
        %2998 = vmatpush1.msra.mxu0 %v2843
        %2999 = vmatprep.subr.mxu0 0.0
        %3000 = vmatpush1.msra.mxu0 %v2844
        %3001 = vmatprep.subr.mxu0 0.0
        %3002 = vmatpush1.msra.mxu0 %v2845
        %3003 = vmatprep.subr.mxu0 0.0
        %3004 = vmatpush1.msra.mxu0 %v2846
        %3005 = vmatprep.subr.mxu0 0.0
        %3006 = vmatpush1.msra.mxu0 %v2847
        %3007 = vmatprep.subr.mxu0 0.0
        %3008 = vmatpush1.msra.mxu0 %v2848
        %3009 = vmatprep.subr.mxu0 0.0
        %3010 = vmatpush1.msra.mxu0 %v2849
        %3011 = vmatprep.subr.mxu0 0.0
        %3012 = vmatpush1.msra.mxu0 %v2850
        %3013 = vmatprep.subr.mxu0 0.0
        %3014 = vmatpush1.msra.mxu0 %v2851
        %3015 = vmatprep.subr.mxu0 0.0
        %3016 = vmatpush1.msra.mxu0 %v2852
        %3017 = vmatprep.subr.mxu0 0.0
        %3018 = vmatpush1.msra.mxu0 %v2853
        %3019 = vmatprep.subr.mxu0 0.0
        %3020 = vmatpush1.msra.mxu0 %v2854
        %3021 = vmatprep.subr.mxu0 0.0
        %3022 = vmatpush1.msra.mxu0 %v2855
        %3023 = vmatprep.subr.mxu0 0.0
        %3024 = vmatpush1.msra.mxu0 %v2856
        %3025 = vmatprep.subr.mxu0 0.0
        %3026 = vmatpush1.msra.mxu0 %v2857
        %3027 = vmatprep.subr.mxu0 0.0
        %3028 = vmatpush1.msra.mxu0 %v2858
        %3029 = vmatprep.subr.mxu0 0.0
        %3030 = vmatpush1.msra.mxu0 %v2859
        %3031 = vmatprep.subr.mxu0 0.0
        %3032 = vmatpush1.msra.mxu0 %v2860
        %3033 = vmatprep.subr.mxu0 0.0
        %3034 = vmatpush1.msra.mxu0 %v2861
        %3035 = vmatprep.subr.mxu0 0.0
        %3036 = vmatpush1.msra.mxu0 %v2862
        %3037 = vmatprep.subr.mxu0 0.0
        %3038 = vmatpush1.msra.mxu0 %v2863
        %3039 = vmatprep.subr.mxu0 0.0
        %3040 = vmatpush1.msra.mxu0 %v2864
        %3041 = vmatprep.subr.mxu0 0.0
        %3042 = vmatpush1.msra.mxu0 %v2865
        %3043 = vmatprep.subr.mxu0 0.0
        %3044 = vmatpush1.msra.mxu0 %v2866
        %3045 = vmatprep.subr.mxu0 0.0
        %3046 = vmatpush1.msra.mxu0 %v2867
        %3047 = vmatprep.subr.mxu0 0.0
        %3048 = vmatpush1.msra.mxu0 %v2868
        %3049 = vmatprep.subr.mxu0 0.0
        %3050 = vmatpush1.msra.mxu0 %v2869
        %3051 = vmatprep.subr.mxu0 0.0
        %3052 = vmatpush1.msra.mxu0 %v2870
        %3053 = vmatprep.subr.mxu0 0.0
        %3054 = vmatpush1.msra.mxu0 %v2871
        %3055 = vmatprep.mubr.f32.mxu0 %v2661
        %3056 = vmatmul.mubr.f32.gmra.mrb[0].mxu0 %v2660
        %v3057 = vpop.f32.mrb[0].mxu0
        %v3058 = vadd.f32 %v2989, %v3057
        %v3059 = vpop.f32.mrb[0].mxu0
        %3060 = vmatprep.mubr.f32.mxu0 %v2670
        %3061 = vmatmul.mubr.f32.gmra.mrb[0].mxu0 %v2669
        %v3062 = vpop.f32.mrb[0].mxu0
        %v3063 = vadd.f32 %v2989, %v3062
        %v3064 = vpop.f32.mrb[0].mxu0
        %3065 = vmatprep.mubr.f32.mxu0 %v2679
        %3066 = vmatmul.mubr.f32.gmra.mrb[0].mxu0 %v2678
        %v3067 = vpop.f32.mrb[0].mxu0
        %v3068 = vadd.f32 %v2989, %v3067
        %v3069 = vpop.f32.mrb[0].mxu0
        %3070 = vmatprep.mubr.f32.mxu0 %v2688
        %3071 = vmatmul.mubr.f32.gmra.mrb[0].mxu0 %v2687
        %v3072 = vpop.f32.mrb[0].mxu0
        %v3073 = vadd.f32 %v2989, %v3072
        %v3074 = vpop.f32.mrb[0].mxu0
        %3075 = vmatprep.mubr.f32.mxu0 %v2697
        %3076 = vmatmul.mubr.f32.gmra.mrb[0].mxu0 %v2696
        %v3077 = vpop.f32.mrb[0].mxu0
        %v3078 = vadd.f32 %v2989, %v3077
        %v3079 = vpop.f32.mrb[0].mxu0
        %3080 = vmatprep.mubr.f32.mxu0 %v2706
        %3081 = vmatmul.mubr.f32.gmra.mrb[0].mxu0 %v2705
        %v3082 = vpop.f32.mrb[0].mxu0
        %v3083 = vadd.f32 %v2989, %v3082
        %v3084 = vpop.f32.mrb[0].mxu0
        %3085 = vmatprep.mubr.f32.mxu0 %v2715
        %3086 = vmatmul.mubr.f32.gmra.mrb[0].mxu0 %v2714
        %v3087 = vpop.f32.mrb[0].mxu0
        %v3088 = vadd.f32 %v2989, %v3087
        %v3089 = vpop.f32.mrb[0].mxu0
        %3090 = vmatprep.mubr.f32.mxu0 %v2724
        %3091 = vmatmul.mubr.f32.gmra.mrb[0].mxu0 %v2723
        %v3092 = vpop.f32.mrb[0].mxu0
        %v3093 = vadd.f32 %v2989, %v3092
        %v3094 = vpop.f32.mrb[0].mxu0
        %3095 = vmatprep.mubr.f32.mxu0 %v2733
        %3096 = vmatmul.mubr.f32.gmra.mrb[0].mxu0 %v2732
        %v3097 = vpop.f32.mrb[0].mxu0
        %v3098 = vadd.f32 %v2989, %v3097
        %v3099 = vpop.f32.mrb[0].mxu0
        %3100 = vmatprep.mubr.f32.mxu0 %v2742
        %3101 = vmatmul.mubr.f32.gmra.mrb[0].mxu0 %v2741
        %v3102 = vpop.f32.mrb[0].mxu0
        %v3103 = vadd.f32 %v2989, %v3102
        %v3104 = vpop.f32.mrb[0].mxu0
        %3105 = vmatprep.mubr.f32.mxu0 %v2751
        %3106 = vmatmul.mubr.f32.gmra.mrb[0].mxu0 %v2750
        %v3107 = vpop.f32.mrb[0].mxu0
        %v3108 = vadd.f32 %v2989, %v3107
        %v3109 = vpop.f32.mrb[0].mxu0
        %3110 = vmatprep.mubr.f32.mxu0 %v2760
        %3111 = vmatmul.mubr.f32.gmra.mrb[0].mxu0 %v2759
        %v3112 = vpop.f32.mrb[0].mxu0
        %v3113 = vadd.f32 %v2989, %v3112
        %v3114 = vpop.f32.mrb[0].mxu0
        %3115 = vmatprep.mubr.f32.mxu0 %v2769
        %3116 = vmatmul.mubr.f32.gmra.mrb[0].mxu0 %v2768
        %v3117 = vpop.f32.mrb[0].mxu0
        %v3118 = vadd.f32 %v2989, %v3117
        %v3119 = vpop.f32.mrb[0].mxu0
        %3120 = vmatprep.mubr.f32.mxu0 %v2778
        %3121 = vmatmul.mubr.f32.gmra.mrb[0].mxu0 %v2777
        %v3122 = vpop.f32.mrb[0].mxu0
        %v3123 = vadd.f32 %v2989, %v3122
        %v3124 = vpop.f32.mrb[0].mxu0
        %3125 = vmatprep.mubr.f32.mxu0 %v2787
        %3126 = vmatmul.mubr.f32.gmra.mrb[0].mxu0 %v2786
        %v3127 = vpop.f32.mrb[0].mxu0
        %v3128 = vadd.f32 %v2989, %v3127
        %v3129 = vpop.f32.mrb[0].mxu0
        %3130 = vmatprep.mubr.f32.mxu0 %v2796
        %3131 = vmatmul.mubr.f32.gmra.mrb[0].mxu0 %v2795
        %v3132 = vpop.f32.mrb[0].mxu0
        %v3133 = vadd.f32 %v2989, %v3132
        %v3134 = vpop.f32.mrb[0].mxu0
        %3135 = vmatprep.mubr.f32.mxu0 %v2805
        %3136 = vmatmul.mubr.f32.gmra.mrb[0].mxu0 %v2804
        %v3137 = vpop.f32.mrb[0].mxu0
        %v3138 = vadd.f32 %v2989, %v3137
        %v3139 = vpop.f32.mrb[0].mxu0
        %3140 = vmatprep.mubr.f32.mxu0 %v2814
        %3141 = vmatmul.mubr.f32.gmra.mrb[0].mxu0 %v2813
        %v3142 = vpop.f32.mrb[0].mxu0
        %v3143 = vadd.f32 %v2989, %v3142
        %v3144 = vpop.f32.mrb[0].mxu0
        %3145 = vmatprep.mubr.f32.mxu0 %v2823
        %3146 = vmatmul.mubr.f32.gmra.mrb[0].mxu0 %v2822
        %v3147 = vpop.f32.mrb[0].mxu0
        %v3148 = vadd.f32 %v2989, %v3147
        %v3149 = vpop.f32.mrb[0].mxu0
        %3150 = vmatprep.mubr.f32.mxu0 %v2832
        %3151 = vmatmul.mubr.f32.gmra.mrb[0].mxu0 %v2831
        %v3152 = vpop.f32.mrb[0].mxu0
        %v3153 = vadd.f32 %v2989, %v3152
        %v3154 = vpop.f32.mrb[0].mxu0
        %3155 = vdwg.mxu0
        %3156 = vmatprep.subr.mxu0 0.0
        %3157 = vmatpush1.msra.mxu0 %v2872
        %3158 = vmatprep.subr.mxu0 0.0
        %3159 = vmatpush1.msra.mxu0 %v2873
        %3160 = vmatprep.subr.mxu0 0.0
        %3161 = vmatpush1.msra.mxu0 %v2874
        %3162 = vmatprep.subr.mxu0 0.0
        %3163 = vmatpush1.msra.mxu0 %v2875
        %3164 = vmatprep.subr.mxu0 0.0
        %3165 = vmatpush1.msra.mxu0 %v2876
        %3166 = vmatprep.subr.mxu0 0.0
        %3167 = vmatpush1.msra.mxu0 %v2877
        %3168 = vmatprep.subr.mxu0 0.0
        %3169 = vmatpush1.msra.mxu0 %v2878
        %3170 = vmatprep.subr.mxu0 0.0
        %3171 = vmatpush1.msra.mxu0 %v2879
        %3172 = vmatprep.subr.mxu0 0.0
        %3173 = vmatpush1.msra.mxu0 %v2880
        %3174 = vmatprep.subr.mxu0 0.0
        %3175 = vmatpush1.msra.mxu0 %v2881
        %3176 = vmatprep.subr.mxu0 0.0
        %3177 = vmatpush1.msra.mxu0 %v2882
        %3178 = vmatprep.subr.mxu0 0.0
        %3179 = vmatpush1.msra.mxu0 %v2883
        %3180 = vmatprep.subr.mxu0 0.0
        %3181 = vmatpush1.msra.mxu0 %v2884
        %3182 = vmatprep.subr.mxu0 0.0
        %3183 = vmatpush1.msra.mxu0 %v2885
        %3184 = vmatprep.subr.mxu0 0.0
        %3185 = vmatpush1.msra.mxu0 %v2886
        %3186 = vmatprep.subr.mxu0 0.0
        %3187 = vmatpush1.msra.mxu0 %v2887
        %3188 = vmatprep.subr.mxu0 0.0
        %3189 = vmatpush1.msra.mxu0 %v2888
        %3190 = vmatprep.subr.mxu0 0.0
        %3191 = vmatpush1.msra.mxu0 %v2889
        %3192 = vmatprep.subr.mxu0 0.0
        %3193 = vmatpush1.msra.mxu0 %v2890
        %3194 = vmatprep.subr.mxu0 0.0
        %3195 = vmatpush1.msra.mxu0 %v2891
        %3196 = vmatprep.subr.mxu0 0.0
        %3197 = vmatpush1.msra.mxu0 %v2892
        %3198 = vmatprep.subr.mxu0 0.0
        %3199 = vmatpush1.msra.mxu0 %v2893
        %3200 = vmatprep.subr.mxu0 0.0
        %3201 = vmatpush1.msra.mxu0 %v2894
        %3202 = vmatprep.subr.mxu0 0.0
        %3203 = vmatpush1.msra.mxu0 %v2895
        %3204 = vmatprep.subr.mxu0 0.0
        %3205 = vmatpush1.msra.mxu0 %v2896
        %3206 = vmatprep.subr.mxu0 0.0
        %3207 = vmatpush1.msra.mxu0 %v2897
        %3208 = vmatprep.subr.mxu0 0.0
        %3209 = vmatpush1.msra.mxu0 %v2898
        %3210 = vmatprep.subr.mxu0 0.0
        %3211 = vmatpush1.msra.mxu0 %v2899
        %3212 = vmatprep.subr.mxu0 0.0
        %3213 = vmatpush1.msra.mxu0 %v2900
        %3214 = vmatprep.subr.mxu0 0.0
        %3215 = vmatpush1.msra.mxu0 %v2901
        %3216 = vmatprep.subr.mxu0 0.0
        %3217 = vmatpush1.msra.mxu0 %v2902
        %3218 = vmatprep.subr.mxu0 0.0
        %3219 = vmatpush1.msra.mxu0 %v2903
        %3220 = vmatprep.mubr.f32.mxu0 %v2663
        %3221 = vmatmul.mubr.f32.gmra.mrb[0].mxu0 %v2662
        %v3222 = vpop.f32.mrb[0].mxu0
        %v3223 = vadd.f32 %v3058, %v3222
        %v3224 = vpop.f32.mrb[0].mxu0
        %3225 = vmatprep.mubr.f32.mxu0 %v2672
        %3226 = vmatmul.mubr.f32.gmra.mrb[0].mxu0 %v2671
        %v3227 = vpop.f32.mrb[0].mxu0
        %v3228 = vadd.f32 %v3063, %v3227
        %v3229 = vpop.f32.mrb[0].mxu0
        %3230 = vmatprep.mubr.f32.mxu0 %v2681
        %3231 = vmatmul.mubr.f32.gmra.mrb[0].mxu0 %v2680
        %v3232 = vpop.f32.mrb[0].mxu0
        %v3233 = vadd.f32 %v3068, %v3232
        %v3234 = vpop.f32.mrb[0].mxu0
        %3235 = vmatprep.mubr.f32.mxu0 %v2690
        %3236 = vmatmul.mubr.f32.gmra.mrb[0].mxu0 %v2689
        %v3237 = vpop.f32.mrb[0].mxu0
        %v3238 = vadd.f32 %v3073, %v3237
        %v3239 = vpop.f32.mrb[0].mxu0
        %3240 = vmatprep.mubr.f32.mxu0 %v2699
        %3241 = vmatmul.mubr.f32.gmra.mrb[0].mxu0 %v2698
        %v3242 = vpop.f32.mrb[0].mxu0
        %v3243 = vadd.f32 %v3078, %v3242
        %v3244 = vpop.f32.mrb[0].mxu0
        %3245 = vmatprep.mubr.f32.mxu0 %v2708
        %3246 = vmatmul.mubr.f32.gmra.mrb[0].mxu0 %v2707
        %v3247 = vpop.f32.mrb[0].mxu0
        %v3248 = vadd.f32 %v3083, %v3247
        %v3249 = vpop.f32.mrb[0].mxu0
        %3250 = vmatprep.mubr.f32.mxu0 %v2717
        %3251 = vmatmul.mubr.f32.gmra.mrb[0].mxu0 %v2716
        %v3252 = vpop.f32.mrb[0].mxu0
        %v3253 = vadd.f32 %v3088, %v3252
        %v3254 = vpop.f32.mrb[0].mxu0
        %3255 = vmatprep.mubr.f32.mxu0 %v2726
        %3256 = vmatmul.mubr.f32.gmra.mrb[0].mxu0 %v2725
        %v3257 = vpop.f32.mrb[0].mxu0
        %v3258 = vadd.f32 %v3093, %v3257
        %v3259 = vpop.f32.mrb[0].mxu0
        %3260 = vmatprep.mubr.f32.mxu0 %v2735
        %3261 = vmatmul.mubr.f32.gmra.mrb[0].mxu0 %v2734
        %v3262 = vpop.f32.mrb[0].mxu0
        %v3263 = vadd.f32 %v3098, %v3262
        %v3264 = vpop.f32.mrb[0].mxu0
        %3265 = vmatprep.mubr.f32.mxu0 %v2744
        %3266 = vmatmul.mubr.f32.gmra.mrb[0].mxu0 %v2743
        %v3267 = vpop.f32.mrb[0].mxu0
        %v3268 = vadd.f32 %v3103, %v3267
        %v3269 = vpop.f32.mrb[0].mxu0
        %3270 = vmatprep.mubr.f32.mxu0 %v2753
        %3271 = vmatmul.mubr.f32.gmra.mrb[0].mxu0 %v2752
        %v3272 = vpop.f32.mrb[0].mxu0
        %v3273 = vadd.f32 %v3108, %v3272
        %v3274 = vpop.f32.mrb[0].mxu0
        %3275 = vmatprep.mubr.f32.mxu0 %v2762
        %3276 = vmatmul.mubr.f32.gmra.mrb[0].mxu0 %v2761
        %v3277 = vpop.f32.mrb[0].mxu0
        %v3278 = vadd.f32 %v3113, %v3277
        %v3279 = vpop.f32.mrb[0].mxu0
        %3280 = vmatprep.mubr.f32.mxu0 %v2771
        %3281 = vmatmul.mubr.f32.gmra.mrb[0].mxu0 %v2770
        %v3282 = vpop.f32.mrb[0].mxu0
        %v3283 = vadd.f32 %v3118, %v3282
        %v3284 = vpop.f32.mrb[0].mxu0
        %3285 = vmatprep.mubr.f32.mxu0 %v2780
        %3286 = vmatmul.mubr.f32.gmra.mrb[0].mxu0 %v2779
        %v3287 = vpop.f32.mrb[0].mxu0
        %v3288 = vadd.f32 %v3123, %v3287
        %v3289 = vpop.f32.mrb[0].mxu0
        %3290 = vmatprep.mubr.f32.mxu0 %v2789
        %3291 = vmatmul.mubr.f32.gmra.mrb[0].mxu0 %v2788
        %v3292 = vpop.f32.mrb[0].mxu0
        %v3293 = vadd.f32 %v3128, %v3292
        %v3294 = vpop.f32.mrb[0].mxu0
        %3295 = vmatprep.mubr.f32.mxu0 %v2798
        %3296 = vmatmul.mubr.f32.gmra.mrb[0].mxu0 %v2797
        %v3297 = vpop.f32.mrb[0].mxu0
        %v3298 = vadd.f32 %v3133, %v3297
        %v3299 = vpop.f32.mrb[0].mxu0
        %3300 = vmatprep.mubr.f32.mxu0 %v2807
        %3301 = vmatmul.mubr.f32.gmra.mrb[0].mxu0 %v2806
        %v3302 = vpop.f32.mrb[0].mxu0
        %v3303 = vadd.f32 %v3138, %v3302
        %v3304 = vpop.f32.mrb[0].mxu0
        %3305 = vmatprep.mubr.f32.mxu0 %v2816
        %3306 = vmatmul.mubr.f32.gmra.mrb[0].mxu0 %v2815
        %v3307 = vpop.f32.mrb[0].mxu0
        %v3308 = vadd.f32 %v3143, %v3307
        %v3309 = vpop.f32.mrb[0].mxu0
        %3310 = vmatprep.mubr.f32.mxu0 %v2825
        %3311 = vmatmul.mubr.f32.gmra.mrb[0].mxu0 %v2824
        %v3312 = vpop.f32.mrb[0].mxu0
        %v3313 = vadd.f32 %v3148, %v3312
        %v3314 = vpop.f32.mrb[0].mxu0
        %3315 = vmatprep.mubr.f32.mxu0 %v2834
        %3316 = vmatmul.mubr.f32.gmra.mrb[0].mxu0 %v2833
        %v3317 = vpop.f32.mrb[0].mxu0
        %v3318 = vadd.f32 %v3153, %v3317
        %v3319 = vpop.f32.mrb[0].mxu0
        %3320 = vdwg.mxu0
        %3321 = vmatprep.subr.mxu0 0.0
        %3322 = vmatpush1.msra.mxu0 %v2904
        %3323 = vmatprep.subr.mxu0 0.0
        %3324 = vmatpush1.msra.mxu0 %v2905
        %3325 = vmatprep.subr.mxu0 0.0
        %3326 = vmatpush1.msra.mxu0 %v2906
        %3327 = vmatprep.subr.mxu0 0.0
        %3328 = vmatpush1.msra.mxu0 %v2907
        %3329 = vmatprep.subr.mxu0 0.0
        %3330 = vmatpush1.msra.mxu0 %v2908
        %3331 = vmatprep.subr.mxu0 0.0
        %3332 = vmatpush1.msra.mxu0 %v2909
        %3333 = vmatprep.subr.mxu0 0.0
        %3334 = vmatpush1.msra.mxu0 %v2910
        %3335 = vmatprep.subr.mxu0 0.0
        %3336 = vmatpush1.msra.mxu0 %v2911
        %3337 = vmatprep.subr.mxu0 0.0
        %3338 = vmatpush1.msra.mxu0 %v2912
        %3339 = vmatprep.subr.mxu0 0.0
        %3340 = vmatpush1.msra.mxu0 %v2913
        %3341 = vmatprep.subr.mxu0 0.0
        %3342 = vmatpush1.msra.mxu0 %v2914
        %3343 = vmatprep.subr.mxu0 0.0
        %3344 = vmatpush1.msra.mxu0 %v2915
        %3345 = vmatprep.subr.mxu0 0.0
        %3346 = vmatpush1.msra.mxu0 %v2916
        %3347 = vmatprep.subr.mxu0 0.0
        %3348 = vmatpush1.msra.mxu0 %v2917
        %3349 = vmatprep.subr.mxu0 0.0
        %3350 = vmatpush1.msra.mxu0 %v2918
        %3351 = vmatprep.subr.mxu0 0.0
        %3352 = vmatpush1.msra.mxu0 %v2919
        %3353 = vmatprep.subr.mxu0 0.0
        %3354 = vmatpush1.msra.mxu0 %v2920
        %3355 = vmatprep.subr.mxu0 0.0
        %3356 = vmatpush1.msra.mxu0 %v2921
        %3357 = vmatprep.subr.mxu0 0.0
        %3358 = vmatpush1.msra.mxu0 %v2922
        %3359 = vmatprep.subr.mxu0 0.0
        %3360 = vmatpush1.msra.mxu0 %v2923
        %3361 = vmatprep.subr.mxu0 0.0
        %3362 = vmatpush1.msra.mxu0 %v2924
        %3363 = vmatprep.subr.mxu0 0.0
        %3364 = vmatpush1.msra.mxu0 %v2925
        %3365 = vmatprep.subr.mxu0 0.0
        %3366 = vmatpush1.msra.mxu0 %v2926
        %3367 = vmatprep.subr.mxu0 0.0
        %3368 = vmatpush1.msra.mxu0 %v2927
        %3369 = vmatprep.subr.mxu0 0.0
        %3370 = vmatpush1.msra.mxu0 %v2928
        %3371 = vmatprep.subr.mxu0 0.0
        %3372 = vmatpush1.msra.mxu0 %v2929
        %3373 = vmatprep.subr.mxu0 0.0
        %3374 = vmatpush1.msra.mxu0 %v2930
        %3375 = vmatprep.subr.mxu0 0.0
        %3376 = vmatpush1.msra.mxu0 %v2931
        %3377 = vmatprep.subr.mxu0 0.0
        %3378 = vmatpush1.msra.mxu0 %v2932
        %3379 = vmatprep.subr.mxu0 0.0
        %3380 = vmatpush1.msra.mxu0 %v2933
        %3381 = vmatprep.subr.mxu0 0.0
        %3382 = vmatpush1.msra.mxu0 %v2934
        %3383 = vmatprep.subr.mxu0 0.0
        %3384 = vmatpush1.msra.mxu0 %v2935
        %3385 = vmatprep.mubr.f32.mxu0 %v2665
        %3386 = vmatmul.mubr.f32.gmra.mrb[0].mxu0 %v2664
        %v3387 = vpop.f32.mrb[0].mxu0
        %v3388 = vadd.f32 %v3223, %v3387
        %v3389 = vpop.f32.mrb[0].mxu0
        %3390 = vmatprep.mubr.f32.mxu0 %v2674
        %3391 = vmatmul.mubr.f32.gmra.mrb[0].mxu0 %v2673
        %v3392 = vpop.f32.mrb[0].mxu0
        %v3393 = vadd.f32 %v3228, %v3392
        %v3394 = vpop.f32.mrb[0].mxu0
        %3395 = vmatprep.mubr.f32.mxu0 %v2683
        %3396 = vmatmul.mubr.f32.gmra.mrb[0].mxu0 %v2682
        %v3397 = vpop.f32.mrb[0].mxu0
        %v3398 = vadd.f32 %v3233, %v3397
        %v3399 = vpop.f32.mrb[0].mxu0
        %3400 = vmatprep.mubr.f32.mxu0 %v2692
        %3401 = vmatmul.mubr.f32.gmra.mrb[0].mxu0 %v2691
        %v3402 = vpop.f32.mrb[0].mxu0
        %v3403 = vadd.f32 %v3238, %v3402
        %v3404 = vpop.f32.mrb[0].mxu0
        %3405 = vmatprep.mubr.f32.mxu0 %v2701
        %3406 = vmatmul.mubr.f32.gmra.mrb[0].mxu0 %v2700
        %v3407 = vpop.f32.mrb[0].mxu0
        %v3408 = vadd.f32 %v3243, %v3407
        %v3409 = vpop.f32.mrb[0].mxu0
        %3410 = vmatprep.mubr.f32.mxu0 %v2710
        %3411 = vmatmul.mubr.f32.gmra.mrb[0].mxu0 %v2709
        %v3412 = vpop.f32.mrb[0].mxu0
        %v3413 = vadd.f32 %v3248, %v3412
        %v3414 = vpop.f32.mrb[0].mxu0
        %3415 = vmatprep.mubr.f32.mxu0 %v2719
        %3416 = vmatmul.mubr.f32.gmra.mrb[0].mxu0 %v2718
        %v3417 = vpop.f32.mrb[0].mxu0
        %v3418 = vadd.f32 %v3253, %v3417
        %v3419 = vpop.f32.mrb[0].mxu0
        %3420 = vmatprep.mubr.f32.mxu0 %v2728
        %3421 = vmatmul.mubr.f32.gmra.mrb[0].mxu0 %v2727
        %v3422 = vpop.f32.mrb[0].mxu0
        %v3423 = vadd.f32 %v3258, %v3422
        %v3424 = vpop.f32.mrb[0].mxu0
        %3425 = vmatprep.mubr.f32.mxu0 %v2737
        %3426 = vmatmul.mubr.f32.gmra.mrb[0].mxu0 %v2736
        %v3427 = vpop.f32.mrb[0].mxu0
        %v3428 = vadd.f32 %v3263, %v3427
        %v3429 = vpop.f32.mrb[0].mxu0
        %3430 = vmatprep.mubr.f32.mxu0 %v2746
        %3431 = vmatmul.mubr.f32.gmra.mrb[0].mxu0 %v2745
        %v3432 = vpop.f32.mrb[0].mxu0
        %v3433 = vadd.f32 %v3268, %v3432
        %v3434 = vpop.f32.mrb[0].mxu0
        %3435 = vmatprep.mubr.f32.mxu0 %v2755
        %3436 = vmatmul.mubr.f32.gmra.mrb[0].mxu0 %v2754
        %v3437 = vpop.f32.mrb[0].mxu0
        %v3438 = vadd.f32 %v3273, %v3437
        %v3439 = vpop.f32.mrb[0].mxu0
        %3440 = vmatprep.mubr.f32.mxu0 %v2764
        %3441 = vmatmul.mubr.f32.gmra.mrb[0].mxu0 %v2763
        %v3442 = vpop.f32.mrb[0].mxu0
        %v3443 = vadd.f32 %v3278, %v3442
        %v3444 = vpop.f32.mrb[0].mxu0
        %3445 = vmatprep.mubr.f32.mxu0 %v2773
        %3446 = vmatmul.mubr.f32.gmra.mrb[0].mxu0 %v2772
        %v3447 = vpop.f32.mrb[0].mxu0
        %v3448 = vadd.f32 %v3283, %v3447
        %v3449 = vpop.f32.mrb[0].mxu0
        %3450 = vmatprep.mubr.f32.mxu0 %v2782
        %3451 = vmatmul.mubr.f32.gmra.mrb[0].mxu0 %v2781
        %v3452 = vpop.f32.mrb[0].mxu0
        %v3453 = vadd.f32 %v3288, %v3452
        %v3454 = vpop.f32.mrb[0].mxu0
        %3455 = vmatprep.mubr.f32.mxu0 %v2791
        %3456 = vmatmul.mubr.f32.gmra.mrb[0].mxu0 %v2790
        %v3457 = vpop.f32.mrb[0].mxu0
        %v3458 = vadd.f32 %v3293, %v3457
        %v3459 = vpop.f32.mrb[0].mxu0
        %3460 = vmatprep.mubr.f32.mxu0 %v2800
        %3461 = vmatmul.mubr.f32.gmra.mrb[0].mxu0 %v2799
        %v3462 = vpop.f32.mrb[0].mxu0
        %v3463 = vadd.f32 %v3298, %v3462
        %v3464 = vpop.f32.mrb[0].mxu0
        %3465 = vmatprep.mubr.f32.mxu0 %v2809
        %3466 = vmatmul.mubr.f32.gmra.mrb[0].mxu0 %v2808
        %v3467 = vpop.f32.mrb[0].mxu0
        %v3468 = vadd.f32 %v3303, %v3467
        %v3469 = vpop.f32.mrb[0].mxu0
        %3470 = vmatprep.mubr.f32.mxu0 %v2818
        %3471 = vmatmul.mubr.f32.gmra.mrb[0].mxu0 %v2817
        %v3472 = vpop.f32.mrb[0].mxu0
        %v3473 = vadd.f32 %v3308, %v3472
        %v3474 = vpop.f32.mrb[0].mxu0
        %3475 = vmatprep.mubr.f32.mxu0 %v2827
        %3476 = vmatmul.mubr.f32.gmra.mrb[0].mxu0 %v2826
        %v3477 = vpop.f32.mrb[0].mxu0
        %v3478 = vadd.f32 %v3313, %v3477
        %v3479 = vpop.f32.mrb[0].mxu0
        %3480 = vmatprep.mubr.f32.mxu0 %v2836
        %3481 = vmatmul.mubr.f32.gmra.mrb[0].mxu0 %v2835
        %v3482 = vpop.f32.mrb[0].mxu0
        %v3483 = vadd.f32 %v3318, %v3482
        %v3484 = vpop.f32.mrb[0].mxu0
        %3485 = vdwg.mxu0
        %3486 = vmatprep.subr.mxu0 0.0
        %3487 = vmatpush1.msra.mxu0 %v2936
        %3488 = vmatprep.subr.mxu0 0.0
        %3489 = vmatpush1.msra.mxu0 %v2937
        %3490 = vmatprep.subr.mxu0 0.0
        %3491 = vmatpush1.msra.mxu0 %v2938
        %3492 = vmatprep.subr.mxu0 0.0
        %3493 = vmatpush1.msra.mxu0 %v2939
        %3494 = vmatprep.subr.mxu0 0.0
        %3495 = vmatpush1.msra.mxu0 %v2940
        %3496 = vmatprep.subr.mxu0 0.0
        %3497 = vmatpush1.msra.mxu0 %v2941
        %3498 = vmatprep.subr.mxu0 0.0
        %3499 = vmatpush1.msra.mxu0 %v2942
        %3500 = vmatprep.subr.mxu0 0.0
        %3501 = vmatpush1.msra.mxu0 %v2943
        %3502 = vmatprep.subr.mxu0 0.0
        %3503 = vmatpush1.msra.mxu0 %v2944
        %3504 = vmatprep.subr.mxu0 0.0
        %3505 = vmatpush1.msra.mxu0 %v2945
        %3506 = vmatprep.subr.mxu0 0.0
        %3507 = vmatpush1.msra.mxu0 %v2946
        %3508 = vmatprep.subr.mxu0 0.0
        %3509 = vmatpush1.msra.mxu0 %v2947
        %3510 = vmatprep.subr.mxu0 0.0
        %3511 = vmatpush1.msra.mxu0 %v2948
        %3512 = vmatprep.subr.mxu0 0.0
        %3513 = vmatpush1.msra.mxu0 %v2949
        %3514 = vmatprep.subr.mxu0 0.0
        %3515 = vmatpush1.msra.mxu0 %v2950
        %3516 = vmatprep.subr.mxu0 0.0
        %3517 = vmatpush1.msra.mxu0 %v2951
        %3518 = vmatprep.subr.mxu0 0.0
        %3519 = vmatpush1.msra.mxu0 %v2952
        %3520 = vmatprep.subr.mxu0 0.0
        %3521 = vmatpush1.msra.mxu0 %v2953
        %3522 = vmatprep.subr.mxu0 0.0
        %3523 = vmatpush1.msra.mxu0 %v2954
        %3524 = vmatprep.subr.mxu0 0.0
        %3525 = vmatpush1.msra.mxu0 %v2955
        %3526 = vmatprep.subr.mxu0 0.0
        %3527 = vmatpush1.msra.mxu0 %v2956
        %3528 = vmatprep.subr.mxu0 0.0
        %3529 = vmatpush1.msra.mxu0 %v2957
        %3530 = vmatprep.subr.mxu0 0.0
        %3531 = vmatpush1.msra.mxu0 %v2958
        %3532 = vmatprep.subr.mxu0 0.0
        %3533 = vmatpush1.msra.mxu0 %v2959
        %3534 = vmatprep.subr.mxu0 0.0
        %3535 = vmatpush1.msra.mxu0 %v2960
        %3536 = vmatprep.subr.mxu0 0.0
        %3537 = vmatpush1.msra.mxu0 %v2961
        %3538 = vmatprep.subr.mxu0 0.0
        %3539 = vmatpush1.msra.mxu0 %v2962
        %3540 = vmatprep.subr.mxu0 0.0
        %3541 = vmatpush1.msra.mxu0 %v2963
        %3542 = vmatprep.subr.mxu0 0.0
        %3543 = vmatpush1.msra.mxu0 %v2964
        %3544 = vmatprep.subr.mxu0 0.0
        %3545 = vmatpush1.msra.mxu0 %v2965
        %3546 = vmatprep.subr.mxu0 0.0
        %3547 = vmatpush1.msra.mxu0 %v2966
        %3548 = vmatprep.subr.mxu0 0.0
        %3549 = vmatpush1.msra.mxu0 %v2967
        %3550 = vmatprep.mubr.f32.mxu0 %v2667
        %3551 = vmatmul.mubr.f32.gmra.mrb[0].mxu0 %v2666
        %v3552 = vpop.f32.mrb[0].mxu0
        %v3553 = vadd.f32 %v3388, %v3552
        %v3554 = vpop.f32.mrb[0].mxu0
        %3555 = vmatprep.mubr.f32.mxu0 %v2676
        %3556 = vmatmul.mubr.f32.gmra.mrb[0].mxu0 %v2675
        %v3557 = vpop.f32.mrb[0].mxu0
        %v3558 = vadd.f32 %v3393, %v3557
        %v3559 = vpop.f32.mrb[0].mxu0
        %3560 = vmatprep.mubr.f32.mxu0 %v2685
        %3561 = vmatmul.mubr.f32.gmra.mrb[0].mxu0 %v2684
        %v3562 = vpop.f32.mrb[0].mxu0
        %v3563 = vadd.f32 %v3398, %v3562
        %v3564 = vpop.f32.mrb[0].mxu0
        %3565 = vmatprep.mubr.f32.mxu0 %v2694
        %3566 = vmatmul.mubr.f32.gmra.mrb[0].mxu0 %v2693
        %v3567 = vpop.f32.mrb[0].mxu0
        %v3568 = vadd.f32 %v3403, %v3567
        %v3569 = vpop.f32.mrb[0].mxu0
        %3570 = vmatprep.mubr.f32.mxu0 %v2703
        %3571 = vmatmul.mubr.f32.gmra.mrb[0].mxu0 %v2702
        %v3572 = vpop.f32.mrb[0].mxu0
        %v3573 = vadd.f32 %v3408, %v3572
        %v3574 = vpop.f32.mrb[0].mxu0
        %3575 = vmatprep.mubr.f32.mxu0 %v2712
        %3576 = vmatmul.mubr.f32.gmra.mrb[0].mxu0 %v2711
        %v3577 = vpop.f32.mrb[0].mxu0
        %v3578 = vadd.f32 %v3413, %v3577
        %v3579 = vpop.f32.mrb[0].mxu0
        %3580 = vmatprep.mubr.f32.mxu0 %v2721
        %3581 = vmatmul.mubr.f32.gmra.mrb[0].mxu0 %v2720
        %v3582 = vpop.f32.mrb[0].mxu0
        %v3583 = vadd.f32 %v3418, %v3582
        %v3584 = vpop.f32.mrb[0].mxu0
        %3585 = vmatprep.mubr.f32.mxu0 %v2730
        %3586 = vmatmul.mubr.f32.gmra.mrb[0].mxu0 %v2729
        %v3587 = vpop.f32.mrb[0].mxu0
        %v3588 = vadd.f32 %v3423, %v3587
        %v3589 = vpop.f32.mrb[0].mxu0
        %3590 = vmatprep.mubr.f32.mxu0 %v2739
        %3591 = vmatmul.mubr.f32.gmra.mrb[0].mxu0 %v2738
        %v3592 = vpop.f32.mrb[0].mxu0
        %v3593 = vadd.f32 %v3428, %v3592
        %v3594 = vpop.f32.mrb[0].mxu0
        %3595 = vmatprep.mubr.f32.mxu0 %v2748
        %3596 = vmatmul.mubr.f32.gmra.mrb[0].mxu0 %v2747
        %v3597 = vpop.f32.mrb[0].mxu0
        %v3598 = vadd.f32 %v3433, %v3597
        %v3599 = vpop.f32.mrb[0].mxu0
        %3600 = vmatprep.mubr.f32.mxu0 %v2757
        %3601 = vmatmul.mubr.f32.gmra.mrb[0].mxu0 %v2756
        %v3602 = vpop.f32.mrb[0].mxu0
        %v3603 = vadd.f32 %v3438, %v3602
        %v3604 = vpop.f32.mrb[0].mxu0
        %3605 = vmatprep.mubr.f32.mxu0 %v2766
        %3606 = vmatmul.mubr.f32.gmra.mrb[0].mxu0 %v2765
        %v3607 = vpop.f32.mrb[0].mxu0
        %v3608 = vadd.f32 %v3443, %v3607
        %v3609 = vpop.f32.mrb[0].mxu0
        %3610 = vmatprep.mubr.f32.mxu0 %v2775
        %3611 = vmatmul.mubr.f32.gmra.mrb[0].mxu0 %v2774
        %v3612 = vpop.f32.mrb[0].mxu0
        %v3613 = vadd.f32 %v3448, %v3612
        %v3614 = vpop.f32.mrb[0].mxu0
        %3615 = vmatprep.mubr.f32.mxu0 %v2784
        %3616 = vmatmul.mubr.f32.gmra.mrb[0].mxu0 %v2783
        %v3617 = vpop.f32.mrb[0].mxu0
        %v3618 = vadd.f32 %v3453, %v3617
        %v3619 = vpop.f32.mrb[0].mxu0
        %3620 = vmatprep.mubr.f32.mxu0 %v2793
        %3621 = vmatmul.mubr.f32.gmra.mrb[0].mxu0 %v2792
        %v3622 = vpop.f32.mrb[0].mxu0
        %v3623 = vadd.f32 %v3458, %v3622
        %v3624 = vpop.f32.mrb[0].mxu0
        %3625 = vmatprep.mubr.f32.mxu0 %v2802
        %3626 = vmatmul.mubr.f32.gmra.mrb[0].mxu0 %v2801
        %v3627 = vpop.f32.mrb[0].mxu0
        %v3628 = vadd.f32 %v3463, %v3627
        %v3629 = vpop.f32.mrb[0].mxu0
        %3630 = vmatprep.mubr.f32.mxu0 %v2811
        %3631 = vmatmul.mubr.f32.gmra.mrb[0].mxu0 %v2810
        %v3632 = vpop.f32.mrb[0].mxu0
        %v3633 = vadd.f32 %v3468, %v3632
        %v3634 = vpop.f32.mrb[0].mxu0
        %3635 = vmatprep.mubr.f32.mxu0 %v2820
        %3636 = vmatmul.mubr.f32.gmra.mrb[0].mxu0 %v2819
        %v3637 = vpop.f32.mrb[0].mxu0
        %v3638 = vadd.f32 %v3473, %v3637
        %v3639 = vpop.f32.mrb[0].mxu0
        %3640 = vmatprep.mubr.f32.mxu0 %v2829
        %3641 = vmatmul.mubr.f32.gmra.mrb[0].mxu0 %v2828
        %v3642 = vpop.f32.mrb[0].mxu0
        %v3643 = vadd.f32 %v3478, %v3642
        %v3644 = vpop.f32.mrb[0].mxu0
        %3645 = vmatprep.mubr.f32.mxu0 %v2838
        %3646 = vmatmul.mubr.f32.gmra.mrb[0].mxu0 %v2837
        %v3647 = vpop.f32.mrb[0].mxu0
        %v3648 = vadd.f32 %v3483, %v3647
        %v3649 = vpop.f32.mrb[0].mxu0
        %3650 = vdwg.mxu0
        %3651 = vmatprep.subr.mxu0 0.0
        %3652 = vmatpush1.msra.mxu0 %v2968
        %3653 = vmatprep.subr.mxu0 0.0
        %3654 = vmatpush1.msra.mxu0 %v2969
        %3655 = vmatprep.subr.mxu0 0.0
        %3656 = vmatpush1.msra.mxu0 %v2970
        %3657 = vmatprep.subr.mxu0 0.0
        %3658 = vmatpush1.msra.mxu0 %v2971
        %3659 = vmatprep.subr.mxu0 0.0
        %3660 = vmatpush1.msra.mxu0 %v2972
        %3661 = vmatprep.subr.mxu0 0.0
        %3662 = vmatpush1.msra.mxu0 %v2973
        %3663 = vmatprep.subr.mxu0 0.0
        %3664 = vmatpush1.msra.mxu0 %v2974
        %3665 = vmatprep.subr.mxu0 0.0
        %3666 = vmatpush1.msra.mxu0 %v2975
        %3667 = vmatprep.subr.mxu0 0.0
        %3668 = vmatpush1.msra.mxu0 %v2976
        %3669 = vmatprep.subr.mxu0 0.0
        %3670 = vmatpush1.msra.mxu0 %v2977
        %3671 = vmatprep.subr.mxu0 0.0
        %3672 = vmatpush1.msra.mxu0 %v2978
        %3673 = vmatprep.subr.mxu0 0.0
        %3674 = vmatpush1.msra.mxu0 %v2979
        %3675 = vmatprep.subr.mxu0 0.0
        %3676 = vmatpush1.msra.mxu0 %v2980
        %3677 = vmatprep.subr.mxu0 0.0
        %3678 = vmatpush1.msra.mxu0 %v2981
        %3679 = vmatprep.subr.mxu0 0.0
        %3680 = vmatpush1.msra.mxu0 %v2982
        %3681 = vmatprep.subr.mxu0 0.0
        %3682 = vmatpush1.msra.mxu0 %v2983
        %3683 = vmatprep.subr.mxu0 0.0
        %3684 = vmatpush1.msra.mxu0 0.0
        %3685 = vmatprep.subr.mxu0 0.0
        %3686 = vmatpush1.msra.mxu0 0.0
        %3687 = vmatprep.subr.mxu0 0.0
        %3688 = vmatpush1.msra.mxu0 0.0
        %3689 = vmatprep.subr.mxu0 0.0
        %3690 = vmatpush1.msra.mxu0 0.0
        %3691 = vmatprep.subr.mxu0 0.0
        %3692 = vmatpush1.msra.mxu0 0.0
        %3693 = vmatprep.subr.mxu0 0.0
        %3694 = vmatpush1.msra.mxu0 0.0
        %3695 = vmatprep.subr.mxu0 0.0
        %3696 = vmatpush1.msra.mxu0 0.0
        %3697 = vmatprep.subr.mxu0 0.0
        %3698 = vmatpush1.msra.mxu0 0.0
        %3699 = vmatprep.subr.mxu0 0.0
        %3700 = vmatpush1.msra.mxu0 0.0
        %3701 = vmatprep.subr.mxu0 0.0
        %3702 = vmatpush1.msra.mxu0 0.0
        %3703 = vmatprep.subr.mxu0 0.0
        %3704 = vmatpush1.msra.mxu0 0.0
        %3705 = vmatprep.subr.mxu0 0.0
        %3706 = vmatpush1.msra.mxu0 0.0
        %3707 = vmatprep.subr.mxu0 0.0
        %3708 = vmatpush1.msra.mxu0 0.0
        %3709 = vmatprep.subr.mxu0 0.0
        %3710 = vmatpush1.msra.mxu0 0.0
        %3711 = vmatprep.subr.mxu0 0.0
        %3712 = vmatpush1.msra.mxu0 0.0
        %3713 = vmatprep.subr.mxu0 0.0
        %3714 = vmatpush1.msra.mxu0 0.0
        %3715 = vmatprep.mubr.f32.mxu0 0.0
        %3716 = vmatmul.mubr.f32.gmra.mrb[0].mxu0 %v2668
        %v3717 = vpop.f32.mrb[0].mxu0
        %v3718 = vadd.f32 %v3553, %v3717
        %v3719 = vpop.f32.mrb[0].mxu0
        %3720 = vmatprep.mubr.f32.mxu0 0.0
        %3721 = vmatmul.mubr.f32.gmra.mrb[0].mxu0 %v2677
        %v3722 = vpop.f32.mrb[0].mxu0
        %v3723 = vadd.f32 %v3558, %v3722
        %v3724 = vpop.f32.mrb[0].mxu0
        %3725 = vmatprep.mubr.f32.mxu0 0.0
        %3726 = vmatmul.mubr.f32.gmra.mrb[0].mxu0 %v2686
        %v3727 = vpop.f32.mrb[0].mxu0
        %v3728 = vadd.f32 %v3563, %v3727
        %v3729 = vpop.f32.mrb[0].mxu0
        %3730 = vmatprep.mubr.f32.mxu0 0.0
        %3731 = vmatmul.mubr.f32.gmra.mrb[0].mxu0 %v2695
        %v3732 = vpop.f32.mrb[0].mxu0
        %v3733 = vadd.f32 %v3568, %v3732
        %v3734 = vpop.f32.mrb[0].mxu0
        %3735 = vmatprep.mubr.f32.mxu0 0.0
        %3736 = vmatmul.mubr.f32.gmra.mrb[0].mxu0 %v2704
        %v3737 = vpop.f32.mrb[0].mxu0
        %v3738 = vadd.f32 %v3573, %v3737
        %v3739 = vpop.f32.mrb[0].mxu0
        %3740 = vmatprep.mubr.f32.mxu0 0.0
        %3741 = vmatmul.mubr.f32.gmra.mrb[0].mxu0 %v2713
        %v3742 = vpop.f32.mrb[0].mxu0
        %v3743 = vadd.f32 %v3578, %v3742
        %v3744 = vpop.f32.mrb[0].mxu0
        %3745 = vmatprep.mubr.f32.mxu0 0.0
        %3746 = vmatmul.mubr.f32.gmra.mrb[0].mxu0 %v2722
        %v3747 = vpop.f32.mrb[0].mxu0
        %v3748 = vadd.f32 %v3583, %v3747
        %v3749 = vpop.f32.mrb[0].mxu0
        %3750 = vmatprep.mubr.f32.mxu0 0.0
        %3751 = vmatmul.mubr.f32.gmra.mrb[0].mxu0 %v2731
        %v3752 = vpop.f32.mrb[0].mxu0
        %v3753 = vadd.f32 %v3588, %v3752
        %v3754 = vpop.f32.mrb[0].mxu0
        %3755 = vmatprep.mubr.f32.mxu0 0.0
        %3756 = vmatmul.mubr.f32.gmra.mrb[0].mxu0 %v2740
        %v3757 = vpop.f32.mrb[0].mxu0
        %v3758 = vadd.f32 %v3593, %v3757
        %v3759 = vpop.f32.mrb[0].mxu0
        %3760 = vmatprep.mubr.f32.mxu0 0.0
        %3761 = vmatmul.mubr.f32.gmra.mrb[0].mxu0 %v2749
        %v3762 = vpop.f32.mrb[0].mxu0
        %v3763 = vadd.f32 %v3598, %v3762
        %v3764 = vpop.f32.mrb[0].mxu0
        %3765 = vmatprep.mubr.f32.mxu0 0.0
        %3766 = vmatmul.mubr.f32.gmra.mrb[0].mxu0 %v2758
        %v3767 = vpop.f32.mrb[0].mxu0
        %v3768 = vadd.f32 %v3603, %v3767
        %v3769 = vpop.f32.mrb[0].mxu0
        %3770 = vmatprep.mubr.f32.mxu0 0.0
        %3771 = vmatmul.mubr.f32.gmra.mrb[0].mxu0 %v2767
        %v3772 = vpop.f32.mrb[0].mxu0
        %v3773 = vadd.f32 %v3608, %v3772
        %v3774 = vpop.f32.mrb[0].mxu0
        %3775 = vmatprep.mubr.f32.mxu0 0.0
        %3776 = vmatmul.mubr.f32.gmra.mrb[0].mxu0 %v2776
        %v3777 = vpop.f32.mrb[0].mxu0
        %v3778 = vadd.f32 %v3613, %v3777
        %v3779 = vpop.f32.mrb[0].mxu0
        %3780 = vmatprep.mubr.f32.mxu0 0.0
        %3781 = vmatmul.mubr.f32.gmra.mrb[0].mxu0 %v2785
        %v3782 = vpop.f32.mrb[0].mxu0
        %v3783 = vadd.f32 %v3618, %v3782
        %v3784 = vpop.f32.mrb[0].mxu0
        %3785 = vmatprep.mubr.f32.mxu0 0.0
        %3786 = vmatmul.mubr.f32.gmra.mrb[0].mxu0 %v2794
        %v3787 = vpop.f32.mrb[0].mxu0
        %v3788 = vadd.f32 %v3623, %v3787
        %v3789 = vpop.f32.mrb[0].mxu0
        %3790 = vmatprep.mubr.f32.mxu0 0.0
        %3791 = vmatmul.mubr.f32.gmra.mrb[0].mxu0 %v2803
        %v3792 = vpop.f32.mrb[0].mxu0
        %v3793 = vadd.f32 %v3628, %v3792
        %v3794 = vpop.f32.mrb[0].mxu0
        %3795 = vmatprep.mubr.f32.mxu0 0.0
        %3796 = vmatmul.mubr.f32.gmra.mrb[0].mxu0 %v2812
        %v3797 = vpop.f32.mrb[0].mxu0
        %v3798 = vadd.f32 %v3633, %v3797
        %v3799 = vpop.f32.mrb[0].mxu0
        %3800 = vmatprep.mubr.f32.mxu0 0.0
        %3801 = vmatmul.mubr.f32.gmra.mrb[0].mxu0 %v2821
        %v3802 = vpop.f32.mrb[0].mxu0
        %v3803 = vadd.f32 %v3638, %v3802
        %v3804 = vpop.f32.mrb[0].mxu0
        %3805 = vmatprep.mubr.f32.mxu0 0.0
        %3806 = vmatmul.mubr.f32.gmra.mrb[0].mxu0 %v2830
        %v3807 = vpop.f32.mrb[0].mxu0
        %v3808 = vadd.f32 %v3643, %v3807
        %v3809 = vpop.f32.mrb[0].mxu0
        %3810 = vmatprep.mubr.f32.mxu0 0.0
        %3811 = vmatmul.mubr.f32.gmra.mrb[0].mxu0 %v2839
        %v3812 = vpop.f32.mrb[0].mxu0
        %v3813 = vadd.f32 %v3648, %v3812
        %v3814 = vpop.f32.mrb[0].mxu0
        %3815 = vdwg.mxu0
        %v3816 = vmax.f32 %v3718, 0.0
        %v3817 = vmax.f32 %v3723, 0.0
        %v3818 = vmax.f32 %v3728, 0.0
        %v3819 = vmax.f32 %v3733, 0.0
        %v3820 = vmax.f32 %v3738, 0.0
        %v3821 = vmax.f32 %v3743, 0.0
        %v3822 = vmax.f32 %v3748, 0.0
        %v3823 = vmax.f32 %v3753, 0.0
        %v3824 = vmax.f32 %v3758, 0.0
        %v3825 = vmax.f32 %v3763, 0.0
        %v3826 = vmax.f32 %v3768, 0.0
        %v3827 = vmax.f32 %v3773, 0.0
        %v3828 = vmax.f32 %v3778, 0.0
        %v3829 = vmax.f32 %v3783, 0.0
        %v3830 = vmax.f32 %v3788, 0.0
        %v3831 = vmax.f32 %v3793, 0.0
        %v3832 = vmax.f32 %v3798, 0.0
        %v3833 = vmax.f32 %v3803, 0.0
        %v3834 = vmax.f32 %v3808, 0.0
        %v3835 = vmax.f32 %v3813, 0.0
        %3836 = vst [vmem:[%s283] sm:$0xff] %v3816
        %3837 = vst [vmem:[%s283 + $0x8] sm:$0xff] %v3817
        %3838 = vst [vmem:[%s283 + $0x10] sm:$0xff] %v3818
        %3839 = vst [vmem:[%s283 + $0x18] sm:$0xff] %v3819
        %3840 = vst [vmem:[%s283 + $0x20] sm:$0xff] %v3820
        %3841 = vst [vmem:[%s283 + $0x28] sm:$0xff] %v3821
        %3842 = vst [vmem:[%s283 + $0x30] sm:$0xff] %v3822
        %3843 = vst [vmem:[%s283 + $0x38] sm:$0xff] %v3823
        %3844 = vst [vmem:[%s283 + $0x40] sm:$0xff] %v3824
        %3845 = vst [vmem:[%s283 + $0x48] sm:$0xff] %v3825
        %3846 = vst [vmem:[%s283 + $0x50] sm:$0xff] %v3826
        %3847 = vst [vmem:[%s283 + $0x58] sm:$0xff] %v3827
        %3848 = vst [vmem:[%s283 + $0x60] sm:$0xff] %v3828
        %3849 = vst [vmem:[%s283 + $0x68] sm:$0xff] %v3829
        %3850 = vst [vmem:[%s283 + $0x70] sm:$0xff] %v3830
        %3851 = vst [vmem:[%s283 + $0x78] sm:$0xff] %v3831
        %3852 = vst [vmem:[%s283 + $0x80] sm:$0xff] %v3832
        %3853 = vst [vmem:[%s283 + $0x88] sm:$0xff] %v3833
        %3854 = vst [vmem:[%s283 + $0x90] sm:$0xff] %v3834
        %3855 = vst [vmem:[%s283 + $0x98] sm:$0xff] %v3835
        %s3856 = sand.u32 %s180, 1
        %s3857 = scalar_lea.sflag [#allocation6], %s3856
        %s3858 = sand.u32 %s180, 1
        %s3859 = smul.addr %s3858, 160
        %s3860 = scalar_lea.vmem [#allocation5], %s3859
        // Predicated region
        $region45: #{tpu_custom_call.1} parent=43 // pred_check
          %p3861 = pneg %p190
        $region46: #{tpu_custom_call.1} parent=43 // pred_check_branch
          %3863 = sbr.rel (%p3861) target = $region48
        $region47: #{tpu_custom_call.1} parent=43 // pred_region
          %s3865 = ssub.s32 2560, 2560
          %3866 = vsyncadd %s3857, %s3865
          %s3867 = smul.addr %s25, 20
          %s3868 = smul.addr %s24, 40
          %s3869 = sadd.s32 %s3867, %s3868
          %s3870 = smul.addr %s3869, 128
          %s3871 = scalar_lea.hbm %s6, %s3870
          %s3872 = sshll.u32 %s3860, 4
          %s3873 = int_to_ptr.vmem [resolvable:$true] %s3872
          %3878 = dma.vmem_to_hbm [thread:$0]  %s3873, 2560, %s3871, %s3857, 128, 128, 8
        $region48: #{tpu_custom_call.1} parent=43 // pred_fallthru
          _
      $region44: #{tpu_custom_call.1} parent=5 // pred_fallthru
        _
      %p3879 = scmp.le.s32.totalorder 2, %s15
      // Predicated region
      $region49: #{tpu_custom_call.1} parent=5 // pred_check
        %p3880 = pneg %p3879
      $region50: #{tpu_custom_call.1} parent=5 // pred_check_branch
        %3882 = sbr.rel (%p3880) target = $region52
      $region51: #{tpu_custom_call.1} parent=5 // pred_region
        %s3883 = ssub.s32 %s15, 2
        // Predicated region
        $region53: #{tpu_custom_call.1} parent=51 // pred_check
          %p3884 = pneg %p196
        $region54: #{tpu_custom_call.1} parent=51 // pred_check_branch
          %3886 = sbr.rel (%p3884) target = $region56
        $region55: #{tpu_custom_call.1} parent=51 // pred_region
          %s3887 = sand.u32 %s181, 1
          %s3888 = scalar_lea.sflag [#allocation6], %s3887
          %s3889 = sand.u32 %s181, 1
          %s3890 = smul.addr %s3889, 160
          %s3891 = scalar_lea.vmem [#allocation5], %s3890
          %3892 = dma.done %s3888, 2560
        $region56: #{tpu_custom_call.1} parent=51 // pred_fallthru
          _
      $region52: #{tpu_custom_call.1} parent=5 // pred_fallthru
        _
    $region6: #{tpu_custom_call.1} parent=1 // loop_footer
      %s19 = sadd.s32 1, %s15
    $region7: #{tpu_custom_call.1} parent=1 // loop_footer_branch
      %14 = sbr.rel target = $region3
    $region8: #{tpu_custom_call.1} parent=1 // loop_exit
      _
    %3893 = vsyncpa [#allocation6], 1
    %s3894 = scalar_lea.sflag [#allocation6], 1
    %3895 = vsyncpa %s3894, 1

</llo_original>
